<compile_context>
chip_gen: v6e
topology: v6e:2x2x1
jax: 0.10.0
libtpu: 0.0.40
codegen_flags: <defaults>
</compile_context>

<pallas_src>
import functools

import numpy as np
import jax
import jax.numpy as jnp
from jax.experimental import pallas as pl
from jax.experimental.pallas import tpu as pltpu


# ----------------------------------------------------------------------------- helpers

def _vmem_spec():
    return pl.BlockSpec(memory_space=pltpu.MemorySpace.VMEM)


def _pad_axis(x, axis=0, multiple=8):
    """Pad `axis` of x up to a multiple of `multiple` with zeros (sublane alignment)."""
    n = x.shape[axis]
    pad = (-n) % multiple
    if pad == 0:
        return x
    widths = [(0, 0)] * x.ndim
    widths[axis] = (0, pad)
    return jnp.pad(x, widths)


def _apply_activation(y, activation):
    if activation == "tanh":
        return jnp.tanh(y)
    if activation == "sigmoid":
        return jax.nn.sigmoid(y)
    if activation == "relu":
        return jnp.maximum(y, 0.0)
    return y


def _lstm_apply_gates(gates, c, H):
    """Gate columns are ordered (i, f, o, g): one sigmoid over the contiguous 3H slab,
    one tanh over the last H columns. gates:[N,4H]  c:[N,H]."""
    s = jax.nn.sigmoid(gates[:, :3 * H])
    g = jnp.tanh(gates[:, 3 * H:4 * H])
    i = s[:, 0 * H:1 * H]
    f = s[:, 1 * H:2 * H]
    o = s[:, 2 * H:3 * H]
    c_new = f * c + i * g
    h_new = o * jnp.tanh(c_new)
    return h_new, c_new


def _masked_additive_attention(enc, ctx, w_enc, w_ctx, v, lens):
    """Additive attention with length masking (values, used inside kernels).
    enc:[N,T,E] ctx:[N,C] w_enc:[E,A] w_ctx:[C,A] v:[1,A] lens:[N,1] int32
    returns attended [N,E], normalized scores [N,T]."""
    n, T, E = enc.shape
    A = w_enc.shape[-1]
    q = jnp.dot(ctx, w_ctx, preferred_element_type=jnp.float32)                     # [N,A]
    k = jnp.dot(enc.reshape(n * T, E), w_enc,
                preferred_element_type=jnp.float32).reshape(n, T, A)                # [N,T,A]
    e = jnp.tanh(k + q[:, None, :])
    scores = jnp.sum(e * v[None, :, :], axis=-1)                                    # [N,T]
    t_idx = jax.lax.broadcasted_iota(jnp.int32, (n, T), 1)
    mask = t_idx < lens
    scores = jnp.where(mask, scores, -1e30)
    scores = scores - jnp.max(scores, axis=-1, keepdims=True)
    w = jnp.where(mask, jnp.exp(scores), 0.0)
    denom = jnp.maximum(jnp.sum(w, axis=-1, keepdims=True), 1e-30)
    alpha = w / denom
    attended = jnp.sum(alpha[:, :, None] * enc, axis=1)                             # [N,E]
    return attended, alpha


# ----------------------------------------------------------------------------- fused kernels

def lstm_stack_kernel(num_layers, hidden_dim, x_ref, h_in_ref, c_in_ref, *rest):
    """One step of a multi-layer LSTM stack (encoder).
    x:[N,I] h_in/c_in:[L,N,H]  weights per layer (w_ih,w_hh,b)
    outputs: out:[N,H] (last layer h), h_out/c_out:[L,N,H]."""
    w_refs = rest[:3 * num_layers]
    out_ref, h_out_ref, c_out_ref = rest[3 * num_layers:]
    H = hidden_dim
    inp = x_ref[...]
    for l in range(num_layers):
        w_ih = w_refs[3 * l][...]
        w_hh = w_refs[3 * l + 1][...]
        b = w_refs[3 * l + 2][...]
        gates = (jnp.dot(inp, w_ih, preferred_element_type=jnp.float32)
                 + jnp.dot(h_in_ref[l], w_hh, preferred_element_type=jnp.float32)
                 + b)
        h_n, c_n = _lstm_apply_gates(gates, c_in_ref[l], H)
        h_out_ref[l] = h_n
        c_out_ref[l] = c_n
        inp = h_n
    out_ref[...] = inp.astype(out_ref.dtype)


def embedding_encoder_kernel(num_layers, seq_len, hidden_dim, emb_ref, len_ref, *rest):
    """Full embedding encoder: LSTM over all timesteps (length-masked state freeze) + masked
    additive-attention pooling, in one kernel. emb:[N,L,E] len:[N,1] int32."""
    w_refs = rest[:3 * num_layers]
    aw_enc_ref, aw_ctx_ref, av_ref = rest[3 * num_layers:3 * num_layers + 3]
    pooled_ref, scores_ref = rest[3 * num_layers + 3:]

    emb = emb_ref[...]
    lens = len_ref[...]                                        # [N,1] int32 (raw lengths)
    n = emb.shape[0]
    E = emb.shape[-1]
    H = hidden_dim
    L = seq_len

    # Hoist all weight loads once (the time loop below is fully unrolled).
    ws = [(w_refs[3 * l][...], w_refs[3 * l + 1][...], w_refs[3 * l + 2][...])
          for l in range(num_layers)]
    # Pre-broadcast upper-layer biases once (JAX does not CSE broadcast_in_dim).
    b_bcast = [jnp.broadcast_to(ws[l][2], (n, 4 * H)) for l in range(num_layers)]

    # Pre-project the layer-0 input->gates term for ALL timesteps in one matmul, bias folded in.
    x_gates0 = (jnp.dot(emb.reshape(n * L, E), ws[0][0],
                        preferred_element_type=jnp.float32).reshape(n, L, 4 * H)
                + ws[0][2])

    hs = [jnp.zeros((n, H), jnp.float32) for _ in range(num_layers)]
    cs = [jnp.zeros((n, H), jnp.float32) for _ in range(num_layers)]
    step_h = []
    for t in range(L):
        valid = (t < lens).astype(jnp.float32)                 # [N,1] freeze past length
        # layer 0 (only h @ w_hh stays in the serial chain)
        gates = x_gates0[:, t, :] + jnp.dot(hs[0], ws[0][1],
                                            preferred_element_type=jnp.float32)
        h_n, c_n = _lstm_apply_gates(gates, cs[0], H)
        hs[0] = valid * h_n + (1.0 - valid) * hs[0]
        cs[0] = valid * c_n + (1.0 - valid) * cs[0]
        inp = h_n
        for l in range(1, num_layers):
            gates = (jnp.dot(inp, ws[l][0], preferred_element_type=jnp.float32)
                     + jnp.dot(hs[l], ws[l][1], preferred_element_type=jnp.float32)
                     + b_bcast[l])
            h_n, c_n = _lstm_apply_gates(gates, cs[l], H)
            hs[l] = valid * h_n + (1.0 - valid) * hs[l]
            cs[l] = valid * c_n + (1.0 - valid) * cs[l]
            inp = h_n
        step_h.append(hs[-1])

    # Masked additive-attention pooling on one stacked [N,L,H] slab (single key matmul).
    hstack = jnp.stack(step_h, axis=1)                                               # [N,L,H]
    att_lens = jnp.maximum(lens, 1)
    pooled, alpha = _masked_additive_attention(
        hstack, hs[-1], aw_enc_ref[...], aw_ctx_ref[...], av_ref[...], att_lens)

    pooled_ref[...] = pooled.astype(pooled_ref.dtype)
    scores_ref[...] = alpha.astype(scores_ref.dtype)


def fused_decoder_kernel(num_layers, num_decoders, activation, has_extra, hidden_dim,
                         attn_dim, *refs):
    """All decoders fused: additive attention over history + LSTM step + linear head.
    Shared work (key projection, extra->gates projection) is done once for all decoders;
    all outputs are consolidated lane-dense slabs."""
    idx = 0
    enc_ref = refs[idx]; idx += 1            # [N,T,E]
    len_ref = refs[idx]; idx += 1            # [N,1] int32
    ctx_ref = refs[idx]; idx += 1            # [D,N,C]
    extra_ref = None
    if has_extra:
        extra_ref = refs[idx]; idx += 1      # [N,Eemb]
    h_in_ref = refs[idx]; idx += 1           # [D*L,N,H]
    c_in_ref = refs[idx]; idx += 1           # [D*L,N,H]
    w_enc_cat_ref = refs[idx]; idx += 1      # [E, D*A]   (all decoders' key projections)
    aw_ctx_ref = refs[idx]; idx += 1         # [D,C,A]
    av_ref = refs[idx]; idx += 1             # [D,1,A]
    w_ih0_att_ref = refs[idx]; idx += 1      # [D,E,4H]   (layer-0, attended part)
    w_ih0_extra_ref = None
    if has_extra:
        w_ih0_extra_ref = refs[idx]; idx += 1  # [Eemb, D*4H] (layer-0, shared-extra part)
    w_hh0_ref = refs[idx]; idx += 1          # [D,H,4H]
    b0_ref = refs[idx]; idx += 1             # [D,1,4H]
    upper = []
    for _ in range(1, num_layers):
        upper.append((refs[idx], refs[idx + 1], refs[idx + 2]))
        idx += 3
    out_w_ref = refs[idx]; idx += 1          # [D,H,O]
    out_b_ref = refs[idx]; idx += 1          # [D,1,O]
    decoded_ref, scores_ref, h_out_ref, c_out_ref = refs[idx:idx + 4]

    H = hidden_dim
    A = attn_dim
    D = num_decoders

    enc = enc_ref[...]
    n, T, E = enc.shape
    lens = len_ref[...]
    t_idx = jax.lax.broadcasted_iota(jnp.int32, (n, T), 1)
    mask = t_idx < lens

    # Shared across decoders: one key-projection matmul and one extra->gates matmul.
    enc_flat = enc.reshape(n * T, E)
    k_all = jnp.dot(enc_flat, w_enc_cat_ref[...],
                    preferred_element_type=jnp.float32).reshape(n, T, D * A)
    if has_extra:
        extra_gates = jnp.dot(extra_ref[...], w_ih0_extra_ref[...],
                              preferred_element_type=jnp.float32)                    # [N, D*4H]

    b0 = b0_ref[...]                                                                 # [D,1,4H]
    outs, alphas, h_cols, c_cols = [], [], [], []
    for d in range(D):
        # ---- attention over dialogue history
        q = jnp.dot(ctx_ref[d], aw_ctx_ref[d], preferred_element_type=jnp.float32)   # [N,A]
        e = jnp.tanh(k_all[:, :, d * A:(d + 1) * A] + q[:, None, :])
        scores = jnp.sum(e * av_ref[d][None, :, :], axis=-1)                          # [N,T]
        scores = jnp.where(mask, scores, -1e30)
        scores = scores - jnp.max(scores, axis=-1, keepdims=True)
        w = jnp.where(mask, jnp.exp(scores), 0.0)
        denom = jnp.maximum(jnp.sum(w, axis=-1, keepdims=True), 1e-30)
        alpha = w / denom
        attended = jnp.sum(alpha[:, :, None] * enc, axis=1)                           # [N,E]
        alphas.append(alpha)

        # ---- LSTM layer 0 (no lane-concat of [attended, extra]; gate contributions summed)
        gates = (jnp.dot(attended, w_ih0_att_ref[d], preferred_element_type=jnp.float32)
                 + jnp.dot(h_in_ref[d * num_layers], w_hh0_ref[d],
                           preferred_element_type=jnp.float32)
                 + b0[d])
        if has_extra:
            gates = gates + extra_gates[:, d * 4 * H:(d + 1) * 4 * H]
        h_n, c_n = _lstm_apply_gates(gates, c_in_ref[d * num_layers], H)
        h_cols.append(h_n)
        c_cols.append(c_n)
        inp = h_n

        # ---- upper LSTM layers
        for li, (w_ih, w_hh, b) in enumerate(upper, start=1):
            flat = d * num_layers + li
            gates = (jnp.dot(inp, w_ih[d], preferred_element_type=jnp.float32)
                     + jnp.dot(h_in_ref[flat], w_hh[d], preferred_element_type=jnp.float32)
                     + b[d])
            h_n, c_n = _lstm_apply_gates(gates, c_in_ref[flat], H)
            h_cols.append(h_n)
            c_cols.append(c_n)
            inp = h_n

        # ---- linear head
        y = jnp.dot(inp, out_w_ref[d], preferred_element_type=jnp.float32) + out_b_ref[d]
        outs.append(_apply_activation(y, activation))

    # Consolidated lane-dense stores (one store per output slab).
    decoded_ref[...] = jnp.concatenate(outs, axis=-1).astype(decoded_ref.dtype)       # [N,D*O]
    scores_ref[...] = jnp.concatenate(alphas, axis=-1).astype(scores_ref.dtype)       # [N,D*T]
    h_out_ref[...] = jnp.concatenate(h_cols, axis=-1).astype(h_out_ref.dtype)         # [N,D*L*H]
    c_out_ref[...] = jnp.concatenate(c_cols, axis=-1).astype(c_out_ref.dtype)         # [N,D*L*H]


# ----------------------------------------------------------------------------- wrappers

def lstm_stack_step(x, h_in, c_in, lstm_params):
    """x:[n,I]; h_in/c_in:[L,n,H] -> (out [n,H], h_out [L,n,H], c_out [L,n,H])."""
    num_layers = len(lstm_params)
    n = x.shape[0]
    H = h_in.shape[-1]
    x_p = _pad_axis(x.astype(jnp.float32), 0)
    h_p = _pad_axis(h_in.astype(jnp.float32), 1)
    c_p = _pad_axis(c_in.astype(jnp.float32), 1)
    n_pad = x_p.shape[0]
    w_args = []
    for p in lstm_params:
        w_args += [p["w_ih"], p["w_hh"], p["b"]]
    out, h_out, c_out = pl.pallas_call(
        functools.partial(lstm_stack_kernel, num_layers, H),
        out_shape=(jax.ShapeDtypeStruct((n_pad, H), jnp.float32),
                   jax.ShapeDtypeStruct((num_layers, n_pad, H), jnp.float32),
                   jax.ShapeDtypeStruct((num_layers, n_pad, H), jnp.float32)),
        in_specs=[_vmem_spec()] * (3 + len(w_args)),
        out_specs=(_vmem_spec(), _vmem_spec(), _vmem_spec()),
    )(x_p, h_p, c_p, *w_args)
    return out[:n], h_out[:, :n], c_out[:, :n]


def embedding_encoder_forward(params, encoder_in, lengths):
    """encoder_in: [N, L, emb_dim]; lengths: [N] host ints.  One fused kernel."""
    N, L, _ = encoder_in.shape
    H = params["hidden_dim"]
    num_layers = len(params["lstm"])
    lens = jnp.asarray(np.asarray(lengths), jnp.int32).reshape(N, 1)
    x_p = _pad_axis(encoder_in.astype(jnp.float32), 0)
    lens_p = _pad_axis(lens, 0)
    n_pad = x_p.shape[0]
    w_args = []
    for p in params["lstm"]:
        w_args += [p["w_ih"], p["w_hh"], p["b"]]
    args = [x_p, lens_p] + w_args + [params["att_w_enc"], params["att_w_ctx"], params["att_v"]]
    pooled, scores = pl.pallas_call(
        functools.partial(embedding_encoder_kernel, num_layers, L, H),
        out_shape=(jax.ShapeDtypeStruct((n_pad, H), jnp.float32),
                   jax.ShapeDtypeStruct((n_pad, L), jnp.float32)),
        in_specs=[_vmem_spec()] * len(args),
        out_specs=(_vmem_spec(), _vmem_spec()),
    )(*args)
    return pooled[:N], scores[:N]


def decoders_forward(dec_params, history_seq, history_seq_len, attention_contexts,
                     extra_input, h_stacked, c_stacked, activation):
    """One fused kernel for all decoders.
    history_seq:[n,T,E]  attention_contexts:[D,n,C]  h/c_stacked:[D*L,n,H].
    Returns decoded [n, D*O], scores [n, T, D], h_out/c_out [D, L, n, H]."""
    D = dec_params["num_decoders"]
    num_layers = len(dec_params["lstm"])
    n, T, E = history_seq.shape
    H = h_stacked.shape[-1]
    A = dec_params["att_w_enc"].shape[-1]
    O = dec_params["out_w"].shape[-1]
    lens = jnp.asarray(np.asarray(history_seq_len), jnp.int32).reshape(n, 1)

    enc_p = _pad_axis(history_seq.astype(jnp.float32), 0)
    lens_p = _pad_axis(lens, 0)
    ctx_p = _pad_axis(attention_contexts.astype(jnp.float32), 1)
    h_p = _pad_axis(h_stacked.astype(jnp.float32), 1)
    c_p = _pad_axis(c_stacked.astype(jnp.float32), 1)
    n_pad = enc_p.shape[0]

    has_extra = extra_input is not None

    # Fuse the D attention key projections into one [E, D*A] weight (done once per trace).
    w_enc_cat = jnp.transpose(dec_params["att_w_enc"], (1, 0, 2)).reshape(E, D * A)

    # Split layer-0 w_ih into the attended part and the shared-extra part.
    w_ih0 = dec_params["lstm"][0]["w_ih"]                       # [D, In, 4H]
    if has_extra:
        Eemb = extra_input.shape[-1]
        w_ih0_att = w_ih0[:, :E, :]
        w_ih0_extra = jnp.transpose(w_ih0[:, E:, :], (1, 0, 2)).reshape(Eemb, D * 4 * H)
    else:
        w_ih0_att = w_ih0

    args = [enc_p, lens_p, ctx_p]
    if has_extra:
        args.append(_pad_axis(extra_input.astype(jnp.float32), 0))
    args += [h_p, c_p, w_enc_cat, dec_params["att_w_ctx"], dec_params["att_v"], w_ih0_att]
    if has_extra:
        args.append(w_ih0_extra)
    args += [dec_params["lstm"][0]["w_hh"], dec_params["lstm"][0]["b"]]
    for lp in dec_params["lstm"][1:]:
        args += [lp["w_ih"], lp["w_hh"], lp["b"]]
    args += [dec_params["out_w"], dec_params["out_b"]]

    decoded, scores, h_out, c_out = pl.pallas_call(
        functools.partial(fused_decoder_kernel, num_layers, D, activation, has_extra, H, A),
        out_shape=(jax.ShapeDtypeStruct((n_pad, D * O), jnp.float32),
                   jax.ShapeDtypeStruct((n_pad, D * T), jnp.float32),
                   jax.ShapeDtypeStruct((n_pad, D * num_layers * H), jnp.float32),
                   jax.ShapeDtypeStruct((n_pad, D * num_layers * H), jnp.float32)),
        in_specs=[_vmem_spec()] * len(args),
        out_specs=tuple(_vmem_spec() for _ in range(4)),
    )(*args)

    decoded = decoded[:n]
    scores = scores[:n].reshape(n, D, T).transpose(0, 2, 1)                     # [n, T, D]
    h_out = h_out[:n].reshape(n, D, num_layers, H).transpose(1, 2, 0, 3)        # [D, L, n, H]
    c_out = c_out[:n].reshape(n, D, num_layers, H).transpose(1, 2, 0, 3)
    return decoded, scores, h_out, c_out


# ----------------------------------------------------------------------------- model forward

def conversation_model_forward(params, cfg, speech_features, encoder_hidden, decoder_hidden,
                               history, batch_mask, encode_mask, predict_mask,
                               dialogue_timestep, speaker=None, embeddings=None,
                               embeddings_len=None):
    """Masks are host-side numpy bool arrays, mirroring torch boolean indexing.
    Hidden state is kept stacked: encoder_hidden = (h [L,B,H], c [L,B,H]);
    decoder_hidden = (h [D,L,B,H], c [D,L,B,H]) — list-of-tuples [d][l] maps to h[d,l]/c[d,l]."""
    batch_mask = np.asarray(batch_mask)
    encode_mask = np.asarray(encode_mask)
    predict_mask = np.asarray(predict_mask)
    encode_mask_idx = np.arange(len(encode_mask))[encode_mask]

    embeddings_encoded = None
    if cfg["has_embeddings"] and embeddings is not None and embeddings_len is not None:
        embeddings_encoded, _ = embedding_encoder_forward(
            params["embedding_encoder"], embeddings[batch_mask],
            np.asarray(embeddings_len)[batch_mask])

    if encode_mask.any():
        encoder_in = [speech_features[encode_mask]]
        if cfg["has_speaker"] and speaker is not None:
            encoder_in.append(speaker[encode_mask])
        if embeddings_encoded is not None:
            embeddings_encode_mask = encode_mask[batch_mask]
            encoder_in.append(embeddings_encoded[embeddings_encode_mask])
        encoder_in = jnp.concatenate(encoder_in, axis=1)
        enc_h, enc_c = encoder_hidden
        h_sel = enc_h[:, encode_mask_idx]                                        # [L,n_enc,H]
        c_sel = enc_c[:, encode_mask_idx]
        encoded, h_new, c_new = lstm_stack_step(encoder_in, h_sel, c_sel,
                                                params["encoder"]["lstm"])
        # single scatter per state tensor (instead of 2*L separate scatters)
        encoder_hidden = (enc_h.at[:, encode_mask_idx, :].set(h_new),
                          enc_c.at[:, encode_mask_idx, :].set(c_new))
        # history_expand: scatter encoded vectors into history[batch, timestep]
        ts = np.asarray(dialogue_timestep)[encode_mask]
        history = history.at[encode_mask_idx, ts].set(encoded.astype(history.dtype))

    output = None
    attention_scores = None
    history_seq_len = None
    if predict_mask.any():
        history_seq = history[predict_mask]
        history_seq_len = np.asarray(dialogue_timestep)[predict_mask]
        predict_idx = np.arange(len(predict_mask))[predict_mask]
        n_pred = len(predict_idx)

        dec_params = params["decoders"]
        D = dec_params["num_decoders"]
        num_layers = len(dec_params["lstm"])
        dec_h, dec_c = decoder_hidden

        emb_pred = None
        if embeddings_encoded is not None:
            emb_pred = embeddings_encoded[predict_mask[batch_mask]]

        # per-decoder attention context: get_hidden_vector(h)[predict rows] (+ embeddings)
        ctx_h = dec_h[:, num_layers - 1][:, predict_idx, :]                       # [D,n_pred,H]
        if emb_pred is not None:
            attention_contexts = jnp.concatenate(
                [ctx_h, jnp.broadcast_to(emb_pred[None], (D, n_pred, emb_pred.shape[-1]))],
                axis=-1)                                                          # [D,n_pred,C]
        else:
            attention_contexts = ctx_h

        h_stacked = dec_h[:, :, predict_idx, :].reshape(D * num_layers, n_pred, dec_h.shape[-1])
        c_stacked = dec_c[:, :, predict_idx, :].reshape(D * num_layers, n_pred, dec_c.shape[-1])

        decoded, scores, h_out, c_out = decoders_forward(
            dec_params, history_seq, history_seq_len, attention_contexts,
            emb_pred, h_stacked, c_stacked, cfg["decoder_activation"])

        # single scatter per state tensor (instead of 2*D*L separate scatters)
        decoder_hidden = (dec_h.at[:, :, predict_idx, :].set(h_out),
                          dec_c.at[:, :, predict_idx, :].set(c_out))

        output = decoded                                                          # [n_pred, D*O]
        # pad_sequence + permute(1,2,0) over equal-shape [n,T] tensors == [n_pred, T, D]
        attention_scores = scores

    return output, encoder_hidden, decoder_hidden, history, history_seq_len, attention_scores


# ----------------------------------------------------------------------------- params init

def _normal(key, shape, scale=0.1):
    return scale * jax.random.normal(key, shape, dtype=jnp.float32)


def init_lstm_params(key, in_dim, hidden_dim, num_layers, stack=None):
    """Per-layer LSTM params; if `stack` is given, weights carry a leading [stack] axis
    (one slice per decoder).  Single bias == torch b_ih + b_hh summed.
    Gate column order is (i, f, o, g) — porting torch weights needs a column permutation."""
    layers = []
    for l in range(num_layers):
        key, k1, k2, k3 = jax.random.split(key, 4)
        i_dim = in_dim if l == 0 else hidden_dim
        lead = () if stack is None else (stack,)
        layers.append(dict(
            w_ih=_normal(k1, lead + (i_dim, 4 * hidden_dim)),
            w_hh=_normal(k2, lead + (hidden_dim, 4 * hidden_dim)),
            b=_normal(k3, lead + (1, 4 * hidden_dim)),
        ))
    return layers, key


def init_params(key, cfg):
    params = {}
    enc_in = cfg["num_speech_features"]
    if cfg["has_speaker"]:
        enc_in += 2
    if cfg["has_embeddings"]:
        enc_in += cfg["embedding_encoder_out_dim"]

    if cfg["has_embeddings"]:
        lstm, key = init_lstm_params(key, cfg["embedding_dim"],
                                     cfg["embedding_encoder_out_dim"],
                                     cfg["embedding_encoder_num_layers"])
        key, k1, k2, k3 = jax.random.split(key, 4)
        params["embedding_encoder"] = dict(
            hidden_dim=cfg["embedding_encoder_out_dim"],
            lstm=lstm,
            att_w_enc=_normal(k1, (cfg["embedding_encoder_out_dim"],
                                   cfg["embedding_attention_dim"])),
            att_w_ctx=_normal(k2, (cfg["embedding_encoder_out_dim"],
                                   cfg["embedding_attention_dim"])),
            att_v=_normal(k3, (1, cfg["embedding_attention_dim"])),
        )

    lstm, key = init_lstm_params(key, enc_in, cfg["encoder_out_dim"], cfg["encoder_num_layers"])
    params["encoder"] = dict(lstm=lstm)

    D = cfg["num_decoders"]
    attn_ctx_dim = cfg["decoder_out_dim"] + cfg["embedding_encoder_out_dim"]
    dec_in_dim = cfg["encoder_out_dim"] + cfg["embedding_encoder_out_dim"]
    dec_lstm, key = init_lstm_params(key, dec_in_dim, cfg["decoder_out_dim"],
                                     cfg["decoder_num_layers"], stack=D)
    key, k1, k2, k3, k4, k5 = jax.random.split(key, 6)
    params["decoders"] = dict(
        num_decoders=D,
        att_w_enc=_normal(k1, (D, cfg["encoder_out_dim"], cfg["attention_dim"])),
        att_w_ctx=_normal(k2, (D, attn_ctx_dim, cfg["attention_dim"])),
        att_v=_normal(k3, (D, 1, cfg["attention_dim"])),
        lstm=dec_lstm,
        out_w=_normal(k4, (D, cfg["decoder_out_dim"], cfg["outputs_per_decoder"])),
        out_b=_normal(k5, (D, 1, cfg["outputs_per_decoder"])),
    )
    return params


# ----------------------------------------------------------------------------- demo

if __name__ == "__main__":
    cfg = dict(
        num_speech_features=8,
        encoder_out_dim=32,
        encoder_num_layers=1,
        attention_dim=16,
        decoder_out_dim=16,
        decoder_num_layers=1,
        num_decoders=2,
        outputs_per_decoder=1,
        embedding_dim=8,
        embedding_encoder_out_dim=8,
        embedding_encoder_num_layers=1,
        embedding_attention_dim=8,
        has_speaker=True,
        has_embeddings=True,
        decoder_activation="tanh",
    )

    B, T_HIST, L_EMB = 4, 8, 6

    key = jax.random.PRNGKey(0)
    key, kp = jax.random.split(key)
    params = init_params(kp, cfg)

    key, k1, k2, k3, k4 = jax.random.split(key, 5)
    speech_features = jax.random.normal(k1, (B, cfg["num_speech_features"]), jnp.float32)
    speaker = jnp.eye(2, dtype=jnp.float32)[jnp.array([0, 1, 0, 1])]               # [B, 2]
    embeddings = jax.random.normal(k2, (B, L_EMB, cfg["embedding_dim"]), jnp.float32)
    embeddings_len = np.array([6, 3, 4, 2], dtype=np.int32)
    history = 0.01 * jax.random.normal(k3, (B, T_HIST, cfg["encoder_out_dim"]), jnp.float32)

    # Stacked hidden states: encoder (h,c) = [L,B,H]; decoder (h,c) = [D,L,B,H].
    encoder_hidden = (jnp.zeros((cfg["encoder_num_layers"], B, cfg["encoder_out_dim"]),
                                jnp.float32),
                      jnp.zeros((cfg["encoder_num_layers"], B, cfg["encoder_out_dim"]),
                                jnp.float32))
    decoder_hidden = (0.01 * jax.random.normal(
                          k4, (cfg["num_decoders"], cfg["decoder_num_layers"], B,
                               cfg["decoder_out_dim"]), jnp.float32),
                      jnp.zeros((cfg["num_decoders"], cfg["decoder_num_layers"], B,
                                 cfg["decoder_out_dim"]), jnp.float32))

    batch_mask = np.array([True, True, True, True])
    encode_mask = np.array([True, True, False, True])
    predict_mask = np.array([True, False, True, True])
    dialogue_timestep = np.array([2, 1, 3, 4], dtype=np.int32)

    (output, new_encoder_hidden, new_decoder_hidden, new_history,
     history_seq_len, attention_scores) = conversation_model_forward(
        params, cfg, speech_features, encoder_hidden, decoder_hidden, history,
        batch_mask, encode_mask, predict_mask, dialogue_timestep,
        speaker=speaker, embeddings=embeddings, embeddings_len=embeddings_len)

    jax.block_until_ready(output)
    jax.block_until_ready(new_history)
    jax.block_until_ready(attention_scores)
    jax.block_until_ready(new_encoder_hidden)
    jax.block_until_ready(new_decoder_hidden)

    n_pred = int(predict_mask.sum())
    assert output.shape == (n_pred, cfg["num_decoders"] * cfg["outputs_per_decoder"])
    assert attention_scores.shape == (n_pred, T_HIST, cfg["num_decoders"])
    assert new_encoder_hidden[0].shape == (cfg["encoder_num_layers"], B, cfg["encoder_out_dim"])
    assert new_decoder_hidden[0].shape == (cfg["num_decoders"], cfg["decoder_num_layers"], B,
                                           cfg["decoder_out_dim"])
    assert bool(jnp.all(jnp.isfinite(output)))
    assert bool(jnp.all(jnp.isfinite(attention_scores)))
    assert bool(jnp.all(jnp.isfinite(new_decoder_hidden[0])))
    print("KERNEL_OK")
</pallas_src>

<mosaic_0001>
module attributes {stable_mosaic.version = 11 : i64} {
  func.func @embedding_encoder_kernel(%arg0: memref<8x6x8xf32, #tpu.memory_space<vmem>>, %arg1: memref<8x1xi32, #tpu.memory_space<vmem>>, %arg2: memref<8x32xf32, #tpu.memory_space<vmem>>, %arg3: memref<8x32xf32, #tpu.memory_space<vmem>>, %arg4: memref<1x32xf32, #tpu.memory_space<vmem>>, %arg5: memref<8x8xf32, #tpu.memory_space<vmem>>, %arg6: memref<8x8xf32, #tpu.memory_space<vmem>>, %arg7: memref<1x8xf32, #tpu.memory_space<vmem>>, %arg8: memref<8x8xf32, #tpu.memory_space<vmem>>, %arg9: memref<8x6xf32, #tpu.memory_space<vmem>>) attributes {dimension_semantics = [], scalar_prefetch = 0 : i64, scratch_operands = 0 : i64, tpu.core_type = #tpu.core_type<tc>} {
    %c0 = arith.constant 0 : index
    %c0_0 = arith.constant 0 : index
    %c0_1 = arith.constant 0 : index
    %0 = vector.load %arg0[%c0, %c0_0, %c0_1] : memref<8x6x8xf32, #tpu.memory_space<vmem>>, vector<8x6x8xf32>
    %c0_2 = arith.constant 0 : index
    %c0_3 = arith.constant 0 : index
    %1 = vector.load %arg1[%c0_2, %c0_3] : memref<8x1xi32, #tpu.memory_space<vmem>>, vector<8x1xi32>
    %c0_4 = arith.constant 0 : index
    %c0_5 = arith.constant 0 : index
    %2 = vector.load %arg2[%c0_4, %c0_5] : memref<8x32xf32, #tpu.memory_space<vmem>>, vector<8x32xf32>
    %c0_6 = arith.constant 0 : index
    %c0_7 = arith.constant 0 : index
    %3 = vector.load %arg3[%c0_6, %c0_7] : memref<8x32xf32, #tpu.memory_space<vmem>>, vector<8x32xf32>
    %c0_8 = arith.constant 0 : index
    %c0_9 = arith.constant 0 : index
    %4 = vector.load %arg4[%c0_8, %c0_9] : memref<1x32xf32, #tpu.memory_space<vmem>>, vector<1x32xf32>
    %5 = vector.shape_cast %0 : vector<8x6x8xf32> to vector<48x8xf32>
    %cst = arith.constant dense<0.000000e+00> : vector<48x32xf32>
    %6 = tpu.matmul %5, %2, %cst {dimension_numbers = #tpu.dot_dimension_numbers<[1], [0], [0], [1], [0, 0, 1, 1], [], []>} : vector<48x8xf32>, vector<8x32xf32>, vector<48x32xf32> -> vector<48x32xf32>
    %7 = vector.shape_cast %6 : vector<48x32xf32> to vector<8x6x32xf32>
    %8 = vector.shape_cast %4 : vector<1x32xf32> to vector<1x1x32xf32>
    %9 = vector.broadcast %8 : vector<1x1x32xf32> to vector<8x6x32xf32>
    %10 = arith.addf %7, %9 : vector<8x6x32xf32>
    %cst_10 = arith.constant 0.000000e+00 : f32
    %11 = vector.broadcast %cst_10 : f32 to vector<8x8xf32>
    %cst_11 = arith.constant 0.000000e+00 : f32
    %12 = vector.broadcast %cst_11 : f32 to vector<8x8xf32>
    %c0_i32 = arith.constant 0 : i32
    %13 = vector.broadcast %c0_i32 : i32 to vector<8x1xi32>
    %14 = arith.cmpi sgt, %1, %13 : vector<8x1xi32>
    %15 = arith.extui %14 : vector<8x1xi1> to vector<8x1xi32>
    %16 = arith.sitofp %15 : vector<8x1xi32> to vector<8x1xf32>
    %17 = vector.extract_strided_slice %10 {offsets = [0, 0, 0], sizes = [8, 1, 32], strides = [1, 1, 1]} : vector<8x6x32xf32> to vector<8x1x32xf32>
    %18 = vector.shape_cast %17 : vector<8x1x32xf32> to vector<8x32xf32>
    %cst_12 = arith.constant dense<0.000000e+00> : vector<8x32xf32>
    %19 = tpu.matmul %11, %3, %cst_12 {dimension_numbers = #tpu.dot_dimension_numbers<[1], [0], [0], [1], [0, 0, 1, 1], [], []>} : vector<8x8xf32>, vector<8x32xf32>, vector<8x32xf32> -> vector<8x32xf32>
    %20 = arith.addf %18, %19 : vector<8x32xf32>
    %21 = vector.extract_strided_slice %20 {offsets = [0, 0], sizes = [8, 24], strides = [1, 1]} : vector<8x32xf32> to vector<8x24xf32>
    %22 = arith.negf %21 : vector<8x24xf32>
    %23 = math.exp %22 : vector<8x24xf32>
    %cst_13 = arith.constant 1.000000e+00 : f32
    %24 = vector.broadcast %cst_13 : f32 to vector<8x24xf32>
    %25 = arith.addf %24, %23 : vector<8x24xf32>
    %26 = arith.divf %24, %25 : vector<8x24xf32>
    %27 = vector.extract_strided_slice %20 {offsets = [0, 24], sizes = [8, 8], strides = [1, 1]} : vector<8x32xf32> to vector<8x8xf32>
    %28 = math.tanh %27 : vector<8x8xf32>
    %29 = vector.extract_strided_slice %26 {offsets = [0, 0], sizes = [8, 8], strides = [1, 1]} : vector<8x24xf32> to vector<8x8xf32>
    %30 = vector.extract_strided_slice %26 {offsets = [0, 8], sizes = [8, 8], strides = [1, 1]} : vector<8x24xf32> to vector<8x8xf32>
    %31 = vector.extract_strided_slice %26 {offsets = [0, 16], sizes = [8, 8], strides = [1, 1]} : vector<8x24xf32> to vector<8x8xf32>
    %32 = arith.mulf %30, %12 : vector<8x8xf32>
    %33 = arith.mulf %29, %28 : vector<8x8xf32>
    %34 = arith.addf %32, %33 : vector<8x8xf32>
    %35 = math.tanh %34 : vector<8x8xf32>
    %36 = arith.mulf %31, %35 : vector<8x8xf32>
    %37 = vector.broadcast %16 : vector<8x1xf32> to vector<8x8xf32>
    %38 = arith.mulf %37, %36 : vector<8x8xf32>
    %cst_14 = arith.constant 1.000000e+00 : f32
    %39 = vector.broadcast %cst_14 : f32 to vector<8x1xf32>
    %40 = arith.subf %39, %16 : vector<8x1xf32>
    %41 = vector.broadcast %40 : vector<8x1xf32> to vector<8x8xf32>
    %42 = arith.mulf %41, %11 : vector<8x8xf32>
    %43 = arith.addf %38, %42 : vector<8x8xf32>
    %44 = vector.broadcast %16 : vector<8x1xf32> to vector<8x8xf32>
    %45 = arith.mulf %44, %34 : vector<8x8xf32>
    %cst_15 = arith.constant 1.000000e+00 : f32
    %46 = vector.broadcast %cst_15 : f32 to vector<8x1xf32>
    %47 = arith.subf %46, %16 : vector<8x1xf32>
    %48 = vector.broadcast %47 : vector<8x1xf32> to vector<8x8xf32>
    %49 = arith.mulf %48, %12 : vector<8x8xf32>
    %50 = arith.addf %45, %49 : vector<8x8xf32>
    %c1_i32 = arith.constant 1 : i32
    %51 = vector.broadcast %c1_i32 : i32 to vector<8x1xi32>
    %52 = arith.cmpi sgt, %1, %51 : vector<8x1xi32>
    %53 = arith.extui %52 : vector<8x1xi1> to vector<8x1xi32>
    %54 = arith.sitofp %53 : vector<8x1xi32> to vector<8x1xf32>
    %55 = vector.extract_strided_slice %10 {offsets = [0, 1, 0], sizes = [8, 1, 32], strides = [1, 1, 1]} : vector<8x6x32xf32> to vector<8x1x32xf32>
    %56 = vector.shape_cast %55 : vector<8x1x32xf32> to vector<8x32xf32>
    %cst_16 = arith.constant dense<0.000000e+00> : vector<8x32xf32>
    %57 = tpu.matmul %43, %3, %cst_16 {dimension_numbers = #tpu.dot_dimension_numbers<[1], [0], [0], [1], [0, 0, 1, 1], [], []>} : vector<8x8xf32>, vector<8x32xf32>, vector<8x32xf32> -> vector<8x32xf32>
    %58 = arith.addf %56, %57 : vector<8x32xf32>
    %59 = vector.extract_strided_slice %58 {offsets = [0, 0], sizes = [8, 24], strides = [1, 1]} : vector<8x32xf32> to vector<8x24xf32>
    %60 = arith.negf %59 : vector<8x24xf32>
    %61 = math.exp %60 : vector<8x24xf32>
    %cst_17 = arith.constant 1.000000e+00 : f32
    %62 = vector.broadcast %cst_17 : f32 to vector<8x24xf32>
    %63 = arith.addf %62, %61 : vector<8x24xf32>
    %64 = arith.divf %62, %63 : vector<8x24xf32>
    %65 = vector.extract_strided_slice %58 {offsets = [0, 24], sizes = [8, 8], strides = [1, 1]} : vector<8x32xf32> to vector<8x8xf32>
    %66 = math.tanh %65 : vector<8x8xf32>
    %67 = vector.extract_strided_slice %64 {offsets = [0, 0], sizes = [8, 8], strides = [1, 1]} : vector<8x24xf32> to vector<8x8xf32>
    %68 = vector.extract_strided_slice %64 {offsets = [0, 8], sizes = [8, 8], strides = [1, 1]} : vector<8x24xf32> to vector<8x8xf32>
    %69 = vector.extract_strided_slice %64 {offsets = [0, 16], sizes = [8, 8], strides = [1, 1]} : vector<8x24xf32> to vector<8x8xf32>
    %70 = arith.mulf %68, %50 : vector<8x8xf32>
    %71 = arith.mulf %67, %66 : vector<8x8xf32>
    %72 = arith.addf %70, %71 : vector<8x8xf32>
    %73 = math.tanh %72 : vector<8x8xf32>
    %74 = arith.mulf %69, %73 : vector<8x8xf32>
    %75 = vector.broadcast %54 : vector<8x1xf32> to vector<8x8xf32>
    %76 = arith.mulf %75, %74 : vector<8x8xf32>
    %cst_18 = arith.constant 1.000000e+00 : f32
    %77 = vector.broadcast %cst_18 : f32 to vector<8x1xf32>
    %78 = arith.subf %77, %54 : vector<8x1xf32>
    %79 = vector.broadcast %78 : vector<8x1xf32> to vector<8x8xf32>
    %80 = arith.mulf %79, %43 : vector<8x8xf32>
    %81 = arith.addf %76, %80 : vector<8x8xf32>
    %82 = vector.broadcast %54 : vector<8x1xf32> to vector<8x8xf32>
    %83 = arith.mulf %82, %72 : vector<8x8xf32>
    %cst_19 = arith.constant 1.000000e+00 : f32
    %84 = vector.broadcast %cst_19 : f32 to vector<8x1xf32>
    %85 = arith.subf %84, %54 : vector<8x1xf32>
    %86 = vector.broadcast %85 : vector<8x1xf32> to vector<8x8xf32>
    %87 = arith.mulf %86, %50 : vector<8x8xf32>
    %88 = arith.addf %83, %87 : vector<8x8xf32>
    %c2_i32 = arith.constant 2 : i32
    %89 = vector.broadcast %c2_i32 : i32 to vector<8x1xi32>
    %90 = arith.cmpi sgt, %1, %89 : vector<8x1xi32>
    %91 = arith.extui %90 : vector<8x1xi1> to vector<8x1xi32>
    %92 = arith.sitofp %91 : vector<8x1xi32> to vector<8x1xf32>
    %93 = vector.extract_strided_slice %10 {offsets = [0, 2, 0], sizes = [8, 1, 32], strides = [1, 1, 1]} : vector<8x6x32xf32> to vector<8x1x32xf32>
    %94 = vector.shape_cast %93 : vector<8x1x32xf32> to vector<8x32xf32>
    %cst_20 = arith.constant dense<0.000000e+00> : vector<8x32xf32>
    %95 = tpu.matmul %81, %3, %cst_20 {dimension_numbers = #tpu.dot_dimension_numbers<[1], [0], [0], [1], [0, 0, 1, 1], [], []>} : vector<8x8xf32>, vector<8x32xf32>, vector<8x32xf32> -> vector<8x32xf32>
    %96 = arith.addf %94, %95 : vector<8x32xf32>
    %97 = vector.extract_strided_slice %96 {offsets = [0, 0], sizes = [8, 24], strides = [1, 1]} : vector<8x32xf32> to vector<8x24xf32>
    %98 = arith.negf %97 : vector<8x24xf32>
    %99 = math.exp %98 : vector<8x24xf32>
    %cst_21 = arith.constant 1.000000e+00 : f32
    %100 = vector.broadcast %cst_21 : f32 to vector<8x24xf32>
    %101 = arith.addf %100, %99 : vector<8x24xf32>
    %102 = arith.divf %100, %101 : vector<8x24xf32>
    %103 = vector.extract_strided_slice %96 {offsets = [0, 24], sizes = [8, 8], strides = [1, 1]} : vector<8x32xf32> to vector<8x8xf32>
    %104 = math.tanh %103 : vector<8x8xf32>
    %105 = vector.extract_strided_slice %102 {offsets = [0, 0], sizes = [8, 8], strides = [1, 1]} : vector<8x24xf32> to vector<8x8xf32>
    %106 = vector.extract_strided_slice %102 {offsets = [0, 8], sizes = [8, 8], strides = [1, 1]} : vector<8x24xf32> to vector<8x8xf32>
    %107 = vector.extract_strided_slice %102 {offsets = [0, 16], sizes = [8, 8], strides = [1, 1]} : vector<8x24xf32> to vector<8x8xf32>
    %108 = arith.mulf %106, %88 : vector<8x8xf32>
    %109 = arith.mulf %105, %104 : vector<8x8xf32>
    %110 = arith.addf %108, %109 : vector<8x8xf32>
    %111 = math.tanh %110 : vector<8x8xf32>
    %112 = arith.mulf %107, %111 : vector<8x8xf32>
    %113 = vector.broadcast %92 : vector<8x1xf32> to vector<8x8xf32>
    %114 = arith.mulf %113, %112 : vector<8x8xf32>
    %cst_22 = arith.constant 1.000000e+00 : f32
    %115 = vector.broadcast %cst_22 : f32 to vector<8x1xf32>
    %116 = arith.subf %115, %92 : vector<8x1xf32>
    %117 = vector.broadcast %116 : vector<8x1xf32> to vector<8x8xf32>
    %118 = arith.mulf %117, %81 : vector<8x8xf32>
    %119 = arith.addf %114, %118 : vector<8x8xf32>
    %120 = vector.broadcast %92 : vector<8x1xf32> to vector<8x8xf32>
    %121 = arith.mulf %120, %110 : vector<8x8xf32>
    %cst_23 = arith.constant 1.000000e+00 : f32
    %122 = vector.broadcast %cst_23 : f32 to vector<8x1xf32>
    %123 = arith.subf %122, %92 : vector<8x1xf32>
    %124 = vector.broadcast %123 : vector<8x1xf32> to vector<8x8xf32>
    %125 = arith.mulf %124, %88 : vector<8x8xf32>
    %126 = arith.addf %121, %125 : vector<8x8xf32>
    %c3_i32 = arith.constant 3 : i32
    %127 = vector.broadcast %c3_i32 : i32 to vector<8x1xi32>
    %128 = arith.cmpi sgt, %1, %127 : vector<8x1xi32>
    %129 = arith.extui %128 : vector<8x1xi1> to vector<8x1xi32>
    %130 = arith.sitofp %129 : vector<8x1xi32> to vector<8x1xf32>
    %131 = vector.extract_strided_slice %10 {offsets = [0, 3, 0], sizes = [8, 1, 32], strides = [1, 1, 1]} : vector<8x6x32xf32> to vector<8x1x32xf32>
    %132 = vector.shape_cast %131 : vector<8x1x32xf32> to vector<8x32xf32>
    %cst_24 = arith.constant dense<0.000000e+00> : vector<8x32xf32>
    %133 = tpu.matmul %119, %3, %cst_24 {dimension_numbers = #tpu.dot_dimension_numbers<[1], [0], [0], [1], [0, 0, 1, 1], [], []>} : vector<8x8xf32>, vector<8x32xf32>, vector<8x32xf32> -> vector<8x32xf32>
    %134 = arith.addf %132, %133 : vector<8x32xf32>
    %135 = vector.extract_strided_slice %134 {offsets = [0, 0], sizes = [8, 24], strides = [1, 1]} : vector<8x32xf32> to vector<8x24xf32>
    %136 = arith.negf %135 : vector<8x24xf32>
    %137 = math.exp %136 : vector<8x24xf32>
    %cst_25 = arith.constant 1.000000e+00 : f32
    %138 = vector.broadcast %cst_25 : f32 to vector<8x24xf32>
    %139 = arith.addf %138, %137 : vector<8x24xf32>
    %140 = arith.divf %138, %139 : vector<8x24xf32>
    %141 = vector.extract_strided_slice %134 {offsets = [0, 24], sizes = [8, 8], strides = [1, 1]} : vector<8x32xf32> to vector<8x8xf32>
    %142 = math.tanh %141 : vector<8x8xf32>
    %143 = vector.extract_strided_slice %140 {offsets = [0, 0], sizes = [8, 8], strides = [1, 1]} : vector<8x24xf32> to vector<8x8xf32>
    %144 = vector.extract_strided_slice %140 {offsets = [0, 8], sizes = [8, 8], strides = [1, 1]} : vector<8x24xf32> to vector<8x8xf32>
    %145 = vector.extract_strided_slice %140 {offsets = [0, 16], sizes = [8, 8], strides = [1, 1]} : vector<8x24xf32> to vector<8x8xf32>
    %146 = arith.mulf %144, %126 : vector<8x8xf32>
    %147 = arith.mulf %143, %142 : vector<8x8xf32>
    %148 = arith.addf %146, %147 : vector<8x8xf32>
    %149 = math.tanh %148 : vector<8x8xf32>
    %150 = arith.mulf %145, %149 : vector<8x8xf32>
    %151 = vector.broadcast %130 : vector<8x1xf32> to vector<8x8xf32>
    %152 = arith.mulf %151, %150 : vector<8x8xf32>
    %cst_26 = arith.constant 1.000000e+00 : f32
    %153 = vector.broadcast %cst_26 : f32 to vector<8x1xf32>
    %154 = arith.subf %153, %130 : vector<8x1xf32>
    %155 = vector.broadcast %154 : vector<8x1xf32> to vector<8x8xf32>
    %156 = arith.mulf %155, %119 : vector<8x8xf32>
    %157 = arith.addf %152, %156 : vector<8x8xf32>
    %158 = vector.broadcast %130 : vector<8x1xf32> to vector<8x8xf32>
    %159 = arith.mulf %158, %148 : vector<8x8xf32>
    %cst_27 = arith.constant 1.000000e+00 : f32
    %160 = vector.broadcast %cst_27 : f32 to vector<8x1xf32>
    %161 = arith.subf %160, %130 : vector<8x1xf32>
    %162 = vector.broadcast %161 : vector<8x1xf32> to vector<8x8xf32>
    %163 = arith.mulf %162, %126 : vector<8x8xf32>
    %164 = arith.addf %159, %163 : vector<8x8xf32>
    %c4_i32 = arith.constant 4 : i32
    %165 = vector.broadcast %c4_i32 : i32 to vector<8x1xi32>
    %166 = arith.cmpi sgt, %1, %165 : vector<8x1xi32>
    %167 = arith.extui %166 : vector<8x1xi1> to vector<8x1xi32>
    %168 = arith.sitofp %167 : vector<8x1xi32> to vector<8x1xf32>
    %169 = vector.extract_strided_slice %10 {offsets = [0, 4, 0], sizes = [8, 1, 32], strides = [1, 1, 1]} : vector<8x6x32xf32> to vector<8x1x32xf32>
    %170 = vector.shape_cast %169 : vector<8x1x32xf32> to vector<8x32xf32>
    %cst_28 = arith.constant dense<0.000000e+00> : vector<8x32xf32>
    %171 = tpu.matmul %157, %3, %cst_28 {dimension_numbers = #tpu.dot_dimension_numbers<[1], [0], [0], [1], [0, 0, 1, 1], [], []>} : vector<8x8xf32>, vector<8x32xf32>, vector<8x32xf32> -> vector<8x32xf32>
    %172 = arith.addf %170, %171 : vector<8x32xf32>
    %173 = vector.extract_strided_slice %172 {offsets = [0, 0], sizes = [8, 24], strides = [1, 1]} : vector<8x32xf32> to vector<8x24xf32>
    %174 = arith.negf %173 : vector<8x24xf32>
    %175 = math.exp %174 : vector<8x24xf32>
    %cst_29 = arith.constant 1.000000e+00 : f32
    %176 = vector.broadcast %cst_29 : f32 to vector<8x24xf32>
    %177 = arith.addf %176, %175 : vector<8x24xf32>
    %178 = arith.divf %176, %177 : vector<8x24xf32>
    %179 = vector.extract_strided_slice %172 {offsets = [0, 24], sizes = [8, 8], strides = [1, 1]} : vector<8x32xf32> to vector<8x8xf32>
    %180 = math.tanh %179 : vector<8x8xf32>
    %181 = vector.extract_strided_slice %178 {offsets = [0, 0], sizes = [8, 8], strides = [1, 1]} : vector<8x24xf32> to vector<8x8xf32>
    %182 = vector.extract_strided_slice %178 {offsets = [0, 8], sizes = [8, 8], strides = [1, 1]} : vector<8x24xf32> to vector<8x8xf32>
    %183 = vector.extract_strided_slice %178 {offsets = [0, 16], sizes = [8, 8], strides = [1, 1]} : vector<8x24xf32> to vector<8x8xf32>
    %184 = arith.mulf %182, %164 : vector<8x8xf32>
    %185 = arith.mulf %181, %180 : vector<8x8xf32>
    %186 = arith.addf %184, %185 : vector<8x8xf32>
    %187 = math.tanh %186 : vector<8x8xf32>
    %188 = arith.mulf %183, %187 : vector<8x8xf32>
    %189 = vector.broadcast %168 : vector<8x1xf32> to vector<8x8xf32>
    %190 = arith.mulf %189, %188 : vector<8x8xf32>
    %cst_30 = arith.constant 1.000000e+00 : f32
    %191 = vector.broadcast %cst_30 : f32 to vector<8x1xf32>
    %192 = arith.subf %191, %168 : vector<8x1xf32>
    %193 = vector.broadcast %192 : vector<8x1xf32> to vector<8x8xf32>
    %194 = arith.mulf %193, %157 : vector<8x8xf32>
    %195 = arith.addf %190, %194 : vector<8x8xf32>
    %196 = vector.broadcast %168 : vector<8x1xf32> to vector<8x8xf32>
    %197 = arith.mulf %196, %186 : vector<8x8xf32>
    %cst_31 = arith.constant 1.000000e+00 : f32
    %198 = vector.broadcast %cst_31 : f32 to vector<8x1xf32>
    %199 = arith.subf %198, %168 : vector<8x1xf32>
    %200 = vector.broadcast %199 : vector<8x1xf32> to vector<8x8xf32>
    %201 = arith.mulf %200, %164 : vector<8x8xf32>
    %202 = arith.addf %197, %201 : vector<8x8xf32>
    %c5_i32 = arith.constant 5 : i32
    %203 = vector.broadcast %c5_i32 : i32 to vector<8x1xi32>
    %204 = arith.cmpi sgt, %1, %203 : vector<8x1xi32>
    %205 = arith.extui %204 : vector<8x1xi1> to vector<8x1xi32>
    %206 = arith.sitofp %205 : vector<8x1xi32> to vector<8x1xf32>
    %207 = vector.extract_strided_slice %10 {offsets = [0, 5, 0], sizes = [8, 1, 32], strides = [1, 1, 1]} : vector<8x6x32xf32> to vector<8x1x32xf32>
    %208 = vector.shape_cast %207 : vector<8x1x32xf32> to vector<8x32xf32>
    %cst_32 = arith.constant dense<0.000000e+00> : vector<8x32xf32>
    %209 = tpu.matmul %195, %3, %cst_32 {dimension_numbers = #tpu.dot_dimension_numbers<[1], [0], [0], [1], [0, 0, 1, 1], [], []>} : vector<8x8xf32>, vector<8x32xf32>, vector<8x32xf32> -> vector<8x32xf32>
    %210 = arith.addf %208, %209 : vector<8x32xf32>
    %211 = vector.extract_strided_slice %210 {offsets = [0, 0], sizes = [8, 24], strides = [1, 1]} : vector<8x32xf32> to vector<8x24xf32>
    %212 = arith.negf %211 : vector<8x24xf32>
    %213 = math.exp %212 : vector<8x24xf32>
    %cst_33 = arith.constant 1.000000e+00 : f32
    %214 = vector.broadcast %cst_33 : f32 to vector<8x24xf32>
    %215 = arith.addf %214, %213 : vector<8x24xf32>
    %216 = arith.divf %214, %215 : vector<8x24xf32>
    %217 = vector.extract_strided_slice %210 {offsets = [0, 24], sizes = [8, 8], strides = [1, 1]} : vector<8x32xf32> to vector<8x8xf32>
    %218 = math.tanh %217 : vector<8x8xf32>
    %219 = vector.extract_strided_slice %216 {offsets = [0, 0], sizes = [8, 8], strides = [1, 1]} : vector<8x24xf32> to vector<8x8xf32>
    %220 = vector.extract_strided_slice %216 {offsets = [0, 8], sizes = [8, 8], strides = [1, 1]} : vector<8x24xf32> to vector<8x8xf32>
    %221 = vector.extract_strided_slice %216 {offsets = [0, 16], sizes = [8, 8], strides = [1, 1]} : vector<8x24xf32> to vector<8x8xf32>
    %222 = arith.mulf %220, %202 : vector<8x8xf32>
    %223 = arith.mulf %219, %218 : vector<8x8xf32>
    %224 = arith.addf %222, %223 : vector<8x8xf32>
    %225 = math.tanh %224 : vector<8x8xf32>
    %226 = arith.mulf %221, %225 : vector<8x8xf32>
    %227 = vector.broadcast %206 : vector<8x1xf32> to vector<8x8xf32>
    %228 = arith.mulf %227, %226 : vector<8x8xf32>
    %cst_34 = arith.constant 1.000000e+00 : f32
    %229 = vector.broadcast %cst_34 : f32 to vector<8x1xf32>
    %230 = arith.subf %229, %206 : vector<8x1xf32>
    %231 = vector.broadcast %230 : vector<8x1xf32> to vector<8x8xf32>
    %232 = arith.mulf %231, %195 : vector<8x8xf32>
    %233 = arith.addf %228, %232 : vector<8x8xf32>
    %234 = vector.shape_cast %43 : vector<8x8xf32> to vector<8x1x8xf32>
    %235 = vector.shape_cast %81 : vector<8x8xf32> to vector<8x1x8xf32>
    %236 = vector.shape_cast %119 : vector<8x8xf32> to vector<8x1x8xf32>
    %237 = vector.shape_cast %157 : vector<8x8xf32> to vector<8x1x8xf32>
    %238 = vector.shape_cast %195 : vector<8x8xf32> to vector<8x1x8xf32>
    %239 = vector.shape_cast %233 : vector<8x8xf32> to vector<8x1x8xf32>
    %240 = tpu.concatenate %234, %235, %236, %237, %238, %239 in 1 : vector<8x1x8xf32>, vector<8x1x8xf32>, vector<8x1x8xf32>, vector<8x1x8xf32>, vector<8x1x8xf32>, vector<8x1x8xf32> -> vector<8x6x8xf32>
    %c1_i32_35 = arith.constant 1 : i32
    %241 = vector.broadcast %c1_i32_35 : i32 to vector<8x1xi32>
    %242 = arith.maxsi %1, %241 : vector<8x1xi32>
    %c0_36 = arith.constant 0 : index
    %c0_37 = arith.constant 0 : index
    %243 = vector.load %arg5[%c0_36, %c0_37] : memref<8x8xf32, #tpu.memory_space<vmem>>, vector<8x8xf32>
    %c0_38 = arith.constant 0 : index
    %c0_39 = arith.constant 0 : index
    %244 = vector.load %arg6[%c0_38, %c0_39] : memref<8x8xf32, #tpu.memory_space<vmem>>, vector<8x8xf32>
    %c0_40 = arith.constant 0 : index
    %c0_41 = arith.constant 0 : index
    %245 = vector.load %arg7[%c0_40, %c0_41] : memref<1x8xf32, #tpu.memory_space<vmem>>, vector<1x8xf32>
    %cst_42 = arith.constant dense<0.000000e+00> : vector<8x8xf32>
    %246 = tpu.matmul %233, %244, %cst_42 {dimension_numbers = #tpu.dot_dimension_numbers<[1], [0], [0], [1], [0, 0, 1, 1], [], []>} : vector<8x8xf32>, vector<8x8xf32>, vector<8x8xf32> -> vector<8x8xf32>
    %247 = vector.shape_cast %240 : vector<8x6x8xf32> to vector<48x8xf32>
    %cst_43 = arith.constant dense<0.000000e+00> : vector<48x8xf32>
    %248 = tpu.matmul %247, %243, %cst_43 {dimension_numbers = #tpu.dot_dimension_numbers<[1], [0], [0], [1], [0, 0, 1, 1], [], []>} : vector<48x8xf32>, vector<8x8xf32>, vector<48x8xf32> -> vector<48x8xf32>
    %249 = vector.shape_cast %248 : vector<48x8xf32> to vector<8x6x8xf32>
    %250 = vector.shape_cast %246 : vector<8x8xf32> to vector<8x1x8xf32>
    %251 = vector.broadcast %250 : vector<8x1x8xf32> to vector<8x6x8xf32>
    %252 = arith.addf %249, %251 : vector<8x6x8xf32>
    %253 = math.tanh %252 : vector<8x6x8xf32>
    %254 = vector.shape_cast %245 : vector<1x8xf32> to vector<1x1x8xf32>
    %255 = vector.broadcast %254 : vector<1x1x8xf32> to vector<8x6x8xf32>
    %256 = arith.mulf %253, %255 : vector<8x6x8xf32>
    %cst_44 = arith.constant dense<0.000000e+00> : vector<8x6xf32>
    %257 = vector.multi_reduction <add>, %256, %cst_44 [2] : vector<8x6x8xf32> to vector<8x6xf32>
    %258 = tpu.iota {dimensions = array<i32: 1>} : vector<8x6xi32>
    %259 = vector.broadcast %242 : vector<8x1xi32> to vector<8x6xi32>
    %260 = arith.cmpi slt, %258, %259 : vector<8x6xi32>
    %cst_45 = arith.constant -1.000000e+30 : f32
    %261 = vector.broadcast %cst_45 : f32 to vector<8x6xf32>
    %262 = arith.select %260, %257, %261 : vector<8x6xi1>, vector<8x6xf32>
    %cst_46 = arith.constant dense<0xFF800000> : vector<8xf32>
    %263 = vector.multi_reduction <maximumf>, %262, %cst_46 [1] : vector<8x6xf32> to vector<8xf32>
    %264 = vector.shape_cast %263 : vector<8xf32> to vector<8x1xf32>
    %265 = vector.broadcast %264 : vector<8x1xf32> to vector<8x6xf32>
    %266 = arith.subf %262, %265 : vector<8x6xf32>
    %267 = math.exp %266 : vector<8x6xf32>
    %cst_47 = arith.constant 0.000000e+00 : f32
    %268 = vector.broadcast %cst_47 : f32 to vector<8x6xf32>
    %269 = arith.select %260, %267, %268 : vector<8x6xi1>, vector<8x6xf32>
    %cst_48 = arith.constant dense<0.000000e+00> : vector<8xf32>
    %270 = vector.multi_reduction <add>, %269, %cst_48 [1] : vector<8x6xf32> to vector<8xf32>
    %271 = vector.shape_cast %270 : vector<8xf32> to vector<8x1xf32>
    %cst_49 = arith.constant 1.000000e-30 : f32
    %272 = vector.broadcast %cst_49 : f32 to vector<8x1xf32>
    %273 = arith.maximumf %271, %272 : vector<8x1xf32>
    %274 = vector.broadcast %273 : vector<8x1xf32> to vector<8x6xf32>
    %275 = arith.divf %269, %274 : vector<8x6xf32>
    %276 = vector.shape_cast %275 : vector<8x6xf32> to vector<8x6x1xf32>
    %277 = vector.broadcast %276 : vector<8x6x1xf32> to vector<8x6x8xf32>
    %278 = arith.mulf %277, %240 : vector<8x6x8xf32>
    %cst_50 = arith.constant dense<0.000000e+00> : vector<8x8xf32>
    %279 = vector.multi_reduction <add>, %278, %cst_50 [1] : vector<8x6x8xf32> to vector<8x8xf32>
    %c0_51 = arith.constant 0 : index
    %c0_52 = arith.constant 0 : index
    %280 = vector.load %arg8[%c0_51, %c0_52] : memref<8x8xf32, #tpu.memory_space<vmem>>, vector<8x8xf32>
    tpu.vector_store %arg8[%c0_51, %c0_52], %279 {strides = array<i32>} : memref<8x8xf32, #tpu.memory_space<vmem>>, vector<8x8xf32>,
    %c0_53 = arith.constant 0 : index
    %c0_54 = arith.constant 0 : index
    %281 = vector.load %arg9[%c0_53, %c0_54] : memref<8x6xf32, #tpu.memory_space<vmem>>, vector<8x6xf32>
    tpu.vector_store %arg9[%c0_53, %c0_54], %275 {strides = array<i32>} : memref<8x6xf32, #tpu.memory_space<vmem>>, vector<8x6xf32>,
    return
  }
}

</mosaic_0001>

<llo_original>
// kernel: tpu_custom_call.1
$region0: #{tpu_custom_call.1}
  #allocation0 [shape = 'u32[]', space=smem, size = 0x4, offset = 0x4, fixed_abs, tag = 'smem constant byte address 0x4 - core index']
  #allocation1 [shape = 'u32[144,128]{1,0:T(1,128)}', space=vmem, size = 0x12000, scoped, tag = 'internal scratch']
  %s0 = inlined_call_operand.vmem [shape: f32[8,6,8], index: 0, kind: input, shape index: {}]
  %s1 = inlined_call_operand.vmem [shape: s32[8,1], index: 1, kind: input, shape index: {}]
  %s2 = inlined_call_operand.vmem [shape: f32[8,32], index: 2, kind: input, shape index: {}]
  %s3 = inlined_call_operand.vmem [shape: f32[8,32], index: 3, kind: input, shape index: {}]
  %s4 = inlined_call_operand.vmem [shape: f32[1,32], index: 4, kind: input, shape index: {}]
  %s5 = inlined_call_operand.vmem [shape: f32[8,8], index: 5, kind: input, shape index: {}]
  %s6 = inlined_call_operand.vmem [shape: f32[8,8], index: 6, kind: input, shape index: {}]
  %s7 = inlined_call_operand.vmem [shape: f32[1,8], index: 7, kind: input, shape index: {}]
  %s8 = inlined_call_operand.hbm [shape: f32[8,8], index: 8, kind: output, shape index: {0}]
  %s9 = inlined_call_operand.hbm [shape: f32[8,6], index: 9, kind: output, shape index: {1}]
  %10 = xla_tuple %s8, %s9
  %s11 = sld [smem:[#allocation0]]
  $region50: #{tpu_custom_call.1} parent=0
    _
  %s13 = ssub.s32 1, %s11
  %s14 = scalar_select 0, %s13, %s11
  $region1: #{tpu_custom_call.1} parent=0
    #allocation2 [shape = 'u8[4096]{0}', space=vmem, size = 0x1000, scoped, tag = 'output window, operand 0, single buffered']
    #allocation3 [shape = 's32[1]{0}', space=sflag, size = 0x4, scoped, tag = 'scoped memory for tpu_custom_call.1']
    #allocation4 [shape = 'u8[4096]{0}', space=vmem, size = 0x1000, scoped, tag = 'output window, operand 1, single buffered']
    #allocation5 [shape = 's32[1]{0}', space=sflag, size = 0x4, scoped, tag = 'scoped memory for tpu_custom_call.1']
    %15 = vsyncpa [#allocation3], 0
    %16 = vsyncpa [#allocation5], 0
    // Predicated region
    $region2: #{tpu_custom_call.1} parent=1 // pred_check
      _
    $region3: #{tpu_custom_call.1} parent=1 // pred_check_branch
      %18 = sbr.rel (0) target = $region5
    $region4: #{tpu_custom_call.1} parent=1 // pred_region
      _
    $region5: #{tpu_custom_call.1} parent=1 // pred_fallthru
      _
    // Predicated region
    $region6: #{tpu_custom_call.1} parent=1 // pred_check
      _
    $region7: #{tpu_custom_call.1} parent=1 // pred_check_branch
      %20 = sbr.rel (0) target = $region9
    $region8: #{tpu_custom_call.1} parent=1 // pred_region
      _
    $region9: #{tpu_custom_call.1} parent=1 // pred_fallthru
      _
    // Predicated region
    $region10: #{tpu_custom_call.1} parent=1 // pred_check
      _
    $region11: #{tpu_custom_call.1} parent=1 // pred_check_branch
      %22 = sbr.rel (0) target = $region13
    $region12: #{tpu_custom_call.1} parent=1 // pred_region
      _
    $region13: #{tpu_custom_call.1} parent=1 // pred_fallthru
      _
    // Predicated region
    $region14: #{tpu_custom_call.1} parent=1 // pred_check
      _
    $region15: #{tpu_custom_call.1} parent=1 // pred_check_branch
      %24 = sbr.rel (0) target = $region17
    $region16: #{tpu_custom_call.1} parent=1 // pred_region
      _
    $region17: #{tpu_custom_call.1} parent=1 // pred_fallthru
      _
    // Predicated region
    $region18: #{tpu_custom_call.1} parent=1 // pred_check
      _
    $region19: #{tpu_custom_call.1} parent=1 // pred_check_branch
      %26 = sbr.rel (0) target = $region21
    $region20: #{tpu_custom_call.1} parent=1 // pred_region
      _
    $region21: #{tpu_custom_call.1} parent=1 // pred_fallthru
      _
    // Predicated region
    $region22: #{tpu_custom_call.1} parent=1 // pred_check
      _
    $region23: #{tpu_custom_call.1} parent=1 // pred_check_branch
      %28 = sbr.rel (0) target = $region25
    $region24: #{tpu_custom_call.1} parent=1 // pred_region
      _
    $region25: #{tpu_custom_call.1} parent=1 // pred_fallthru
      _
    // Predicated region
    $region26: #{tpu_custom_call.1} parent=1 // pred_check
      _
    $region27: #{tpu_custom_call.1} parent=1 // pred_check_branch
      %30 = sbr.rel (0) target = $region29
    $region28: #{tpu_custom_call.1} parent=1 // pred_region
      _
    $region29: #{tpu_custom_call.1} parent=1 // pred_fallthru
      _
    // Predicated region
    $region30: #{tpu_custom_call.1} parent=1 // pred_check
      _
    $region31: #{tpu_custom_call.1} parent=1 // pred_check_branch
      %32 = sbr.rel (0) target = $region33
    $region32: #{tpu_custom_call.1} parent=1 // pred_region
      _
    $region33: #{tpu_custom_call.1} parent=1 // pred_fallthru
      _
    %v33 = vld [vmem:[%s0] sm:$0x3f]
    %v34 = vld [vmem:[%s0 + $0x8] sm:$0x3f]
    %v35 = vld [vmem:[%s0 + $0x10] sm:$0x3f]
    %v36 = vld [vmem:[%s0 + $0x18] sm:$0x3f]
    %v37 = vld [vmem:[%s0 + $0x20] sm:$0x3f]
    %v38 = vld [vmem:[%s0 + $0x28] sm:$0x3f]
    %v39 = vld [vmem:[%s0 + $0x30] sm:$0x3f]
    %v40 = vld [vmem:[%s0 + $0x38] sm:$0x3f]
    %v41 = vld [vmem:[%s1] sm:$0xff]
    %v42 = vld [vmem:[%s2] sm:$0xff]
    %v43 = vld [vmem:[%s3] sm:$0xff]
    %v44 = vld [vmem:[%s4] sm:$0x1]
    %v53 = vcombine.high %v33, %v33
    %v55 = vunpack.c.l.s4 1983009808
    %v56 = vunpack.c.0.s8 %v55
    %v57 = vlaneseq
    %v58 = vshrl.u32 %v57, 7
    %v59 = vsub.s32 %v56, %v58
    %v60 = vrot.slane %v33, %v59
    %v62 = vunpack.c.l.s4 1983009808
    %v63 = vunpack.c.0.s8 %v62
    %v64 = vlaneseq
    %v65 = vshrl.u32 %v64, 7
    %v66 = vsub.s32 %v63, %v65
    %v67 = vrot.slane %v53, %v66
    %v68 = vcombine.high %v60, %v60
    %v69 = vcombine.high %v34, %v34
    %v71 = vunpack.c.l.s4 1983009808
    %v72 = vunpack.c.0.s8 %v71
    %v73 = vlaneseq
    %v74 = vshrl.u32 %v73, 7
    %v75 = vsub.s32 %v72, %v74
    %v76 = vrot.slane %v34, %v75
    %v78 = vunpack.c.l.s4 1983009808
    %v79 = vunpack.c.0.s8 %v78
    %v80 = vlaneseq
    %v81 = vshrl.u32 %v80, 7
    %v82 = vsub.s32 %v79, %v81
    %v83 = vrot.slane %v69, %v82
    %v84 = vcombine.high %v76, %v76
    %v85 = vcombine.high %v35, %v35
    %v87 = vunpack.c.l.s4 1983009808
    %v88 = vunpack.c.0.s8 %v87
    %v89 = vlaneseq
    %v90 = vshrl.u32 %v89, 7
    %v91 = vsub.s32 %v88, %v90
    %v92 = vrot.slane %v35, %v91
    %v94 = vunpack.c.l.s4 1983009808
    %v95 = vunpack.c.0.s8 %v94
    %v96 = vlaneseq
    %v97 = vshrl.u32 %v96, 7
    %v98 = vsub.s32 %v95, %v97
    %v99 = vrot.slane %v85, %v98
    %v100 = vcombine.high %v92, %v92
    %v101 = vcombine.high %v36, %v36
    %v103 = vunpack.c.l.s4 1983009808
    %v104 = vunpack.c.0.s8 %v103
    %v105 = vlaneseq
    %v106 = vshrl.u32 %v105, 7
    %v107 = vsub.s32 %v104, %v106
    %v108 = vrot.slane %v36, %v107
    %v110 = vunpack.c.l.s4 1983009808
    %v111 = vunpack.c.0.s8 %v110
    %v112 = vlaneseq
    %v113 = vshrl.u32 %v112, 7
    %v114 = vsub.s32 %v111, %v113
    %v115 = vrot.slane %v101, %v114
    %v116 = vcombine.high %v108, %v108
    %v117 = vcombine.high %v37, %v37
    %v119 = vunpack.c.l.s4 1983009808
    %v120 = vunpack.c.0.s8 %v119
    %v121 = vlaneseq
    %v122 = vshrl.u32 %v121, 7
    %v123 = vsub.s32 %v120, %v122
    %v124 = vrot.slane %v37, %v123
    %v126 = vunpack.c.l.s4 1983009808
    %v127 = vunpack.c.0.s8 %v126
    %v128 = vlaneseq
    %v129 = vshrl.u32 %v128, 7
    %v130 = vsub.s32 %v127, %v129
    %v131 = vrot.slane %v117, %v130
    %v132 = vcombine.high %v124, %v124
    %v133 = vcombine.high %v38, %v38
    %v135 = vunpack.c.l.s4 1983009808
    %v136 = vunpack.c.0.s8 %v135
    %v137 = vlaneseq
    %v138 = vshrl.u32 %v137, 7
    %v139 = vsub.s32 %v136, %v138
    %v140 = vrot.slane %v38, %v139
    %v142 = vunpack.c.l.s4 1983009808
    %v143 = vunpack.c.0.s8 %v142
    %v144 = vlaneseq
    %v145 = vshrl.u32 %v144, 7
    %v146 = vsub.s32 %v143, %v145
    %v147 = vrot.slane %v133, %v146
    %v148 = vcombine.high %v140, %v140
    %v149 = vcombine.high %v39, %v39
    %v151 = vunpack.c.l.s4 1983009808
    %v152 = vunpack.c.0.s8 %v151
    %v153 = vlaneseq
    %v154 = vshrl.u32 %v153, 7
    %v155 = vsub.s32 %v152, %v154
    %v156 = vrot.slane %v39, %v155
    %v158 = vunpack.c.l.s4 1983009808
    %v159 = vunpack.c.0.s8 %v158
    %v160 = vlaneseq
    %v161 = vshrl.u32 %v160, 7
    %v162 = vsub.s32 %v159, %v161
    %v163 = vrot.slane %v149, %v162
    %v164 = vcombine.high %v156, %v156
    %v165 = vcombine.high %v40, %v40
    %v167 = vunpack.c.l.s4 1983009808
    %v168 = vunpack.c.0.s8 %v167
    %v169 = vlaneseq
    %v170 = vshrl.u32 %v169, 7
    %v171 = vsub.s32 %v168, %v170
    %v172 = vrot.slane %v40, %v171
    %v174 = vunpack.c.l.s4 1983009808
    %v175 = vunpack.c.0.s8 %v174
    %v176 = vlaneseq
    %v177 = vshrl.u32 %v176, 7
    %v178 = vsub.s32 %v175, %v177
    %v179 = vrot.slane %v165, %v178
    %v180 = vcombine.high %v172, %v172
    %v181 = vcombine.low %v60, %v68
    %v182 = vcombine.low %v67, %v76
    %v184 = vunpack.c.l.s4 1983009808
    %v185 = vunpack.c.0.s8 %v184
    %v186 = vlaneseq
    %v187 = vshrl.u32 %v186, 7
    %v188 = vsub.s32 %v185, %v187
    %v189 = vrot.slane %v181, %v188
    %v191 = vunpack.c.l.s4 1983009808
    %v192 = vunpack.c.0.s8 %v191
    %v193 = vlaneseq
    %v194 = vshrl.u32 %v193, 7
    %v195 = vsub.s32 %v192, %v194
    %v196 = vrot.slane %v182, %v195
    %v197 = vcombine.low %v189, %v196
    %v198 = vcombine.low %v84, %v83
    %v199 = vcombine.low %v92, %v100
    %v201 = vunpack.c.l.s4 1983009808
    %v202 = vunpack.c.0.s8 %v201
    %v203 = vlaneseq
    %v204 = vshrl.u32 %v203, 7
    %v205 = vsub.s32 %v202, %v204
    %v206 = vrot.slane %v198, %v205
    %v208 = vunpack.c.l.s4 1983009808
    %v209 = vunpack.c.0.s8 %v208
    %v210 = vlaneseq
    %v211 = vshrl.u32 %v210, 7
    %v212 = vsub.s32 %v209, %v211
    %v213 = vrot.slane %v199, %v212
    %v214 = vcombine.low %v206, %v213
    %v215 = vcombine.low %v99, %v108
    %v216 = vcombine.low %v116, %v115
    %v218 = vunpack.c.l.s4 1983009808
    %v219 = vunpack.c.0.s8 %v218
    %v220 = vlaneseq
    %v221 = vshrl.u32 %v220, 7
    %v222 = vsub.s32 %v219, %v221
    %v223 = vrot.slane %v215, %v222
    %v225 = vunpack.c.l.s4 1983009808
    %v226 = vunpack.c.0.s8 %v225
    %v227 = vlaneseq
    %v228 = vshrl.u32 %v227, 7
    %v229 = vsub.s32 %v226, %v228
    %v230 = vrot.slane %v216, %v229
    %v231 = vcombine.low %v223, %v230
    %v232 = vcombine.low %v124, %v132
    %v233 = vcombine.low %v131, %v140
    %v235 = vunpack.c.l.s4 1983009808
    %v236 = vunpack.c.0.s8 %v235
    %v237 = vlaneseq
    %v238 = vshrl.u32 %v237, 7
    %v239 = vsub.s32 %v236, %v238
    %v240 = vrot.slane %v232, %v239
    %v242 = vunpack.c.l.s4 1983009808
    %v243 = vunpack.c.0.s8 %v242
    %v244 = vlaneseq
    %v245 = vshrl.u32 %v244, 7
    %v246 = vsub.s32 %v243, %v245
    %v247 = vrot.slane %v233, %v246
    %v248 = vcombine.low %v240, %v247
    %v249 = vcombine.low %v148, %v147
    %v250 = vcombine.low %v156, %v164
    %v252 = vunpack.c.l.s4 1983009808
    %v253 = vunpack.c.0.s8 %v252
    %v254 = vlaneseq
    %v255 = vshrl.u32 %v254, 7
    %v256 = vsub.s32 %v253, %v255
    %v257 = vrot.slane %v249, %v256
    %v259 = vunpack.c.l.s4 1983009808
    %v260 = vunpack.c.0.s8 %v259
    %v261 = vlaneseq
    %v262 = vshrl.u32 %v261, 7
    %v263 = vsub.s32 %v260, %v262
    %v264 = vrot.slane %v250, %v263
    %v265 = vcombine.low %v257, %v264
    %v266 = vcombine.low %v163, %v172
    %v267 = vcombine.low %v180, %v179
    %v269 = vunpack.c.l.s4 1983009808
    %v270 = vunpack.c.0.s8 %v269
    %v271 = vlaneseq
    %v272 = vshrl.u32 %v271, 7
    %v273 = vsub.s32 %v270, %v272
    %v274 = vrot.slane %v266, %v273
    %v276 = vunpack.c.l.s4 1983009808
    %v277 = vunpack.c.0.s8 %v276
    %v278 = vlaneseq
    %v279 = vshrl.u32 %v278, 7
    %v280 = vsub.s32 %v277, %v279
    %v281 = vrot.slane %v267, %v280
    %v282 = vcombine.low %v274, %v281
    %vm283 = vcmask 64512
    %v284 = vsel %vm283, %v197, 0
    %v286 = vsel %vm283, %v214, 0
    %v288 = vsel %vm283, %v231, 0
    %v290 = vsel %vm283, %v248, 0
    %v292 = vsel %vm283, %v265, 0
    %v294 = vsel %vm283, %v282, 0
    %296 = vmatprep.subr.mxu0 0.0
    %297 = vmatpush1.msra.mxu0 0.0
    %298 = vmatprep.subr.mxu0 0.0
    %299 = vmatpush1.msra.mxu0 0.0
    %300 = vmatprep.subr.mxu0 0.0
    %301 = vmatpush1.msra.mxu0 0.0
    %302 = vmatprep.subr.mxu0 0.0
    %303 = vmatpush1.msra.mxu0 0.0
    %304 = vmatprep.subr.mxu0 0.0
    %305 = vmatpush1.msra.mxu0 0.0
    %306 = vmatprep.subr.mxu0 0.0
    %307 = vmatpush1.msra.mxu0 0.0
    %308 = vmatprep.subr.mxu0 0.0
    %309 = vmatpush1.msra.mxu0 0.0
    %310 = vmatprep.subr.mxu0 0.0
    %311 = vmatpush1.msra.mxu0 0.0
    %312 = vmatprep.subr.mxu0 0.0
    %313 = vmatpush1.msra.mxu0 0.0
    %314 = vmatprep.subr.mxu0 0.0
    %315 = vmatpush1.msra.mxu0 0.0
    %316 = vmatprep.subr.mxu0 0.0
    %317 = vmatpush1.msra.mxu0 0.0
    %318 = vmatprep.subr.mxu0 0.0
    %319 = vmatpush1.msra.mxu0 0.0
    %320 = vmatprep.subr.mxu0 0.0
    %321 = vmatpush1.msra.mxu0 0.0
    %322 = vmatprep.subr.mxu0 0.0
    %323 = vmatpush1.msra.mxu0 0.0
    %324 = vmatprep.subr.mxu0 0.0
    %325 = vmatpush1.msra.mxu0 0.0
    %326 = vmatprep.subr.mxu0 0.0
    %327 = vmatpush1.msra.mxu0 %v42
    %328 = vmatprep.subr.mxu0 0.0
    %329 = vmatpush2.msra.mxu0 0.0
    %330 = vmatprep.subr.mxu0 0.0
    %331 = vmatpush2.msra.mxu0 0.0
    %332 = vmatprep.subr.mxu0 0.0
    %333 = vmatpush2.msra.mxu0 0.0
    %334 = vmatprep.subr.mxu0 0.0
    %335 = vmatpush2.msra.mxu0 0.0
    %336 = vmatprep.subr.mxu0 0.0
    %337 = vmatpush2.msra.mxu0 0.0
    %338 = vmatprep.subr.mxu0 0.0
    %339 = vmatpush2.msra.mxu0 0.0
    %340 = vmatprep.subr.mxu0 0.0
    %341 = vmatpush2.msra.mxu0 0.0
    %342 = vmatprep.subr.mxu0 0.0
    %343 = vmatpush2.msra.mxu0 0.0
    %344 = vmatprep.subr.mxu0 0.0
    %345 = vmatpush2.msra.mxu0 0.0
    %346 = vmatprep.subr.mxu0 0.0
    %347 = vmatpush2.msra.mxu0 0.0
    %348 = vmatprep.subr.mxu0 0.0
    %349 = vmatpush2.msra.mxu0 0.0
    %350 = vmatprep.subr.mxu0 0.0
    %351 = vmatpush2.msra.mxu0 0.0
    %352 = vmatprep.subr.mxu0 0.0
    %353 = vmatpush2.msra.mxu0 0.0
    %354 = vmatprep.subr.mxu0 0.0
    %355 = vmatpush2.msra.mxu0 0.0
    %356 = vmatprep.subr.mxu0 0.0
    %357 = vmatpush2.msra.mxu0 0.0
    %358 = vmatprep.subr.mxu0 0.0
    %359 = vmatpush2.msra.mxu0 0.0
    %360 = vmatprep.mubr.f32.mxu0 0.0
    %361 = vmatmul.mubr.f32.gmra.mxu0 %v284
    %v362 = vpop.f32.mrf.mxu0
    %v363 = vadd.f32 0.0, %v362
    %v364 = vpop.f32.mrf.mxu0
    %365 = vmatprep.mubr.f32.mxu0 0.0
    %366 = vmatmul.mubr.f32.gmra.mxu0 %v286
    %v367 = vpop.f32.mrf.mxu0
    %v368 = vadd.f32 0.0, %v367
    %v369 = vpop.f32.mrf.mxu0
    %370 = vmatprep.mubr.f32.mxu0 0.0
    %371 = vmatmul.mubr.f32.gmra.mxu0 %v288
    %v372 = vpop.f32.mrf.mxu0
    %v373 = vadd.f32 0.0, %v372
    %v374 = vpop.f32.mrf.mxu0
    %375 = vmatprep.mubr.f32.mxu0 0.0
    %376 = vmatmul.mubr.f32.gmra.mxu0 %v290
    %v377 = vpop.f32.mrf.mxu0
    %v378 = vadd.f32 0.0, %v377
    %v379 = vpop.f32.mrf.mxu0
    %380 = vmatprep.mubr.f32.mxu0 0.0
    %381 = vmatmul.mubr.f32.gmra.mxu0 %v292
    %v382 = vpop.f32.mrf.mxu0
    %v383 = vadd.f32 0.0, %v382
    %v384 = vpop.f32.mrf.mxu0
    %385 = vmatprep.mubr.f32.mxu0 0.0
    %386 = vmatmul.mubr.f32.gmra.mxu0 %v294
    %v387 = vpop.f32.mrf.mxu0
    %v388 = vadd.f32 0.0, %v387
    %v389 = vpop.f32.mrf.mxu0
    %390 = vdwg.mxu0
    %v397 = vcombine.high %v363, %v363
    %v399 = vunpack.c.l.s4 1983009808
    %v400 = vunpack.c.0.s8 %v399
    %v401 = vlaneseq
    %v402 = vshrl.u32 %v401, 7
    %v403 = vsub.s32 %v400, %v402
    %v404 = vrot.slane %v363, %v403
    %v406 = vunpack.c.l.s4 1983009808
    %v407 = vunpack.c.0.s8 %v406
    %v408 = vlaneseq
    %v409 = vshrl.u32 %v408, 7
    %v410 = vsub.s32 %v407, %v409
    %v411 = vrot.slane %v397, %v410
    %v412 = vcombine.high %v404, %v404
    %v413 = vcombine.high %v411, %v411
    %v414 = vcombine.high %v368, %v368
    %v416 = vunpack.c.l.s4 1983009808
    %v417 = vunpack.c.0.s8 %v416
    %v418 = vlaneseq
    %v419 = vshrl.u32 %v418, 7
    %v420 = vsub.s32 %v417, %v419
    %v421 = vrot.slane %v368, %v420
    %v423 = vunpack.c.l.s4 1983009808
    %v424 = vunpack.c.0.s8 %v423
    %v425 = vlaneseq
    %v426 = vshrl.u32 %v425, 7
    %v427 = vsub.s32 %v424, %v426
    %v428 = vrot.slane %v414, %v427
    %v429 = vcombine.high %v421, %v421
    %v430 = vcombine.high %v428, %v428
    %v431 = vcombine.high %v373, %v373
    %v433 = vunpack.c.l.s4 1983009808
    %v434 = vunpack.c.0.s8 %v433
    %v435 = vlaneseq
    %v436 = vshrl.u32 %v435, 7
    %v437 = vsub.s32 %v434, %v436
    %v438 = vrot.slane %v373, %v437
    %v440 = vunpack.c.l.s4 1983009808
    %v441 = vunpack.c.0.s8 %v440
    %v442 = vlaneseq
    %v443 = vshrl.u32 %v442, 7
    %v444 = vsub.s32 %v441, %v443
    %v445 = vrot.slane %v431, %v444
    %v446 = vcombine.high %v438, %v438
    %v447 = vcombine.high %v445, %v445
    %v448 = vcombine.high %v378, %v378
    %v450 = vunpack.c.l.s4 1983009808
    %v451 = vunpack.c.0.s8 %v450
    %v452 = vlaneseq
    %v453 = vshrl.u32 %v452, 7
    %v454 = vsub.s32 %v451, %v453
    %v455 = vrot.slane %v378, %v454
    %v457 = vunpack.c.l.s4 1983009808
    %v458 = vunpack.c.0.s8 %v457
    %v459 = vlaneseq
    %v460 = vshrl.u32 %v459, 7
    %v461 = vsub.s32 %v458, %v460
    %v462 = vrot.slane %v448, %v461
    %v463 = vcombine.high %v455, %v455
    %v464 = vcombine.high %v462, %v462
    %v465 = vcombine.high %v383, %v383
    %v467 = vunpack.c.l.s4 1983009808
    %v468 = vunpack.c.0.s8 %v467
    %v469 = vlaneseq
    %v470 = vshrl.u32 %v469, 7
    %v471 = vsub.s32 %v468, %v470
    %v472 = vrot.slane %v383, %v471
    %v474 = vunpack.c.l.s4 1983009808
    %v475 = vunpack.c.0.s8 %v474
    %v476 = vlaneseq
    %v477 = vshrl.u32 %v476, 7
    %v478 = vsub.s32 %v475, %v477
    %v479 = vrot.slane %v465, %v478
    %v480 = vcombine.high %v472, %v472
    %v481 = vcombine.high %v479, %v479
    %v482 = vcombine.high %v388, %v388
    %v484 = vunpack.c.l.s4 1983009808
    %v485 = vunpack.c.0.s8 %v484
    %v486 = vlaneseq
    %v487 = vshrl.u32 %v486, 7
    %v488 = vsub.s32 %v485, %v487
    %v489 = vrot.slane %v388, %v488
    %v491 = vunpack.c.l.s4 1983009808
    %v492 = vunpack.c.0.s8 %v491
    %v493 = vlaneseq
    %v494 = vshrl.u32 %v493, 7
    %v495 = vsub.s32 %v492, %v494
    %v496 = vrot.slane %v482, %v495
    %v497 = vcombine.high %v489, %v489
    %v498 = vcombine.high %v496, %v496
    %v524 = vlaneseq
    %v525 = vshrl.u32 %v524, 7
    %v526 = vsub.s32 0, %v525
    %v527 = vrot.slane %v44, %v526
    %v528 = vcombine.high %v527, %v527
    %v530 = vunpack.c.l.s4 1983009808
    %v531 = vunpack.c.0.s8 %v530
    %v532 = vlaneseq
    %v533 = vshrl.u32 %v532, 7
    %v534 = vsub.s32 %v531, %v533
    %v535 = vrot.slane %v527, %v534
    %v537 = vunpack.c.l.s4 1983009808
    %v538 = vunpack.c.0.s8 %v537
    %v539 = vlaneseq
    %v540 = vshrl.u32 %v539, 7
    %v541 = vsub.s32 %v538, %v540
    %v542 = vrot.slane %v528, %v541
    %v543 = vcombine.high %v535, %v535
    %v547 = vadd.f32 %v404, %v535
    %v548 = vadd.f32 %v412, %v543
    %v549 = vadd.f32 %v411, %v542
    %v550 = vadd.f32 %v413, %v535
    %v551 = vadd.f32 %v421, %v543
    %v552 = vadd.f32 %v429, %v542
    %v553 = vadd.f32 %v428, %v535
    %v554 = vadd.f32 %v430, %v543
    %v555 = vadd.f32 %v438, %v542
    %v556 = vadd.f32 %v446, %v535
    %v557 = vadd.f32 %v445, %v543
    %v558 = vadd.f32 %v447, %v542
    %v559 = vadd.f32 %v455, %v535
    %v560 = vadd.f32 %v463, %v543
    %v561 = vadd.f32 %v462, %v542
    %v562 = vadd.f32 %v464, %v535
    %v563 = vadd.f32 %v472, %v543
    %v564 = vadd.f32 %v480, %v542
    %v565 = vadd.f32 %v479, %v535
    %v566 = vadd.f32 %v481, %v543
    %v567 = vadd.f32 %v489, %v542
    %v568 = vadd.f32 %v497, %v535
    %v569 = vadd.f32 %v496, %v543
    %v570 = vadd.f32 %v498, %v542
    %vm571 = vcmp.gt.s32.totalorder %v41, 0
    %v572 = vsel %vm571, 1, 0
    %v573 = vcvt.s32.f32 %v572
    %v575 = vsel %vm283, 0.0, 0
    %577 = vmatprep.subr.mxu0 0.0
    %578 = vmatpush1.msra.mxu0 0.0
    %579 = vmatprep.subr.mxu0 0.0
    %580 = vmatpush1.msra.mxu0 0.0
    %581 = vmatprep.subr.mxu0 0.0
    %582 = vmatpush1.msra.mxu0 0.0
    %583 = vmatprep.subr.mxu0 0.0
    %584 = vmatpush1.msra.mxu0 0.0
    %585 = vmatprep.subr.mxu0 0.0
    %586 = vmatpush1.msra.mxu0 0.0
    %587 = vmatprep.subr.mxu0 0.0
    %588 = vmatpush1.msra.mxu0 0.0
    %589 = vmatprep.subr.mxu0 0.0
    %590 = vmatpush1.msra.mxu0 0.0
    %591 = vmatprep.subr.mxu0 0.0
    %592 = vmatpush1.msra.mxu0 0.0
    %593 = vmatprep.subr.mxu0 0.0
    %594 = vmatpush1.msra.mxu0 0.0
    %595 = vmatprep.subr.mxu0 0.0
    %596 = vmatpush1.msra.mxu0 0.0
    %597 = vmatprep.subr.mxu0 0.0
    %598 = vmatpush1.msra.mxu0 0.0
    %599 = vmatprep.subr.mxu0 0.0
    %600 = vmatpush1.msra.mxu0 0.0
    %601 = vmatprep.subr.mxu0 0.0
    %602 = vmatpush1.msra.mxu0 0.0
    %603 = vmatprep.subr.mxu0 0.0
    %604 = vmatpush1.msra.mxu0 0.0
    %605 = vmatprep.subr.mxu0 0.0
    %606 = vmatpush1.msra.mxu0 0.0
    %607 = vmatprep.subr.mxu0 0.0
    %608 = vmatpush1.msra.mxu0 %v43
    %609 = vmatprep.subr.mxu0 0.0
    %610 = vmatpush2.msra.mxu0 0.0
    %611 = vmatprep.subr.mxu0 0.0
    %612 = vmatpush2.msra.mxu0 0.0
    %613 = vmatprep.subr.mxu0 0.0
    %614 = vmatpush2.msra.mxu0 0.0
    %615 = vmatprep.subr.mxu0 0.0
    %616 = vmatpush2.msra.mxu0 0.0
    %617 = vmatprep.subr.mxu0 0.0
    %618 = vmatpush2.msra.mxu0 0.0
    %619 = vmatprep.subr.mxu0 0.0
    %620 = vmatpush2.msra.mxu0 0.0
    %621 = vmatprep.subr.mxu0 0.0
    %622 = vmatpush2.msra.mxu0 0.0
    %623 = vmatprep.subr.mxu0 0.0
    %624 = vmatpush2.msra.mxu0 0.0
    %625 = vmatprep.subr.mxu0 0.0
    %626 = vmatpush2.msra.mxu0 0.0
    %627 = vmatprep.subr.mxu0 0.0
    %628 = vmatpush2.msra.mxu0 0.0
    %629 = vmatprep.subr.mxu0 0.0
    %630 = vmatpush2.msra.mxu0 0.0
    %631 = vmatprep.subr.mxu0 0.0
    %632 = vmatpush2.msra.mxu0 0.0
    %633 = vmatprep.subr.mxu0 0.0
    %634 = vmatpush2.msra.mxu0 0.0
    %635 = vmatprep.subr.mxu0 0.0
    %636 = vmatpush2.msra.mxu0 0.0
    %637 = vmatprep.subr.mxu0 0.0
    %638 = vmatpush2.msra.mxu0 0.0
    %639 = vmatprep.subr.mxu0 0.0
    %640 = vmatpush2.msra.mxu0 0.0
    %641 = vmatprep.mubr.f32.mxu0 0.0
    %642 = vmatmul.mubr.f32.gmra.mxu0 %v575
    %v643 = vpop.f32.mrf.mxu0
    %v644 = vadd.f32 0.0, %v643
    %v645 = vpop.f32.mrf.mxu0
    %646 = vdwg.mxu0
    %v648 = vcombine.high %v644, %v644
    %v650 = vunpack.c.l.s4 1983009808
    %v651 = vunpack.c.0.s8 %v650
    %v652 = vlaneseq
    %v653 = vshrl.u32 %v652, 7
    %v654 = vsub.s32 %v651, %v653
    %v655 = vrot.slane %v644, %v654
    %v657 = vunpack.c.l.s4 1983009808
    %v658 = vunpack.c.0.s8 %v657
    %v659 = vlaneseq
    %v660 = vshrl.u32 %v659, 7
    %v661 = vsub.s32 %v658, %v660
    %v662 = vrot.slane %v648, %v661
    %v663 = vcombine.high %v655, %v655
    %v664 = vcombine.high %v662, %v662
    %v665 = vrot.slane %v655, 1
    %v666 = vrot.slane %v663, 1
    %v667 = vrot.slane %v662, 1
    %v668 = vrot.slane %v664, 1
    %v677 = vadd.f32 %v547, %v655
    %v678 = vadd.f32 %v550, %v665
    %v679 = vadd.f32 %v553, %v663
    %v680 = vadd.f32 %v556, %v666
    %v681 = vadd.f32 %v559, %v662
    %v682 = vadd.f32 %v562, %v667
    %v683 = vadd.f32 %v565, %v664
    %v684 = vadd.f32 %v568, %v668
    %v685 = vxor.u32 %v677, 2147483648
    %v686 = vxor.u32 %v678, 2147483648
    %v687 = vxor.u32 %v679, 2147483648
    %v688 = vxor.u32 %v680, 2147483648
    %v689 = vxor.u32 %v681, 2147483648
    %v690 = vxor.u32 %v682, 2147483648
    %v691 = vxor.u32 %v683, 2147483648
    %v692 = vxor.u32 %v684, 2147483648
    %v693 = vmul.f32 %v685, 1.442695
    %v694 = vpow.pop %v693
    %v695 = vmul.f32 %v686, 1.442695
    %v696 = vpow.pop %v695
    %v697 = vmul.f32 %v687, 1.442695
    %v698 = vpow.pop %v697
    %v699 = vmul.f32 %v688, 1.442695
    %v700 = vpow.pop %v699
    %v701 = vmul.f32 %v689, 1.442695
    %v702 = vpow.pop %v701
    %v703 = vmul.f32 %v690, 1.442695
    %v704 = vpow.pop %v703
    %v705 = vmul.f32 %v691, 1.442695
    %v706 = vpow.pop %v705
    %v707 = vmul.f32 %v692, 1.442695
    %v708 = vpow.pop %v707
    %v709 = vadd.f32 %v694, 1.0
    %v710 = vadd.f32 %v696, 1.0
    %v711 = vadd.f32 %v698, 1.0
    %v712 = vadd.f32 %v700, 1.0
    %v713 = vadd.f32 %v702, 1.0
    %v714 = vadd.f32 %v704, 1.0
    %v715 = vadd.f32 %v706, 1.0
    %v716 = vadd.f32 %v708, 1.0
    %v717 = vrcp.pop %v709
    %v718 = vmul.f32 1.0, %v717
    %v719 = vrcp.pop %v710
    %v720 = vmul.f32 1.0, %v719
    %v721 = vrcp.pop %v711
    %v722 = vmul.f32 1.0, %v721
    %v723 = vrcp.pop %v712
    %v724 = vmul.f32 1.0, %v723
    %v725 = vrcp.pop %v713
    %v726 = vmul.f32 1.0, %v725
    %v727 = vrcp.pop %v714
    %v728 = vmul.f32 1.0, %v727
    %v729 = vrcp.pop %v715
    %v730 = vmul.f32 1.0, %v729
    %v731 = vrcp.pop %v716
    %v732 = vmul.f32 1.0, %v731
    %v733 = vtanh.pop %v677
    %v734 = vtanh.pop %v678
    %v735 = vtanh.pop %v679
    %v736 = vtanh.pop %v680
    %v737 = vtanh.pop %v681
    %v738 = vtanh.pop %v682
    %v739 = vtanh.pop %v683
    %v740 = vtanh.pop %v684
    %v741 = vmul.f32 %v718, 0.0
    %v742 = vmul.f32 %v720, 0.0
    %v743 = vmul.f32 %v722, 0.0
    %v744 = vmul.f32 %v724, 0.0
    %v745 = vmul.f32 %v726, 0.0
    %v746 = vmul.f32 %v728, 0.0
    %v747 = vmul.f32 %v730, 0.0
    %v748 = vmul.f32 %v732, 0.0
    %757 = vrot.lane.b32.xlu0 %v733, 104
    %v758 = vpop.permute.xlu0 %757
    %759 = vrot.lane.b32.xlu0 %v734, 104
    %v760 = vpop.permute.xlu0 %759
    %761 = vrot.lane.b32.xlu0 %v735, 104
    %v762 = vpop.permute.xlu0 %761
    %763 = vrot.lane.b32.xlu0 %v736, 104
    %v764 = vpop.permute.xlu0 %763
    %765 = vrot.lane.b32.xlu0 %v737, 104
    %v766 = vpop.permute.xlu0 %765
    %767 = vrot.lane.b32.xlu0 %v738, 104
    %v768 = vpop.permute.xlu0 %767
    %769 = vrot.lane.b32.xlu0 %v739, 104
    %v770 = vpop.permute.xlu0 %769
    %771 = vrot.lane.b32.xlu0 %v740, 104
    %v772 = vpop.permute.xlu0 %771
    %v781 = vmul.f32 %v718, %v758
    %v782 = vmul.f32 %v720, %v760
    %v783 = vmul.f32 %v722, %v762
    %v784 = vmul.f32 %v724, %v764
    %v785 = vmul.f32 %v726, %v766
    %v786 = vmul.f32 %v728, %v768
    %v787 = vmul.f32 %v730, %v770
    %v788 = vmul.f32 %v732, %v772
    %797 = vrot.lane.b32.xlu0 %v781, 8
    %v798 = vpop.permute.xlu0 %797
    %799 = vrot.lane.b32.xlu0 %v782, 8
    %v800 = vpop.permute.xlu0 %799
    %801 = vrot.lane.b32.xlu0 %v783, 8
    %v802 = vpop.permute.xlu0 %801
    %803 = vrot.lane.b32.xlu0 %v784, 8
    %v804 = vpop.permute.xlu0 %803
    %805 = vrot.lane.b32.xlu0 %v785, 8
    %v806 = vpop.permute.xlu0 %805
    %807 = vrot.lane.b32.xlu0 %v786, 8
    %v808 = vpop.permute.xlu0 %807
    %809 = vrot.lane.b32.xlu0 %v787, 8
    %v810 = vpop.permute.xlu0 %809
    %811 = vrot.lane.b32.xlu0 %v788, 8
    %v812 = vpop.permute.xlu0 %811
    %v821 = vadd.f32 %v741, %v798
    %v822 = vadd.f32 %v742, %v800
    %v823 = vadd.f32 %v743, %v802
    %v824 = vadd.f32 %v744, %v804
    %v825 = vadd.f32 %v745, %v806
    %v826 = vadd.f32 %v746, %v808
    %v827 = vadd.f32 %v747, %v810
    %v828 = vadd.f32 %v748, %v812
    %v829 = vtanh.pop %v821
    %v830 = vtanh.pop %v822
    %v831 = vtanh.pop %v823
    %v832 = vtanh.pop %v824
    %v833 = vtanh.pop %v825
    %v834 = vtanh.pop %v826
    %v835 = vtanh.pop %v827
    %v836 = vtanh.pop %v828
    %845 = vrot.lane.b32.xlu0 %v829, 8
    %v846 = vpop.permute.xlu0 %845
    %847 = vrot.lane.b32.xlu0 %v830, 8
    %v848 = vpop.permute.xlu0 %847
    %849 = vrot.lane.b32.xlu0 %v831, 8
    %v850 = vpop.permute.xlu0 %849
    %851 = vrot.lane.b32.xlu0 %v832, 8
    %v852 = vpop.permute.xlu0 %851
    %853 = vrot.lane.b32.xlu0 %v833, 8
    %v854 = vpop.permute.xlu0 %853
    %855 = vrot.lane.b32.xlu0 %v834, 8
    %v856 = vpop.permute.xlu0 %855
    %857 = vrot.lane.b32.xlu0 %v835, 8
    %v858 = vpop.permute.xlu0 %857
    %859 = vrot.lane.b32.xlu0 %v836, 8
    %v860 = vpop.permute.xlu0 %859
    %v869 = vmul.f32 %v718, %v846
    %v870 = vmul.f32 %v720, %v848
    %v871 = vmul.f32 %v722, %v850
    %v872 = vmul.f32 %v724, %v852
    %v873 = vmul.f32 %v726, %v854
    %v874 = vmul.f32 %v728, %v856
    %v875 = vmul.f32 %v730, %v858
    %v876 = vmul.f32 %v732, %v860
    %878 = vset.pattern.permute.xlu0 0
    %879 = vperm.xlu0 %878, %v573
    %v880 = vpop.permute.xlu0 %879
    %v890 = vlaneseq
    %v891 = vshrl.u32 %v890, 7
    %v892 = vsub.s32 0, %v891
    %v893 = vrot.slane %v869, %v892
    %v894 = vlaneseq
    %v895 = vshrl.u32 %v894, 7
    %v896 = vsub.s32 0, %v895
    %v897 = vrot.slane %v870, %v896
    %v898 = vlaneseq
    %v899 = vshrl.u32 %v898, 7
    %v900 = vsub.s32 0, %v899
    %v901 = vrot.slane %v871, %v900
    %v902 = vlaneseq
    %v903 = vshrl.u32 %v902, 7
    %v904 = vsub.s32 0, %v903
    %v905 = vrot.slane %v872, %v904
    %v906 = vlaneseq
    %v907 = vshrl.u32 %v906, 7
    %v908 = vsub.s32 0, %v907
    %v909 = vrot.slane %v873, %v908
    %v910 = vlaneseq
    %v911 = vshrl.u32 %v910, 7
    %v912 = vsub.s32 0, %v911
    %v913 = vrot.slane %v874, %v912
    %v914 = vlaneseq
    %v915 = vshrl.u32 %v914, 7
    %v916 = vsub.s32 0, %v915
    %v917 = vrot.slane %v875, %v916
    %v918 = vlaneseq
    %v919 = vshrl.u32 %v918, 7
    %v920 = vsub.s32 0, %v919
    %v921 = vrot.slane %v876, %v920
    %vm922 = vcmask 1041409
    %v923 = vsel %vm922, %v897, %v893
    %vm924 = vcmask 1042434
    %v925 = vsel %vm924, %v901, %v923
    %vm926 = vcmask 1043459
    %v927 = vsel %vm926, %v905, %v925
    %vm928 = vcmask 1044484
    %v929 = vsel %vm928, %v909, %v927
    %vm930 = vcmask 1045509
    %v931 = vsel %vm930, %v913, %v929
    %vm932 = vcmask 1046534
    %v933 = vsel %vm932, %v917, %v931
    %vm934 = vcmask 1047559
    %v935 = vsel %vm934, %v921, %v933
    %936 = vrot.lane.b32.xlu0 %v935, 112
    %v937 = vpop.permute.xlu0 %936
    %v939 = vmul.f32 %v880, %v937
    %v940 = vsub.f32 1.0, %v573
    %942 = vset.pattern.permute.xlu0 0
    %943 = vperm.xlu0 %942, %v940
    %v944 = vpop.permute.xlu0 %943
    %v946 = vmul.f32 %v944, 0.0
    %v947 = vadd.f32 %v939, %v946
    %v956 = vlaneseq
    %v957 = vshrl.u32 %v956, 7
    %v958 = vsub.s32 0, %v957
    %v959 = vrot.slane %v821, %v958
    %v960 = vlaneseq
    %v961 = vshrl.u32 %v960, 7
    %v962 = vsub.s32 0, %v961
    %v963 = vrot.slane %v822, %v962
    %v964 = vlaneseq
    %v965 = vshrl.u32 %v964, 7
    %v966 = vsub.s32 0, %v965
    %v967 = vrot.slane %v823, %v966
    %v968 = vlaneseq
    %v969 = vshrl.u32 %v968, 7
    %v970 = vsub.s32 0, %v969
    %v971 = vrot.slane %v824, %v970
    %v972 = vlaneseq
    %v973 = vshrl.u32 %v972, 7
    %v974 = vsub.s32 0, %v973
    %v975 = vrot.slane %v825, %v974
    %v976 = vlaneseq
    %v977 = vshrl.u32 %v976, 7
    %v978 = vsub.s32 0, %v977
    %v979 = vrot.slane %v826, %v978
    %v980 = vlaneseq
    %v981 = vshrl.u32 %v980, 7
    %v982 = vsub.s32 0, %v981
    %v983 = vrot.slane %v827, %v982
    %v984 = vlaneseq
    %v985 = vshrl.u32 %v984, 7
    %v986 = vsub.s32 0, %v985
    %v987 = vrot.slane %v828, %v986
    %v988 = vsel %vm922, %v963, %v959
    %v989 = vsel %vm924, %v967, %v988
    %v990 = vsel %vm926, %v971, %v989
    %v991 = vsel %vm928, %v975, %v990
    %v992 = vsel %vm930, %v979, %v991
    %v993 = vsel %vm932, %v983, %v992
    %v994 = vsel %vm934, %v987, %v993
    %995 = vrot.lane.b32.xlu0 %v994, 120
    %v996 = vpop.permute.xlu0 %995
    %v998 = vmul.f32 %v880, %v996
    %v999 = vadd.f32 %v998, %v946
    %vm1000 = vcmp.gt.s32.totalorder %v41, 1
    %v1001 = vsel %vm1000, 1, 0
    %v1002 = vcvt.s32.f32 %v1001
    %v1004 = vsel %vm283, %v947, 0
    %1006 = vmatprep.subr.mxu0 0.0
    %1007 = vmatpush1.msra.mxu0 0.0
    %1008 = vmatprep.subr.mxu0 0.0
    %1009 = vmatpush1.msra.mxu0 0.0
    %1010 = vmatprep.subr.mxu0 0.0
    %1011 = vmatpush1.msra.mxu0 0.0
    %1012 = vmatprep.subr.mxu0 0.0
    %1013 = vmatpush1.msra.mxu0 0.0
    %1014 = vmatprep.subr.mxu0 0.0
    %1015 = vmatpush1.msra.mxu0 0.0
    %1016 = vmatprep.subr.mxu0 0.0
    %1017 = vmatpush1.msra.mxu0 0.0
    %1018 = vmatprep.subr.mxu0 0.0
    %1019 = vmatpush1.msra.mxu0 0.0
    %1020 = vmatprep.subr.mxu0 0.0
    %1021 = vmatpush1.msra.mxu0 0.0
    %1022 = vmatprep.subr.mxu0 0.0
    %1023 = vmatpush1.msra.mxu0 0.0
    %1024 = vmatprep.subr.mxu0 0.0
    %1025 = vmatpush1.msra.mxu0 0.0
    %1026 = vmatprep.subr.mxu0 0.0
    %1027 = vmatpush1.msra.mxu0 0.0
    %1028 = vmatprep.subr.mxu0 0.0
    %1029 = vmatpush1.msra.mxu0 0.0
    %1030 = vmatprep.subr.mxu0 0.0
    %1031 = vmatpush1.msra.mxu0 0.0
    %1032 = vmatprep.subr.mxu0 0.0
    %1033 = vmatpush1.msra.mxu0 0.0
    %1034 = vmatprep.subr.mxu0 0.0
    %1035 = vmatpush1.msra.mxu0 0.0
    %1036 = vmatprep.subr.mxu0 0.0
    %1037 = vmatpush1.msra.mxu0 %v43
    %1038 = vmatprep.subr.mxu0 0.0
    %1039 = vmatpush2.msra.mxu0 0.0
    %1040 = vmatprep.subr.mxu0 0.0
    %1041 = vmatpush2.msra.mxu0 0.0
    %1042 = vmatprep.subr.mxu0 0.0
    %1043 = vmatpush2.msra.mxu0 0.0
    %1044 = vmatprep.subr.mxu0 0.0
    %1045 = vmatpush2.msra.mxu0 0.0
    %1046 = vmatprep.subr.mxu0 0.0
    %1047 = vmatpush2.msra.mxu0 0.0
    %1048 = vmatprep.subr.mxu0 0.0
    %1049 = vmatpush2.msra.mxu0 0.0
    %1050 = vmatprep.subr.mxu0 0.0
    %1051 = vmatpush2.msra.mxu0 0.0
    %1052 = vmatprep.subr.mxu0 0.0
    %1053 = vmatpush2.msra.mxu0 0.0
    %1054 = vmatprep.subr.mxu0 0.0
    %1055 = vmatpush2.msra.mxu0 0.0
    %1056 = vmatprep.subr.mxu0 0.0
    %1057 = vmatpush2.msra.mxu0 0.0
    %1058 = vmatprep.subr.mxu0 0.0
    %1059 = vmatpush2.msra.mxu0 0.0
    %1060 = vmatprep.subr.mxu0 0.0
    %1061 = vmatpush2.msra.mxu0 0.0
    %1062 = vmatprep.subr.mxu0 0.0
    %1063 = vmatpush2.msra.mxu0 0.0
    %1064 = vmatprep.subr.mxu0 0.0
    %1065 = vmatpush2.msra.mxu0 0.0
    %1066 = vmatprep.subr.mxu0 0.0
    %1067 = vmatpush2.msra.mxu0 0.0
    %1068 = vmatprep.subr.mxu0 0.0
    %1069 = vmatpush2.msra.mxu0 0.0
    %1070 = vmatprep.mubr.f32.mxu0 0.0
    %1071 = vmatmul.mubr.f32.gmra.mxu0 %v1004
    %v1072 = vpop.f32.mrf.mxu0
    %v1073 = vadd.f32 0.0, %v1072
    %v1074 = vpop.f32.mrf.mxu0
    %1075 = vdwg.mxu0
    %v1077 = vcombine.high %v1073, %v1073
    %v1079 = vunpack.c.l.s4 1983009808
    %v1080 = vunpack.c.0.s8 %v1079
    %v1081 = vlaneseq
    %v1082 = vshrl.u32 %v1081, 7
    %v1083 = vsub.s32 %v1080, %v1082
    %v1084 = vrot.slane %v1073, %v1083
    %v1086 = vunpack.c.l.s4 1983009808
    %v1087 = vunpack.c.0.s8 %v1086
    %v1088 = vlaneseq
    %v1089 = vshrl.u32 %v1088, 7
    %v1090 = vsub.s32 %v1087, %v1089
    %v1091 = vrot.slane %v1077, %v1090
    %v1092 = vcombine.high %v1084, %v1084
    %v1093 = vcombine.high %v1091, %v1091
    %v1094 = vrot.slane %v1084, 7
    %v1095 = vrot.slane %v1092, 7
    %v1096 = vrot.slane %v1091, 7
    %v1097 = vrot.slane %v1093, 7
    %v1106 = vadd.f32 %v547, %v1094
    %v1107 = vadd.f32 %v550, %v1084
    %v1108 = vadd.f32 %v553, %v1095
    %v1109 = vadd.f32 %v556, %v1092
    %v1110 = vadd.f32 %v559, %v1096
    %v1111 = vadd.f32 %v562, %v1091
    %v1112 = vadd.f32 %v565, %v1097
    %v1113 = vadd.f32 %v568, %v1093
    %v1114 = vxor.u32 %v1106, 2147483648
    %v1115 = vxor.u32 %v1107, 2147483648
    %v1116 = vxor.u32 %v1108, 2147483648
    %v1117 = vxor.u32 %v1109, 2147483648
    %v1118 = vxor.u32 %v1110, 2147483648
    %v1119 = vxor.u32 %v1111, 2147483648
    %v1120 = vxor.u32 %v1112, 2147483648
    %v1121 = vxor.u32 %v1113, 2147483648
    %v1122 = vmul.f32 %v1114, 1.442695
    %v1123 = vpow.pop %v1122
    %v1124 = vmul.f32 %v1115, 1.442695
    %v1125 = vpow.pop %v1124
    %v1126 = vmul.f32 %v1116, 1.442695
    %v1127 = vpow.pop %v1126
    %v1128 = vmul.f32 %v1117, 1.442695
    %v1129 = vpow.pop %v1128
    %v1130 = vmul.f32 %v1118, 1.442695
    %v1131 = vpow.pop %v1130
    %v1132 = vmul.f32 %v1119, 1.442695
    %v1133 = vpow.pop %v1132
    %v1134 = vmul.f32 %v1120, 1.442695
    %v1135 = vpow.pop %v1134
    %v1136 = vmul.f32 %v1121, 1.442695
    %v1137 = vpow.pop %v1136
    %v1138 = vadd.f32 %v1123, 1.0
    %v1139 = vadd.f32 %v1125, 1.0
    %v1140 = vadd.f32 %v1127, 1.0
    %v1141 = vadd.f32 %v1129, 1.0
    %v1142 = vadd.f32 %v1131, 1.0
    %v1143 = vadd.f32 %v1133, 1.0
    %v1144 = vadd.f32 %v1135, 1.0
    %v1145 = vadd.f32 %v1137, 1.0
    %v1146 = vrcp.pop %v1138
    %v1147 = vmul.f32 1.0, %v1146
    %v1148 = vrcp.pop %v1139
    %v1149 = vmul.f32 1.0, %v1148
    %v1150 = vrcp.pop %v1140
    %v1151 = vmul.f32 1.0, %v1150
    %v1152 = vrcp.pop %v1141
    %v1153 = vmul.f32 1.0, %v1152
    %v1154 = vrcp.pop %v1142
    %v1155 = vmul.f32 1.0, %v1154
    %v1156 = vrcp.pop %v1143
    %v1157 = vmul.f32 1.0, %v1156
    %v1158 = vrcp.pop %v1144
    %v1159 = vmul.f32 1.0, %v1158
    %v1160 = vrcp.pop %v1145
    %v1161 = vmul.f32 1.0, %v1160
    %v1162 = vtanh.pop %v1106
    %v1163 = vtanh.pop %v1107
    %v1164 = vtanh.pop %v1108
    %v1165 = vtanh.pop %v1109
    %v1166 = vtanh.pop %v1110
    %v1167 = vtanh.pop %v1111
    %v1168 = vtanh.pop %v1112
    %v1169 = vtanh.pop %v1113
    %v1171 = vcombine.high %v999, %v999
    %v1173 = vunpack.c.l.s4 1983009808
    %v1174 = vunpack.c.0.s8 %v1173
    %v1175 = vlaneseq
    %v1176 = vshrl.u32 %v1175, 7
    %v1177 = vsub.s32 %v1174, %v1176
    %v1178 = vrot.slane %v999, %v1177
    %v1180 = vunpack.c.l.s4 1983009808
    %v1181 = vunpack.c.0.s8 %v1180
    %v1182 = vlaneseq
    %v1183 = vshrl.u32 %v1182, 7
    %v1184 = vsub.s32 %v1181, %v1183
    %v1185 = vrot.slane %v1171, %v1184
    %v1186 = vcombine.high %v1178, %v1178
    %v1187 = vcombine.high %v1185, %v1185
    %v1188 = vrot.slane %v1178, 7
    %v1189 = vrot.slane %v1186, 7
    %v1190 = vrot.slane %v1185, 7
    %v1191 = vrot.slane %v1187, 7
    %1192 = vrot.lane.b32.xlu0 %v1188, 8
    %v1193 = vpop.permute.xlu0 %1192
    %1194 = vrot.lane.b32.xlu0 %v1178, 8
    %v1195 = vpop.permute.xlu0 %1194
    %1196 = vrot.lane.b32.xlu0 %v1189, 8
    %v1197 = vpop.permute.xlu0 %1196
    %1198 = vrot.lane.b32.xlu0 %v1186, 8
    %v1199 = vpop.permute.xlu0 %1198
    %1200 = vrot.lane.b32.xlu0 %v1190, 8
    %v1201 = vpop.permute.xlu0 %1200
    %1202 = vrot.lane.b32.xlu0 %v1185, 8
    %v1203 = vpop.permute.xlu0 %1202
    %1204 = vrot.lane.b32.xlu0 %v1191, 8
    %v1205 = vpop.permute.xlu0 %1204
    %1206 = vrot.lane.b32.xlu0 %v1187, 8
    %v1207 = vpop.permute.xlu0 %1206
    %v1216 = vmul.f32 %v1147, %v1193
    %v1217 = vmul.f32 %v1149, %v1195
    %v1218 = vmul.f32 %v1151, %v1197
    %v1219 = vmul.f32 %v1153, %v1199
    %v1220 = vmul.f32 %v1155, %v1201
    %v1221 = vmul.f32 %v1157, %v1203
    %v1222 = vmul.f32 %v1159, %v1205
    %v1223 = vmul.f32 %v1161, %v1207
    %1232 = vrot.lane.b32.xlu0 %v1162, 104
    %v1233 = vpop.permute.xlu0 %1232
    %1234 = vrot.lane.b32.xlu0 %v1163, 104
    %v1235 = vpop.permute.xlu0 %1234
    %1236 = vrot.lane.b32.xlu0 %v1164, 104
    %v1237 = vpop.permute.xlu0 %1236
    %1238 = vrot.lane.b32.xlu0 %v1165, 104
    %v1239 = vpop.permute.xlu0 %1238
    %1240 = vrot.lane.b32.xlu0 %v1166, 104
    %v1241 = vpop.permute.xlu0 %1240
    %1242 = vrot.lane.b32.xlu0 %v1167, 104
    %v1243 = vpop.permute.xlu0 %1242
    %1244 = vrot.lane.b32.xlu0 %v1168, 104
    %v1245 = vpop.permute.xlu0 %1244
    %1246 = vrot.lane.b32.xlu0 %v1169, 104
    %v1247 = vpop.permute.xlu0 %1246
    %v1256 = vmul.f32 %v1147, %v1233
    %v1257 = vmul.f32 %v1149, %v1235
    %v1258 = vmul.f32 %v1151, %v1237
    %v1259 = vmul.f32 %v1153, %v1239
    %v1260 = vmul.f32 %v1155, %v1241
    %v1261 = vmul.f32 %v1157, %v1243
    %v1262 = vmul.f32 %v1159, %v1245
    %v1263 = vmul.f32 %v1161, %v1247
    %1272 = vrot.lane.b32.xlu0 %v1256, 8
    %v1273 = vpop.permute.xlu0 %1272
    %1274 = vrot.lane.b32.xlu0 %v1257, 8
    %v1275 = vpop.permute.xlu0 %1274
    %1276 = vrot.lane.b32.xlu0 %v1258, 8
    %v1277 = vpop.permute.xlu0 %1276
    %1278 = vrot.lane.b32.xlu0 %v1259, 8
    %v1279 = vpop.permute.xlu0 %1278
    %1280 = vrot.lane.b32.xlu0 %v1260, 8
    %v1281 = vpop.permute.xlu0 %1280
    %1282 = vrot.lane.b32.xlu0 %v1261, 8
    %v1283 = vpop.permute.xlu0 %1282
    %1284 = vrot.lane.b32.xlu0 %v1262, 8
    %v1285 = vpop.permute.xlu0 %1284
    %1286 = vrot.lane.b32.xlu0 %v1263, 8
    %v1287 = vpop.permute.xlu0 %1286
    %v1296 = vadd.f32 %v1216, %v1273
    %v1297 = vadd.f32 %v1217, %v1275
    %v1298 = vadd.f32 %v1218, %v1277
    %v1299 = vadd.f32 %v1219, %v1279
    %v1300 = vadd.f32 %v1220, %v1281
    %v1301 = vadd.f32 %v1221, %v1283
    %v1302 = vadd.f32 %v1222, %v1285
    %v1303 = vadd.f32 %v1223, %v1287
    %v1304 = vtanh.pop %v1296
    %v1305 = vtanh.pop %v1297
    %v1306 = vtanh.pop %v1298
    %v1307 = vtanh.pop %v1299
    %v1308 = vtanh.pop %v1300
    %v1309 = vtanh.pop %v1301
    %v1310 = vtanh.pop %v1302
    %v1311 = vtanh.pop %v1303
    %1320 = vrot.lane.b32.xlu0 %v1304, 8
    %v1321 = vpop.permute.xlu0 %1320
    %1322 = vrot.lane.b32.xlu0 %v1305, 8
    %v1323 = vpop.permute.xlu0 %1322
    %1324 = vrot.lane.b32.xlu0 %v1306, 8
    %v1325 = vpop.permute.xlu0 %1324
    %1326 = vrot.lane.b32.xlu0 %v1307, 8
    %v1327 = vpop.permute.xlu0 %1326
    %1328 = vrot.lane.b32.xlu0 %v1308, 8
    %v1329 = vpop.permute.xlu0 %1328
    %1330 = vrot.lane.b32.xlu0 %v1309, 8
    %v1331 = vpop.permute.xlu0 %1330
    %1332 = vrot.lane.b32.xlu0 %v1310, 8
    %v1333 = vpop.permute.xlu0 %1332
    %1334 = vrot.lane.b32.xlu0 %v1311, 8
    %v1335 = vpop.permute.xlu0 %1334
    %v1344 = vmul.f32 %v1147, %v1321
    %v1345 = vmul.f32 %v1149, %v1323
    %v1346 = vmul.f32 %v1151, %v1325
    %v1347 = vmul.f32 %v1153, %v1327
    %v1348 = vmul.f32 %v1155, %v1329
    %v1349 = vmul.f32 %v1157, %v1331
    %v1350 = vmul.f32 %v1159, %v1333
    %v1351 = vmul.f32 %v1161, %v1335
    %1353 = vset.pattern.permute.xlu0 0
    %1354 = vperm.xlu0 %1353, %v1002
    %v1355 = vpop.permute.xlu0 %1354
    %v1365 = vlaneseq
    %v1366 = vshrl.u32 %v1365, 7
    %v1367 = vsub.s32 1, %v1366
    %v1368 = vrot.slane %v1344, %v1367
    %v1369 = vlaneseq
    %v1370 = vshrl.u32 %v1369, 7
    %v1371 = vsub.s32 1, %v1370
    %v1372 = vrot.slane %v1345, %v1371
    %v1373 = vlaneseq
    %v1374 = vshrl.u32 %v1373, 7
    %v1375 = vsub.s32 1, %v1374
    %v1376 = vrot.slane %v1346, %v1375
    %v1377 = vlaneseq
    %v1378 = vshrl.u32 %v1377, 7
    %v1379 = vsub.s32 1, %v1378
    %v1380 = vrot.slane %v1347, %v1379
    %v1381 = vlaneseq
    %v1382 = vshrl.u32 %v1381, 7
    %v1383 = vsub.s32 1, %v1382
    %v1384 = vrot.slane %v1348, %v1383
    %v1385 = vlaneseq
    %v1386 = vshrl.u32 %v1385, 7
    %v1387 = vsub.s32 1, %v1386
    %v1388 = vrot.slane %v1349, %v1387
    %v1389 = vlaneseq
    %v1390 = vshrl.u32 %v1389, 7
    %v1391 = vsub.s32 1, %v1390
    %v1392 = vrot.slane %v1350, %v1391
    %v1393 = vlaneseq
    %v1394 = vshrl.u32 %v1393, 7
    %v1395 = vsub.s32 1, %v1394
    %v1396 = vrot.slane %v1351, %v1395
    %v1397 = vsel %vm922, %v1372, %v1368
    %v1398 = vsel %vm924, %v1376, %v1397
    %v1399 = vsel %vm926, %v1380, %v1398
    %v1400 = vsel %vm928, %v1384, %v1399
    %v1401 = vsel %vm930, %v1388, %v1400
    %v1402 = vsel %vm932, %v1392, %v1401
    %v1403 = vsel %vm934, %v1396, %v1402
    %1404 = vrot.lane.b32.xlu0 %v1403, 112
    %v1405 = vpop.permute.xlu0 %1404
    %v1407 = vmul.f32 %v1355, %v1405
    %v1408 = vsub.f32 1.0, %v1002
    %1410 = vset.pattern.permute.xlu0 0
    %1411 = vperm.xlu0 %1410, %v1408
    %v1412 = vpop.permute.xlu0 %1411
    %v1414 = vmul.f32 %v1412, %v947
    %v1415 = vadd.f32 %v1407, %v1414
    %v1424 = vlaneseq
    %v1425 = vshrl.u32 %v1424, 7
    %v1426 = vsub.s32 1, %v1425
    %v1427 = vrot.slane %v1296, %v1426
    %v1428 = vlaneseq
    %v1429 = vshrl.u32 %v1428, 7
    %v1430 = vsub.s32 1, %v1429
    %v1431 = vrot.slane %v1297, %v1430
    %v1432 = vlaneseq
    %v1433 = vshrl.u32 %v1432, 7
    %v1434 = vsub.s32 1, %v1433
    %v1435 = vrot.slane %v1298, %v1434
    %v1436 = vlaneseq
    %v1437 = vshrl.u32 %v1436, 7
    %v1438 = vsub.s32 1, %v1437
    %v1439 = vrot.slane %v1299, %v1438
    %v1440 = vlaneseq
    %v1441 = vshrl.u32 %v1440, 7
    %v1442 = vsub.s32 1, %v1441
    %v1443 = vrot.slane %v1300, %v1442
    %v1444 = vlaneseq
    %v1445 = vshrl.u32 %v1444, 7
    %v1446 = vsub.s32 1, %v1445
    %v1447 = vrot.slane %v1301, %v1446
    %v1448 = vlaneseq
    %v1449 = vshrl.u32 %v1448, 7
    %v1450 = vsub.s32 1, %v1449
    %v1451 = vrot.slane %v1302, %v1450
    %v1452 = vlaneseq
    %v1453 = vshrl.u32 %v1452, 7
    %v1454 = vsub.s32 1, %v1453
    %v1455 = vrot.slane %v1303, %v1454
    %v1456 = vsel %vm922, %v1431, %v1427
    %v1457 = vsel %vm924, %v1435, %v1456
    %v1458 = vsel %vm926, %v1439, %v1457
    %v1459 = vsel %vm928, %v1443, %v1458
    %v1460 = vsel %vm930, %v1447, %v1459
    %v1461 = vsel %vm932, %v1451, %v1460
    %v1462 = vsel %vm934, %v1455, %v1461
    %1463 = vrot.lane.b32.xlu0 %v1462, 120
    %v1464 = vpop.permute.xlu0 %1463
    %v1466 = vmul.f32 %v1355, %v1464
    %v1467 = vmul.f32 %v1412, %v999
    %v1468 = vadd.f32 %v1466, %v1467
    %vm1469 = vcmp.gt.s32.totalorder %v41, 2
    %v1470 = vsel %vm1469, 1, 0
    %v1471 = vcvt.s32.f32 %v1470
    %v1473 = vsel %vm283, %v1415, 0
    %1475 = vmatprep.subr.mxu0 0.0
    %1476 = vmatpush1.msra.mxu0 0.0
    %1477 = vmatprep.subr.mxu0 0.0
    %1478 = vmatpush1.msra.mxu0 0.0
    %1479 = vmatprep.subr.mxu0 0.0
    %1480 = vmatpush1.msra.mxu0 0.0
    %1481 = vmatprep.subr.mxu0 0.0
    %1482 = vmatpush1.msra.mxu0 0.0
    %1483 = vmatprep.subr.mxu0 0.0
    %1484 = vmatpush1.msra.mxu0 0.0
    %1485 = vmatprep.subr.mxu0 0.0
    %1486 = vmatpush1.msra.mxu0 0.0
    %1487 = vmatprep.subr.mxu0 0.0
    %1488 = vmatpush1.msra.mxu0 0.0
    %1489 = vmatprep.subr.mxu0 0.0
    %1490 = vmatpush1.msra.mxu0 0.0
    %1491 = vmatprep.subr.mxu0 0.0
    %1492 = vmatpush1.msra.mxu0 0.0
    %1493 = vmatprep.subr.mxu0 0.0
    %1494 = vmatpush1.msra.mxu0 0.0
    %1495 = vmatprep.subr.mxu0 0.0
    %1496 = vmatpush1.msra.mxu0 0.0
    %1497 = vmatprep.subr.mxu0 0.0
    %1498 = vmatpush1.msra.mxu0 0.0
    %1499 = vmatprep.subr.mxu0 0.0
    %1500 = vmatpush1.msra.mxu0 0.0
    %1501 = vmatprep.subr.mxu0 0.0
    %1502 = vmatpush1.msra.mxu0 0.0
    %1503 = vmatprep.subr.mxu0 0.0
    %1504 = vmatpush1.msra.mxu0 0.0
    %1505 = vmatprep.subr.mxu0 0.0
    %1506 = vmatpush1.msra.mxu0 %v43
    %1507 = vmatprep.subr.mxu0 0.0
    %1508 = vmatpush2.msra.mxu0 0.0
    %1509 = vmatprep.subr.mxu0 0.0
    %1510 = vmatpush2.msra.mxu0 0.0
    %1511 = vmatprep.subr.mxu0 0.0
    %1512 = vmatpush2.msra.mxu0 0.0
    %1513 = vmatprep.subr.mxu0 0.0
    %1514 = vmatpush2.msra.mxu0 0.0
    %1515 = vmatprep.subr.mxu0 0.0
    %1516 = vmatpush2.msra.mxu0 0.0
    %1517 = vmatprep.subr.mxu0 0.0
    %1518 = vmatpush2.msra.mxu0 0.0
    %1519 = vmatprep.subr.mxu0 0.0
    %1520 = vmatpush2.msra.mxu0 0.0
    %1521 = vmatprep.subr.mxu0 0.0
    %1522 = vmatpush2.msra.mxu0 0.0
    %1523 = vmatprep.subr.mxu0 0.0
    %1524 = vmatpush2.msra.mxu0 0.0
    %1525 = vmatprep.subr.mxu0 0.0
    %1526 = vmatpush2.msra.mxu0 0.0
    %1527 = vmatprep.subr.mxu0 0.0
    %1528 = vmatpush2.msra.mxu0 0.0
    %1529 = vmatprep.subr.mxu0 0.0
    %1530 = vmatpush2.msra.mxu0 0.0
    %1531 = vmatprep.subr.mxu0 0.0
    %1532 = vmatpush2.msra.mxu0 0.0
    %1533 = vmatprep.subr.mxu0 0.0
    %1534 = vmatpush2.msra.mxu0 0.0
    %1535 = vmatprep.subr.mxu0 0.0
    %1536 = vmatpush2.msra.mxu0 0.0
    %1537 = vmatprep.subr.mxu0 0.0
    %1538 = vmatpush2.msra.mxu0 0.0
    %1539 = vmatprep.mubr.f32.mxu0 0.0
    %1540 = vmatmul.mubr.f32.gmra.mxu0 %v1473
    %v1541 = vpop.f32.mrf.mxu0
    %v1542 = vadd.f32 0.0, %v1541
    %v1543 = vpop.f32.mrf.mxu0
    %1544 = vdwg.mxu0
    %v1546 = vcombine.high %v1542, %v1542
    %v1548 = vunpack.c.l.s4 1983009808
    %v1549 = vunpack.c.0.s8 %v1548
    %v1550 = vlaneseq
    %v1551 = vshrl.u32 %v1550, 7
    %v1552 = vsub.s32 %v1549, %v1551
    %v1553 = vrot.slane %v1542, %v1552
    %v1555 = vunpack.c.l.s4 1983009808
    %v1556 = vunpack.c.0.s8 %v1555
    %v1557 = vlaneseq
    %v1558 = vshrl.u32 %v1557, 7
    %v1559 = vsub.s32 %v1556, %v1558
    %v1560 = vrot.slane %v1546, %v1559
    %v1561 = vcombine.high %v1553, %v1553
    %v1562 = vcombine.high %v1560, %v1560
    %v1563 = vrot.slane %v1553, 1
    %v1564 = vrot.slane %v1561, 1
    %v1565 = vrot.slane %v1560, 1
    %v1566 = vrot.slane %v1562, 1
    %v1575 = vadd.f32 %v548, %v1553
    %v1576 = vadd.f32 %v551, %v1563
    %v1577 = vadd.f32 %v554, %v1561
    %v1578 = vadd.f32 %v557, %v1564
    %v1579 = vadd.f32 %v560, %v1560
    %v1580 = vadd.f32 %v563, %v1565
    %v1581 = vadd.f32 %v566, %v1562
    %v1582 = vadd.f32 %v569, %v1566
    %v1583 = vxor.u32 %v1575, 2147483648
    %v1584 = vxor.u32 %v1576, 2147483648
    %v1585 = vxor.u32 %v1577, 2147483648
    %v1586 = vxor.u32 %v1578, 2147483648
    %v1587 = vxor.u32 %v1579, 2147483648
    %v1588 = vxor.u32 %v1580, 2147483648
    %v1589 = vxor.u32 %v1581, 2147483648
    %v1590 = vxor.u32 %v1582, 2147483648
    %v1591 = vmul.f32 %v1583, 1.442695
    %v1592 = vpow.pop %v1591
    %v1593 = vmul.f32 %v1584, 1.442695
    %v1594 = vpow.pop %v1593
    %v1595 = vmul.f32 %v1585, 1.442695
    %v1596 = vpow.pop %v1595
    %v1597 = vmul.f32 %v1586, 1.442695
    %v1598 = vpow.pop %v1597
    %v1599 = vmul.f32 %v1587, 1.442695
    %v1600 = vpow.pop %v1599
    %v1601 = vmul.f32 %v1588, 1.442695
    %v1602 = vpow.pop %v1601
    %v1603 = vmul.f32 %v1589, 1.442695
    %v1604 = vpow.pop %v1603
    %v1605 = vmul.f32 %v1590, 1.442695
    %v1606 = vpow.pop %v1605
    %v1607 = vadd.f32 %v1592, 1.0
    %v1608 = vadd.f32 %v1594, 1.0
    %v1609 = vadd.f32 %v1596, 1.0
    %v1610 = vadd.f32 %v1598, 1.0
    %v1611 = vadd.f32 %v1600, 1.0
    %v1612 = vadd.f32 %v1602, 1.0
    %v1613 = vadd.f32 %v1604, 1.0
    %v1614 = vadd.f32 %v1606, 1.0
    %v1615 = vrcp.pop %v1607
    %v1616 = vmul.f32 1.0, %v1615
    %v1617 = vrcp.pop %v1608
    %v1618 = vmul.f32 1.0, %v1617
    %v1619 = vrcp.pop %v1609
    %v1620 = vmul.f32 1.0, %v1619
    %v1621 = vrcp.pop %v1610
    %v1622 = vmul.f32 1.0, %v1621
    %v1623 = vrcp.pop %v1611
    %v1624 = vmul.f32 1.0, %v1623
    %v1625 = vrcp.pop %v1612
    %v1626 = vmul.f32 1.0, %v1625
    %v1627 = vrcp.pop %v1613
    %v1628 = vmul.f32 1.0, %v1627
    %v1629 = vrcp.pop %v1614
    %v1630 = vmul.f32 1.0, %v1629
    %v1631 = vtanh.pop %v1575
    %v1632 = vtanh.pop %v1576
    %v1633 = vtanh.pop %v1577
    %v1634 = vtanh.pop %v1578
    %v1635 = vtanh.pop %v1579
    %v1636 = vtanh.pop %v1580
    %v1637 = vtanh.pop %v1581
    %v1638 = vtanh.pop %v1582
    %v1640 = vcombine.high %v1468, %v1468
    %v1642 = vunpack.c.l.s4 1983009808
    %v1643 = vunpack.c.0.s8 %v1642
    %v1644 = vlaneseq
    %v1645 = vshrl.u32 %v1644, 7
    %v1646 = vsub.s32 %v1643, %v1645
    %v1647 = vrot.slane %v1468, %v1646
    %v1649 = vunpack.c.l.s4 1983009808
    %v1650 = vunpack.c.0.s8 %v1649
    %v1651 = vlaneseq
    %v1652 = vshrl.u32 %v1651, 7
    %v1653 = vsub.s32 %v1650, %v1652
    %v1654 = vrot.slane %v1640, %v1653
    %v1655 = vcombine.high %v1647, %v1647
    %v1656 = vcombine.high %v1654, %v1654
    %v1657 = vrot.slane %v1647, 1
    %v1658 = vrot.slane %v1655, 1
    %v1659 = vrot.slane %v1654, 1
    %v1660 = vrot.slane %v1656, 1
    %1661 = vrot.lane.b32.xlu0 %v1647, 8
    %v1662 = vpop.permute.xlu0 %1661
    %1663 = vrot.lane.b32.xlu0 %v1657, 8
    %v1664 = vpop.permute.xlu0 %1663
    %1665 = vrot.lane.b32.xlu0 %v1655, 8
    %v1666 = vpop.permute.xlu0 %1665
    %1667 = vrot.lane.b32.xlu0 %v1658, 8
    %v1668 = vpop.permute.xlu0 %1667
    %1669 = vrot.lane.b32.xlu0 %v1654, 8
    %v1670 = vpop.permute.xlu0 %1669
    %1671 = vrot.lane.b32.xlu0 %v1659, 8
    %v1672 = vpop.permute.xlu0 %1671
    %1673 = vrot.lane.b32.xlu0 %v1656, 8
    %v1674 = vpop.permute.xlu0 %1673
    %1675 = vrot.lane.b32.xlu0 %v1660, 8
    %v1676 = vpop.permute.xlu0 %1675
    %v1685 = vmul.f32 %v1616, %v1662
    %v1686 = vmul.f32 %v1618, %v1664
    %v1687 = vmul.f32 %v1620, %v1666
    %v1688 = vmul.f32 %v1622, %v1668
    %v1689 = vmul.f32 %v1624, %v1670
    %v1690 = vmul.f32 %v1626, %v1672
    %v1691 = vmul.f32 %v1628, %v1674
    %v1692 = vmul.f32 %v1630, %v1676
    %1701 = vrot.lane.b32.xlu0 %v1631, 104
    %v1702 = vpop.permute.xlu0 %1701
    %1703 = vrot.lane.b32.xlu0 %v1632, 104
    %v1704 = vpop.permute.xlu0 %1703
    %1705 = vrot.lane.b32.xlu0 %v1633, 104
    %v1706 = vpop.permute.xlu0 %1705
    %1707 = vrot.lane.b32.xlu0 %v1634, 104
    %v1708 = vpop.permute.xlu0 %1707
    %1709 = vrot.lane.b32.xlu0 %v1635, 104
    %v1710 = vpop.permute.xlu0 %1709
    %1711 = vrot.lane.b32.xlu0 %v1636, 104
    %v1712 = vpop.permute.xlu0 %1711
    %1713 = vrot.lane.b32.xlu0 %v1637, 104
    %v1714 = vpop.permute.xlu0 %1713
    %1715 = vrot.lane.b32.xlu0 %v1638, 104
    %v1716 = vpop.permute.xlu0 %1715
    %v1725 = vmul.f32 %v1616, %v1702
    %v1726 = vmul.f32 %v1618, %v1704
    %v1727 = vmul.f32 %v1620, %v1706
    %v1728 = vmul.f32 %v1622, %v1708
    %v1729 = vmul.f32 %v1624, %v1710
    %v1730 = vmul.f32 %v1626, %v1712
    %v1731 = vmul.f32 %v1628, %v1714
    %v1732 = vmul.f32 %v1630, %v1716
    %1741 = vrot.lane.b32.xlu0 %v1725, 8
    %v1742 = vpop.permute.xlu0 %1741
    %1743 = vrot.lane.b32.xlu0 %v1726, 8
    %v1744 = vpop.permute.xlu0 %1743
    %1745 = vrot.lane.b32.xlu0 %v1727, 8
    %v1746 = vpop.permute.xlu0 %1745
    %1747 = vrot.lane.b32.xlu0 %v1728, 8
    %v1748 = vpop.permute.xlu0 %1747
    %1749 = vrot.lane.b32.xlu0 %v1729, 8
    %v1750 = vpop.permute.xlu0 %1749
    %1751 = vrot.lane.b32.xlu0 %v1730, 8
    %v1752 = vpop.permute.xlu0 %1751
    %1753 = vrot.lane.b32.xlu0 %v1731, 8
    %v1754 = vpop.permute.xlu0 %1753
    %1755 = vrot.lane.b32.xlu0 %v1732, 8
    %v1756 = vpop.permute.xlu0 %1755
    %v1765 = vadd.f32 %v1685, %v1742
    %v1766 = vadd.f32 %v1686, %v1744
    %v1767 = vadd.f32 %v1687, %v1746
    %v1768 = vadd.f32 %v1688, %v1748
    %v1769 = vadd.f32 %v1689, %v1750
    %v1770 = vadd.f32 %v1690, %v1752
    %v1771 = vadd.f32 %v1691, %v1754
    %v1772 = vadd.f32 %v1692, %v1756
    %v1773 = vtanh.pop %v1765
    %v1774 = vtanh.pop %v1766
    %v1775 = vtanh.pop %v1767
    %v1776 = vtanh.pop %v1768
    %v1777 = vtanh.pop %v1769
    %v1778 = vtanh.pop %v1770
    %v1779 = vtanh.pop %v1771
    %v1780 = vtanh.pop %v1772
    %1789 = vrot.lane.b32.xlu0 %v1773, 8
    %v1790 = vpop.permute.xlu0 %1789
    %1791 = vrot.lane.b32.xlu0 %v1774, 8
    %v1792 = vpop.permute.xlu0 %1791
    %1793 = vrot.lane.b32.xlu0 %v1775, 8
    %v1794 = vpop.permute.xlu0 %1793
    %1795 = vrot.lane.b32.xlu0 %v1776, 8
    %v1796 = vpop.permute.xlu0 %1795
    %1797 = vrot.lane.b32.xlu0 %v1777, 8
    %v1798 = vpop.permute.xlu0 %1797
    %1799 = vrot.lane.b32.xlu0 %v1778, 8
    %v1800 = vpop.permute.xlu0 %1799
    %1801 = vrot.lane.b32.xlu0 %v1779, 8
    %v1802 = vpop.permute.xlu0 %1801
    %1803 = vrot.lane.b32.xlu0 %v1780, 8
    %v1804 = vpop.permute.xlu0 %1803
    %v1813 = vmul.f32 %v1616, %v1790
    %v1814 = vmul.f32 %v1618, %v1792
    %v1815 = vmul.f32 %v1620, %v1794
    %v1816 = vmul.f32 %v1622, %v1796
    %v1817 = vmul.f32 %v1624, %v1798
    %v1818 = vmul.f32 %v1626, %v1800
    %v1819 = vmul.f32 %v1628, %v1802
    %v1820 = vmul.f32 %v1630, %v1804
    %1822 = vset.pattern.permute.xlu0 0
    %1823 = vperm.xlu0 %1822, %v1471
    %v1824 = vpop.permute.xlu0 %1823
    %v1834 = vlaneseq
    %v1835 = vshrl.u32 %v1834, 7
    %v1836 = vsub.s32 0, %v1835
    %v1837 = vrot.slane %v1813, %v1836
    %v1838 = vlaneseq
    %v1839 = vshrl.u32 %v1838, 7
    %v1840 = vsub.s32 0, %v1839
    %v1841 = vrot.slane %v1814, %v1840
    %v1842 = vlaneseq
    %v1843 = vshrl.u32 %v1842, 7
    %v1844 = vsub.s32 0, %v1843
    %v1845 = vrot.slane %v1815, %v1844
    %v1846 = vlaneseq
    %v1847 = vshrl.u32 %v1846, 7
    %v1848 = vsub.s32 0, %v1847
    %v1849 = vrot.slane %v1816, %v1848
    %v1850 = vlaneseq
    %v1851 = vshrl.u32 %v1850, 7
    %v1852 = vsub.s32 0, %v1851
    %v1853 = vrot.slane %v1817, %v1852
    %v1854 = vlaneseq
    %v1855 = vshrl.u32 %v1854, 7
    %v1856 = vsub.s32 0, %v1855
    %v1857 = vrot.slane %v1818, %v1856
    %v1858 = vlaneseq
    %v1859 = vshrl.u32 %v1858, 7
    %v1860 = vsub.s32 0, %v1859
    %v1861 = vrot.slane %v1819, %v1860
    %v1862 = vlaneseq
    %v1863 = vshrl.u32 %v1862, 7
    %v1864 = vsub.s32 0, %v1863
    %v1865 = vrot.slane %v1820, %v1864
    %v1866 = vsel %vm922, %v1841, %v1837
    %v1867 = vsel %vm924, %v1845, %v1866
    %v1868 = vsel %vm926, %v1849, %v1867
    %v1869 = vsel %vm928, %v1853, %v1868
    %v1870 = vsel %vm930, %v1857, %v1869
    %v1871 = vsel %vm932, %v1861, %v1870
    %v1872 = vsel %vm934, %v1865, %v1871
    %1873 = vrot.lane.b32.xlu0 %v1872, 112
    %v1874 = vpop.permute.xlu0 %1873
    %v1876 = vmul.f32 %v1824, %v1874
    %v1877 = vsub.f32 1.0, %v1471
    %1879 = vset.pattern.permute.xlu0 0
    %1880 = vperm.xlu0 %1879, %v1877
    %v1881 = vpop.permute.xlu0 %1880
    %v1883 = vmul.f32 %v1881, %v1415
    %v1884 = vadd.f32 %v1876, %v1883
    %v1893 = vlaneseq
    %v1894 = vshrl.u32 %v1893, 7
    %v1895 = vsub.s32 0, %v1894
    %v1896 = vrot.slane %v1765, %v1895
    %v1897 = vlaneseq
    %v1898 = vshrl.u32 %v1897, 7
    %v1899 = vsub.s32 0, %v1898
    %v1900 = vrot.slane %v1766, %v1899
    %v1901 = vlaneseq
    %v1902 = vshrl.u32 %v1901, 7
    %v1903 = vsub.s32 0, %v1902
    %v1904 = vrot.slane %v1767, %v1903
    %v1905 = vlaneseq
    %v1906 = vshrl.u32 %v1905, 7
    %v1907 = vsub.s32 0, %v1906
    %v1908 = vrot.slane %v1768, %v1907
    %v1909 = vlaneseq
    %v1910 = vshrl.u32 %v1909, 7
    %v1911 = vsub.s32 0, %v1910
    %v1912 = vrot.slane %v1769, %v1911
    %v1913 = vlaneseq
    %v1914 = vshrl.u32 %v1913, 7
    %v1915 = vsub.s32 0, %v1914
    %v1916 = vrot.slane %v1770, %v1915
    %v1917 = vlaneseq
    %v1918 = vshrl.u32 %v1917, 7
    %v1919 = vsub.s32 0, %v1918
    %v1920 = vrot.slane %v1771, %v1919
    %v1921 = vlaneseq
    %v1922 = vshrl.u32 %v1921, 7
    %v1923 = vsub.s32 0, %v1922
    %v1924 = vrot.slane %v1772, %v1923
    %v1925 = vsel %vm922, %v1900, %v1896
    %v1926 = vsel %vm924, %v1904, %v1925
    %v1927 = vsel %vm926, %v1908, %v1926
    %v1928 = vsel %vm928, %v1912, %v1927
    %v1929 = vsel %vm930, %v1916, %v1928
    %v1930 = vsel %vm932, %v1920, %v1929
    %v1931 = vsel %vm934, %v1924, %v1930
    %1932 = vrot.lane.b32.xlu0 %v1931, 120
    %v1933 = vpop.permute.xlu0 %1932
    %v1935 = vmul.f32 %v1824, %v1933
    %v1936 = vmul.f32 %v1881, %v1468
    %v1937 = vadd.f32 %v1935, %v1936
    %vm1938 = vcmp.gt.s32.totalorder %v41, 3
    %v1939 = vsel %vm1938, 1, 0
    %v1940 = vcvt.s32.f32 %v1939
    %v1942 = vsel %vm283, %v1884, 0
    %1944 = vmatprep.subr.mxu0 0.0
    %1945 = vmatpush1.msra.mxu0 0.0
    %1946 = vmatprep.subr.mxu0 0.0
    %1947 = vmatpush1.msra.mxu0 0.0
    %1948 = vmatprep.subr.mxu0 0.0
    %1949 = vmatpush1.msra.mxu0 0.0
    %1950 = vmatprep.subr.mxu0 0.0
    %1951 = vmatpush1.msra.mxu0 0.0
    %1952 = vmatprep.subr.mxu0 0.0
    %1953 = vmatpush1.msra.mxu0 0.0
    %1954 = vmatprep.subr.mxu0 0.0
    %1955 = vmatpush1.msra.mxu0 0.0
    %1956 = vmatprep.subr.mxu0 0.0
    %1957 = vmatpush1.msra.mxu0 0.0
    %1958 = vmatprep.subr.mxu0 0.0
    %1959 = vmatpush1.msra.mxu0 0.0
    %1960 = vmatprep.subr.mxu0 0.0
    %1961 = vmatpush1.msra.mxu0 0.0
    %1962 = vmatprep.subr.mxu0 0.0
    %1963 = vmatpush1.msra.mxu0 0.0
    %1964 = vmatprep.subr.mxu0 0.0
    %1965 = vmatpush1.msra.mxu0 0.0
    %1966 = vmatprep.subr.mxu0 0.0
    %1967 = vmatpush1.msra.mxu0 0.0
    %1968 = vmatprep.subr.mxu0 0.0
    %1969 = vmatpush1.msra.mxu0 0.0
    %1970 = vmatprep.subr.mxu0 0.0
    %1971 = vmatpush1.msra.mxu0 0.0
    %1972 = vmatprep.subr.mxu0 0.0
    %1973 = vmatpush1.msra.mxu0 0.0
    %1974 = vmatprep.subr.mxu0 0.0
    %1975 = vmatpush1.msra.mxu0 %v43
    %1976 = vmatprep.subr.mxu0 0.0
    %1977 = vmatpush2.msra.mxu0 0.0
    %1978 = vmatprep.subr.mxu0 0.0
    %1979 = vmatpush2.msra.mxu0 0.0
    %1980 = vmatprep.subr.mxu0 0.0
    %1981 = vmatpush2.msra.mxu0 0.0
    %1982 = vmatprep.subr.mxu0 0.0
    %1983 = vmatpush2.msra.mxu0 0.0
    %1984 = vmatprep.subr.mxu0 0.0
    %1985 = vmatpush2.msra.mxu0 0.0
    %1986 = vmatprep.subr.mxu0 0.0
    %1987 = vmatpush2.msra.mxu0 0.0
    %1988 = vmatprep.subr.mxu0 0.0
    %1989 = vmatpush2.msra.mxu0 0.0
    %1990 = vmatprep.subr.mxu0 0.0
    %1991 = vmatpush2.msra.mxu0 0.0
    %1992 = vmatprep.subr.mxu0 0.0
    %1993 = vmatpush2.msra.mxu0 0.0
    %1994 = vmatprep.subr.mxu0 0.0
    %1995 = vmatpush2.msra.mxu0 0.0
    %1996 = vmatprep.subr.mxu0 0.0
    %1997 = vmatpush2.msra.mxu0 0.0
    %1998 = vmatprep.subr.mxu0 0.0
    %1999 = vmatpush2.msra.mxu0 0.0
    %2000 = vmatprep.subr.mxu0 0.0
    %2001 = vmatpush2.msra.mxu0 0.0
    %2002 = vmatprep.subr.mxu0 0.0
    %2003 = vmatpush2.msra.mxu0 0.0
    %2004 = vmatprep.subr.mxu0 0.0
    %2005 = vmatpush2.msra.mxu0 0.0
    %2006 = vmatprep.subr.mxu0 0.0
    %2007 = vmatpush2.msra.mxu0 0.0
    %2008 = vmatprep.mubr.f32.mxu0 0.0
    %2009 = vmatmul.mubr.f32.gmra.mxu0 %v1942
    %v2010 = vpop.f32.mrf.mxu0
    %v2011 = vadd.f32 0.0, %v2010
    %v2012 = vpop.f32.mrf.mxu0
    %2013 = vdwg.mxu0
    %v2015 = vcombine.high %v2011, %v2011
    %v2017 = vunpack.c.l.s4 1983009808
    %v2018 = vunpack.c.0.s8 %v2017
    %v2019 = vlaneseq
    %v2020 = vshrl.u32 %v2019, 7
    %v2021 = vsub.s32 %v2018, %v2020
    %v2022 = vrot.slane %v2011, %v2021
    %v2024 = vunpack.c.l.s4 1983009808
    %v2025 = vunpack.c.0.s8 %v2024
    %v2026 = vlaneseq
    %v2027 = vshrl.u32 %v2026, 7
    %v2028 = vsub.s32 %v2025, %v2027
    %v2029 = vrot.slane %v2015, %v2028
    %v2030 = vcombine.high %v2022, %v2022
    %v2031 = vcombine.high %v2029, %v2029
    %v2032 = vrot.slane %v2022, 7
    %v2033 = vrot.slane %v2030, 7
    %v2034 = vrot.slane %v2029, 7
    %v2035 = vrot.slane %v2031, 7
    %v2044 = vadd.f32 %v548, %v2032
    %v2045 = vadd.f32 %v551, %v2022
    %v2046 = vadd.f32 %v554, %v2033
    %v2047 = vadd.f32 %v557, %v2030
    %v2048 = vadd.f32 %v560, %v2034
    %v2049 = vadd.f32 %v563, %v2029
    %v2050 = vadd.f32 %v566, %v2035
    %v2051 = vadd.f32 %v569, %v2031
    %v2052 = vxor.u32 %v2044, 2147483648
    %v2053 = vxor.u32 %v2045, 2147483648
    %v2054 = vxor.u32 %v2046, 2147483648
    %v2055 = vxor.u32 %v2047, 2147483648
    %v2056 = vxor.u32 %v2048, 2147483648
    %v2057 = vxor.u32 %v2049, 2147483648
    %v2058 = vxor.u32 %v2050, 2147483648
    %v2059 = vxor.u32 %v2051, 2147483648
    %v2060 = vmul.f32 %v2052, 1.442695
    %v2061 = vpow.pop %v2060
    %v2062 = vmul.f32 %v2053, 1.442695
    %v2063 = vpow.pop %v2062
    %v2064 = vmul.f32 %v2054, 1.442695
    %v2065 = vpow.pop %v2064
    %v2066 = vmul.f32 %v2055, 1.442695
    %v2067 = vpow.pop %v2066
    %v2068 = vmul.f32 %v2056, 1.442695
    %v2069 = vpow.pop %v2068
    %v2070 = vmul.f32 %v2057, 1.442695
    %v2071 = vpow.pop %v2070
    %v2072 = vmul.f32 %v2058, 1.442695
    %v2073 = vpow.pop %v2072
    %v2074 = vmul.f32 %v2059, 1.442695
    %v2075 = vpow.pop %v2074
    %v2076 = vadd.f32 %v2061, 1.0
    %v2077 = vadd.f32 %v2063, 1.0
    %v2078 = vadd.f32 %v2065, 1.0
    %v2079 = vadd.f32 %v2067, 1.0
    %v2080 = vadd.f32 %v2069, 1.0
    %v2081 = vadd.f32 %v2071, 1.0
    %v2082 = vadd.f32 %v2073, 1.0
    %v2083 = vadd.f32 %v2075, 1.0
    %v2084 = vrcp.pop %v2076
    %v2085 = vmul.f32 1.0, %v2084
    %v2086 = vrcp.pop %v2077
    %v2087 = vmul.f32 1.0, %v2086
    %v2088 = vrcp.pop %v2078
    %v2089 = vmul.f32 1.0, %v2088
    %v2090 = vrcp.pop %v2079
    %v2091 = vmul.f32 1.0, %v2090
    %v2092 = vrcp.pop %v2080
    %v2093 = vmul.f32 1.0, %v2092
    %v2094 = vrcp.pop %v2081
    %v2095 = vmul.f32 1.0, %v2094
    %v2096 = vrcp.pop %v2082
    %v2097 = vmul.f32 1.0, %v2096
    %v2098 = vrcp.pop %v2083
    %v2099 = vmul.f32 1.0, %v2098
    %v2100 = vtanh.pop %v2044
    %v2101 = vtanh.pop %v2045
    %v2102 = vtanh.pop %v2046
    %v2103 = vtanh.pop %v2047
    %v2104 = vtanh.pop %v2048
    %v2105 = vtanh.pop %v2049
    %v2106 = vtanh.pop %v2050
    %v2107 = vtanh.pop %v2051
    %v2109 = vcombine.high %v1937, %v1937
    %v2111 = vunpack.c.l.s4 1983009808
    %v2112 = vunpack.c.0.s8 %v2111
    %v2113 = vlaneseq
    %v2114 = vshrl.u32 %v2113, 7
    %v2115 = vsub.s32 %v2112, %v2114
    %v2116 = vrot.slane %v1937, %v2115
    %v2118 = vunpack.c.l.s4 1983009808
    %v2119 = vunpack.c.0.s8 %v2118
    %v2120 = vlaneseq
    %v2121 = vshrl.u32 %v2120, 7
    %v2122 = vsub.s32 %v2119, %v2121
    %v2123 = vrot.slane %v2109, %v2122
    %v2124 = vcombine.high %v2116, %v2116
    %v2125 = vcombine.high %v2123, %v2123
    %v2126 = vrot.slane %v2116, 7
    %v2127 = vrot.slane %v2124, 7
    %v2128 = vrot.slane %v2123, 7
    %v2129 = vrot.slane %v2125, 7
    %2130 = vrot.lane.b32.xlu0 %v2126, 8
    %v2131 = vpop.permute.xlu0 %2130
    %2132 = vrot.lane.b32.xlu0 %v2116, 8
    %v2133 = vpop.permute.xlu0 %2132
    %2134 = vrot.lane.b32.xlu0 %v2127, 8
    %v2135 = vpop.permute.xlu0 %2134
    %2136 = vrot.lane.b32.xlu0 %v2124, 8
    %v2137 = vpop.permute.xlu0 %2136
    %2138 = vrot.lane.b32.xlu0 %v2128, 8
    %v2139 = vpop.permute.xlu0 %2138
    %2140 = vrot.lane.b32.xlu0 %v2123, 8
    %v2141 = vpop.permute.xlu0 %2140
    %2142 = vrot.lane.b32.xlu0 %v2129, 8
    %v2143 = vpop.permute.xlu0 %2142
    %2144 = vrot.lane.b32.xlu0 %v2125, 8
    %v2145 = vpop.permute.xlu0 %2144
    %v2154 = vmul.f32 %v2085, %v2131
    %v2155 = vmul.f32 %v2087, %v2133
    %v2156 = vmul.f32 %v2089, %v2135
    %v2157 = vmul.f32 %v2091, %v2137
    %v2158 = vmul.f32 %v2093, %v2139
    %v2159 = vmul.f32 %v2095, %v2141
    %v2160 = vmul.f32 %v2097, %v2143
    %v2161 = vmul.f32 %v2099, %v2145
    %2170 = vrot.lane.b32.xlu0 %v2100, 104
    %v2171 = vpop.permute.xlu0 %2170
    %2172 = vrot.lane.b32.xlu0 %v2101, 104
    %v2173 = vpop.permute.xlu0 %2172
    %2174 = vrot.lane.b32.xlu0 %v2102, 104
    %v2175 = vpop.permute.xlu0 %2174
    %2176 = vrot.lane.b32.xlu0 %v2103, 104
    %v2177 = vpop.permute.xlu0 %2176
    %2178 = vrot.lane.b32.xlu0 %v2104, 104
    %v2179 = vpop.permute.xlu0 %2178
    %2180 = vrot.lane.b32.xlu0 %v2105, 104
    %v2181 = vpop.permute.xlu0 %2180
    %2182 = vrot.lane.b32.xlu0 %v2106, 104
    %v2183 = vpop.permute.xlu0 %2182
    %2184 = vrot.lane.b32.xlu0 %v2107, 104
    %v2185 = vpop.permute.xlu0 %2184
    %v2194 = vmul.f32 %v2085, %v2171
    %v2195 = vmul.f32 %v2087, %v2173
    %v2196 = vmul.f32 %v2089, %v2175
    %v2197 = vmul.f32 %v2091, %v2177
    %v2198 = vmul.f32 %v2093, %v2179
    %v2199 = vmul.f32 %v2095, %v2181
    %v2200 = vmul.f32 %v2097, %v2183
    %v2201 = vmul.f32 %v2099, %v2185
    %2210 = vrot.lane.b32.xlu0 %v2194, 8
    %v2211 = vpop.permute.xlu0 %2210
    %2212 = vrot.lane.b32.xlu0 %v2195, 8
    %v2213 = vpop.permute.xlu0 %2212
    %2214 = vrot.lane.b32.xlu0 %v2196, 8
    %v2215 = vpop.permute.xlu0 %2214
    %2216 = vrot.lane.b32.xlu0 %v2197, 8
    %v2217 = vpop.permute.xlu0 %2216
    %2218 = vrot.lane.b32.xlu0 %v2198, 8
    %v2219 = vpop.permute.xlu0 %2218
    %2220 = vrot.lane.b32.xlu0 %v2199, 8
    %v2221 = vpop.permute.xlu0 %2220
    %2222 = vrot.lane.b32.xlu0 %v2200, 8
    %v2223 = vpop.permute.xlu0 %2222
    %2224 = vrot.lane.b32.xlu0 %v2201, 8
    %v2225 = vpop.permute.xlu0 %2224
    %v2234 = vadd.f32 %v2154, %v2211
    %v2235 = vadd.f32 %v2155, %v2213
    %v2236 = vadd.f32 %v2156, %v2215
    %v2237 = vadd.f32 %v2157, %v2217
    %v2238 = vadd.f32 %v2158, %v2219
    %v2239 = vadd.f32 %v2159, %v2221
    %v2240 = vadd.f32 %v2160, %v2223
    %v2241 = vadd.f32 %v2161, %v2225
    %v2242 = vtanh.pop %v2234
    %v2243 = vtanh.pop %v2235
    %v2244 = vtanh.pop %v2236
    %v2245 = vtanh.pop %v2237
    %v2246 = vtanh.pop %v2238
    %v2247 = vtanh.pop %v2239
    %v2248 = vtanh.pop %v2240
    %v2249 = vtanh.pop %v2241
    %2258 = vrot.lane.b32.xlu0 %v2242, 8
    %v2259 = vpop.permute.xlu0 %2258
    %2260 = vrot.lane.b32.xlu0 %v2243, 8
    %v2261 = vpop.permute.xlu0 %2260
    %2262 = vrot.lane.b32.xlu0 %v2244, 8
    %v2263 = vpop.permute.xlu0 %2262
    %2264 = vrot.lane.b32.xlu0 %v2245, 8
    %v2265 = vpop.permute.xlu0 %2264
    %2266 = vrot.lane.b32.xlu0 %v2246, 8
    %v2267 = vpop.permute.xlu0 %2266
    %2268 = vrot.lane.b32.xlu0 %v2247, 8
    %v2269 = vpop.permute.xlu0 %2268
    %2270 = vrot.lane.b32.xlu0 %v2248, 8
    %v2271 = vpop.permute.xlu0 %2270
    %2272 = vrot.lane.b32.xlu0 %v2249, 8
    %v2273 = vpop.permute.xlu0 %2272
    %v2282 = vmul.f32 %v2085, %v2259
    %v2283 = vmul.f32 %v2087, %v2261
    %v2284 = vmul.f32 %v2089, %v2263
    %v2285 = vmul.f32 %v2091, %v2265
    %v2286 = vmul.f32 %v2093, %v2267
    %v2287 = vmul.f32 %v2095, %v2269
    %v2288 = vmul.f32 %v2097, %v2271
    %v2289 = vmul.f32 %v2099, %v2273
    %2291 = vset.pattern.permute.xlu0 0
    %2292 = vperm.xlu0 %2291, %v1940
    %v2293 = vpop.permute.xlu0 %2292
    %v2303 = vlaneseq
    %v2304 = vshrl.u32 %v2303, 7
    %v2305 = vsub.s32 1, %v2304
    %v2306 = vrot.slane %v2282, %v2305
    %v2307 = vlaneseq
    %v2308 = vshrl.u32 %v2307, 7
    %v2309 = vsub.s32 1, %v2308
    %v2310 = vrot.slane %v2283, %v2309
    %v2311 = vlaneseq
    %v2312 = vshrl.u32 %v2311, 7
    %v2313 = vsub.s32 1, %v2312
    %v2314 = vrot.slane %v2284, %v2313
    %v2315 = vlaneseq
    %v2316 = vshrl.u32 %v2315, 7
    %v2317 = vsub.s32 1, %v2316
    %v2318 = vrot.slane %v2285, %v2317
    %v2319 = vlaneseq
    %v2320 = vshrl.u32 %v2319, 7
    %v2321 = vsub.s32 1, %v2320
    %v2322 = vrot.slane %v2286, %v2321
    %v2323 = vlaneseq
    %v2324 = vshrl.u32 %v2323, 7
    %v2325 = vsub.s32 1, %v2324
    %v2326 = vrot.slane %v2287, %v2325
    %v2327 = vlaneseq
    %v2328 = vshrl.u32 %v2327, 7
    %v2329 = vsub.s32 1, %v2328
    %v2330 = vrot.slane %v2288, %v2329
    %v2331 = vlaneseq
    %v2332 = vshrl.u32 %v2331, 7
    %v2333 = vsub.s32 1, %v2332
    %v2334 = vrot.slane %v2289, %v2333
    %v2335 = vsel %vm922, %v2310, %v2306
    %v2336 = vsel %vm924, %v2314, %v2335
    %v2337 = vsel %vm926, %v2318, %v2336
    %v2338 = vsel %vm928, %v2322, %v2337
    %v2339 = vsel %vm930, %v2326, %v2338
    %v2340 = vsel %vm932, %v2330, %v2339
    %v2341 = vsel %vm934, %v2334, %v2340
    %2342 = vrot.lane.b32.xlu0 %v2341, 112
    %v2343 = vpop.permute.xlu0 %2342
    %v2345 = vmul.f32 %v2293, %v2343
    %v2346 = vsub.f32 1.0, %v1940
    %2348 = vset.pattern.permute.xlu0 0
    %2349 = vperm.xlu0 %2348, %v2346
    %v2350 = vpop.permute.xlu0 %2349
    %v2352 = vmul.f32 %v2350, %v1884
    %v2353 = vadd.f32 %v2345, %v2352
    %v2362 = vlaneseq
    %v2363 = vshrl.u32 %v2362, 7
    %v2364 = vsub.s32 1, %v2363
    %v2365 = vrot.slane %v2234, %v2364
    %v2366 = vlaneseq
    %v2367 = vshrl.u32 %v2366, 7
    %v2368 = vsub.s32 1, %v2367
    %v2369 = vrot.slane %v2235, %v2368
    %v2370 = vlaneseq
    %v2371 = vshrl.u32 %v2370, 7
    %v2372 = vsub.s32 1, %v2371
    %v2373 = vrot.slane %v2236, %v2372
    %v2374 = vlaneseq
    %v2375 = vshrl.u32 %v2374, 7
    %v2376 = vsub.s32 1, %v2375
    %v2377 = vrot.slane %v2237, %v2376
    %v2378 = vlaneseq
    %v2379 = vshrl.u32 %v2378, 7
    %v2380 = vsub.s32 1, %v2379
    %v2381 = vrot.slane %v2238, %v2380
    %v2382 = vlaneseq
    %v2383 = vshrl.u32 %v2382, 7
    %v2384 = vsub.s32 1, %v2383
    %v2385 = vrot.slane %v2239, %v2384
    %v2386 = vlaneseq
    %v2387 = vshrl.u32 %v2386, 7
    %v2388 = vsub.s32 1, %v2387
    %v2389 = vrot.slane %v2240, %v2388
    %v2390 = vlaneseq
    %v2391 = vshrl.u32 %v2390, 7
    %v2392 = vsub.s32 1, %v2391
    %v2393 = vrot.slane %v2241, %v2392
    %v2394 = vsel %vm922, %v2369, %v2365
    %v2395 = vsel %vm924, %v2373, %v2394
    %v2396 = vsel %vm926, %v2377, %v2395
    %v2397 = vsel %vm928, %v2381, %v2396
    %v2398 = vsel %vm930, %v2385, %v2397
    %v2399 = vsel %vm932, %v2389, %v2398
    %v2400 = vsel %vm934, %v2393, %v2399
    %2401 = vrot.lane.b32.xlu0 %v2400, 120
    %v2402 = vpop.permute.xlu0 %2401
    %v2404 = vmul.f32 %v2293, %v2402
    %v2405 = vmul.f32 %v2350, %v1937
    %v2406 = vadd.f32 %v2404, %v2405
    %vm2407 = vcmp.gt.s32.totalorder %v41, 4
    %v2408 = vsel %vm2407, 1, 0
    %v2409 = vcvt.s32.f32 %v2408
    %v2411 = vsel %vm283, %v2353, 0
    %2413 = vmatprep.subr.mxu0 0.0
    %2414 = vmatpush1.msra.mxu0 0.0
    %2415 = vmatprep.subr.mxu0 0.0
    %2416 = vmatpush1.msra.mxu0 0.0
    %2417 = vmatprep.subr.mxu0 0.0
    %2418 = vmatpush1.msra.mxu0 0.0
    %2419 = vmatprep.subr.mxu0 0.0
    %2420 = vmatpush1.msra.mxu0 0.0
    %2421 = vmatprep.subr.mxu0 0.0
    %2422 = vmatpush1.msra.mxu0 0.0
    %2423 = vmatprep.subr.mxu0 0.0
    %2424 = vmatpush1.msra.mxu0 0.0
    %2425 = vmatprep.subr.mxu0 0.0
    %2426 = vmatpush1.msra.mxu0 0.0
    %2427 = vmatprep.subr.mxu0 0.0
    %2428 = vmatpush1.msra.mxu0 0.0
    %2429 = vmatprep.subr.mxu0 0.0
    %2430 = vmatpush1.msra.mxu0 0.0
    %2431 = vmatprep.subr.mxu0 0.0
    %2432 = vmatpush1.msra.mxu0 0.0
    %2433 = vmatprep.subr.mxu0 0.0
    %2434 = vmatpush1.msra.mxu0 0.0
    %2435 = vmatprep.subr.mxu0 0.0
    %2436 = vmatpush1.msra.mxu0 0.0
    %2437 = vmatprep.subr.mxu0 0.0
    %2438 = vmatpush1.msra.mxu0 0.0
    %2439 = vmatprep.subr.mxu0 0.0
    %2440 = vmatpush1.msra.mxu0 0.0
    %2441 = vmatprep.subr.mxu0 0.0
    %2442 = vmatpush1.msra.mxu0 0.0
    %2443 = vmatprep.subr.mxu0 0.0
    %2444 = vmatpush1.msra.mxu0 %v43
    %2445 = vmatprep.subr.mxu0 0.0
    %2446 = vmatpush2.msra.mxu0 0.0
    %2447 = vmatprep.subr.mxu0 0.0
    %2448 = vmatpush2.msra.mxu0 0.0
    %2449 = vmatprep.subr.mxu0 0.0
    %2450 = vmatpush2.msra.mxu0 0.0
    %2451 = vmatprep.subr.mxu0 0.0
    %2452 = vmatpush2.msra.mxu0 0.0
    %2453 = vmatprep.subr.mxu0 0.0
    %2454 = vmatpush2.msra.mxu0 0.0
    %2455 = vmatprep.subr.mxu0 0.0
    %2456 = vmatpush2.msra.mxu0 0.0
    %2457 = vmatprep.subr.mxu0 0.0
    %2458 = vmatpush2.msra.mxu0 0.0
    %2459 = vmatprep.subr.mxu0 0.0
    %2460 = vmatpush2.msra.mxu0 0.0
    %2461 = vmatprep.subr.mxu0 0.0
    %2462 = vmatpush2.msra.mxu0 0.0
    %2463 = vmatprep.subr.mxu0 0.0
    %2464 = vmatpush2.msra.mxu0 0.0
    %2465 = vmatprep.subr.mxu0 0.0
    %2466 = vmatpush2.msra.mxu0 0.0
    %2467 = vmatprep.subr.mxu0 0.0
    %2468 = vmatpush2.msra.mxu0 0.0
    %2469 = vmatprep.subr.mxu0 0.0
    %2470 = vmatpush2.msra.mxu0 0.0
    %2471 = vmatprep.subr.mxu0 0.0
    %2472 = vmatpush2.msra.mxu0 0.0
    %2473 = vmatprep.subr.mxu0 0.0
    %2474 = vmatpush2.msra.mxu0 0.0
    %2475 = vmatprep.subr.mxu0 0.0
    %2476 = vmatpush2.msra.mxu0 0.0
    %2477 = vmatprep.mubr.f32.mxu0 0.0
    %2478 = vmatmul.mubr.f32.gmra.mxu0 %v2411
    %v2479 = vpop.f32.mrf.mxu0
    %v2480 = vadd.f32 0.0, %v2479
    %v2481 = vpop.f32.mrf.mxu0
    %2482 = vdwg.mxu0
    %v2484 = vcombine.high %v2480, %v2480
    %v2486 = vunpack.c.l.s4 1983009808
    %v2487 = vunpack.c.0.s8 %v2486
    %v2488 = vlaneseq
    %v2489 = vshrl.u32 %v2488, 7
    %v2490 = vsub.s32 %v2487, %v2489
    %v2491 = vrot.slane %v2480, %v2490
    %v2493 = vunpack.c.l.s4 1983009808
    %v2494 = vunpack.c.0.s8 %v2493
    %v2495 = vlaneseq
    %v2496 = vshrl.u32 %v2495, 7
    %v2497 = vsub.s32 %v2494, %v2496
    %v2498 = vrot.slane %v2484, %v2497
    %v2499 = vcombine.high %v2491, %v2491
    %v2500 = vcombine.high %v2498, %v2498
    %v2501 = vrot.slane %v2491, 1
    %v2502 = vrot.slane %v2499, 1
    %v2503 = vrot.slane %v2498, 1
    %v2504 = vrot.slane %v2500, 1
    %v2513 = vadd.f32 %v549, %v2491
    %v2514 = vadd.f32 %v552, %v2501
    %v2515 = vadd.f32 %v555, %v2499
    %v2516 = vadd.f32 %v558, %v2502
    %v2517 = vadd.f32 %v561, %v2498
    %v2518 = vadd.f32 %v564, %v2503
    %v2519 = vadd.f32 %v567, %v2500
    %v2520 = vadd.f32 %v570, %v2504
    %v2521 = vxor.u32 %v2513, 2147483648
    %v2522 = vxor.u32 %v2514, 2147483648
    %v2523 = vxor.u32 %v2515, 2147483648
    %v2524 = vxor.u32 %v2516, 2147483648
    %v2525 = vxor.u32 %v2517, 2147483648
    %v2526 = vxor.u32 %v2518, 2147483648
    %v2527 = vxor.u32 %v2519, 2147483648
    %v2528 = vxor.u32 %v2520, 2147483648
    %v2529 = vmul.f32 %v2521, 1.442695
    %v2530 = vpow.pop %v2529
    %v2531 = vmul.f32 %v2522, 1.442695
    %v2532 = vpow.pop %v2531
    %v2533 = vmul.f32 %v2523, 1.442695
    %v2534 = vpow.pop %v2533
    %v2535 = vmul.f32 %v2524, 1.442695
    %v2536 = vpow.pop %v2535
    %v2537 = vmul.f32 %v2525, 1.442695
    %v2538 = vpow.pop %v2537
    %v2539 = vmul.f32 %v2526, 1.442695
    %v2540 = vpow.pop %v2539
    %v2541 = vmul.f32 %v2527, 1.442695
    %v2542 = vpow.pop %v2541
    %v2543 = vmul.f32 %v2528, 1.442695
    %v2544 = vpow.pop %v2543
    %v2545 = vadd.f32 %v2530, 1.0
    %v2546 = vadd.f32 %v2532, 1.0
    %v2547 = vadd.f32 %v2534, 1.0
    %v2548 = vadd.f32 %v2536, 1.0
    %v2549 = vadd.f32 %v2538, 1.0
    %v2550 = vadd.f32 %v2540, 1.0
    %v2551 = vadd.f32 %v2542, 1.0
    %v2552 = vadd.f32 %v2544, 1.0
    %v2553 = vrcp.pop %v2545
    %v2554 = vmul.f32 1.0, %v2553
    %v2555 = vrcp.pop %v2546
    %v2556 = vmul.f32 1.0, %v2555
    %v2557 = vrcp.pop %v2547
    %v2558 = vmul.f32 1.0, %v2557
    %v2559 = vrcp.pop %v2548
    %v2560 = vmul.f32 1.0, %v2559
    %v2561 = vrcp.pop %v2549
    %v2562 = vmul.f32 1.0, %v2561
    %v2563 = vrcp.pop %v2550
    %v2564 = vmul.f32 1.0, %v2563
    %v2565 = vrcp.pop %v2551
    %v2566 = vmul.f32 1.0, %v2565
    %v2567 = vrcp.pop %v2552
    %v2568 = vmul.f32 1.0, %v2567
    %v2569 = vtanh.pop %v2513
    %v2570 = vtanh.pop %v2514
    %v2571 = vtanh.pop %v2515
    %v2572 = vtanh.pop %v2516
    %v2573 = vtanh.pop %v2517
    %v2574 = vtanh.pop %v2518
    %v2575 = vtanh.pop %v2519
    %v2576 = vtanh.pop %v2520
    %v2578 = vcombine.high %v2406, %v2406
    %v2580 = vunpack.c.l.s4 1983009808
    %v2581 = vunpack.c.0.s8 %v2580
    %v2582 = vlaneseq
    %v2583 = vshrl.u32 %v2582, 7
    %v2584 = vsub.s32 %v2581, %v2583
    %v2585 = vrot.slane %v2406, %v2584
    %v2587 = vunpack.c.l.s4 1983009808
    %v2588 = vunpack.c.0.s8 %v2587
    %v2589 = vlaneseq
    %v2590 = vshrl.u32 %v2589, 7
    %v2591 = vsub.s32 %v2588, %v2590
    %v2592 = vrot.slane %v2578, %v2591
    %v2593 = vcombine.high %v2585, %v2585
    %v2594 = vcombine.high %v2592, %v2592
    %v2595 = vrot.slane %v2585, 1
    %v2596 = vrot.slane %v2593, 1
    %v2597 = vrot.slane %v2592, 1
    %v2598 = vrot.slane %v2594, 1
    %2599 = vrot.lane.b32.xlu0 %v2585, 8
    %v2600 = vpop.permute.xlu0 %2599
    %2601 = vrot.lane.b32.xlu0 %v2595, 8
    %v2602 = vpop.permute.xlu0 %2601
    %2603 = vrot.lane.b32.xlu0 %v2593, 8
    %v2604 = vpop.permute.xlu0 %2603
    %2605 = vrot.lane.b32.xlu0 %v2596, 8
    %v2606 = vpop.permute.xlu0 %2605
    %2607 = vrot.lane.b32.xlu0 %v2592, 8
    %v2608 = vpop.permute.xlu0 %2607
    %2609 = vrot.lane.b32.xlu0 %v2597, 8
    %v2610 = vpop.permute.xlu0 %2609
    %2611 = vrot.lane.b32.xlu0 %v2594, 8
    %v2612 = vpop.permute.xlu0 %2611
    %2613 = vrot.lane.b32.xlu0 %v2598, 8
    %v2614 = vpop.permute.xlu0 %2613
    %v2623 = vmul.f32 %v2554, %v2600
    %v2624 = vmul.f32 %v2556, %v2602
    %v2625 = vmul.f32 %v2558, %v2604
    %v2626 = vmul.f32 %v2560, %v2606
    %v2627 = vmul.f32 %v2562, %v2608
    %v2628 = vmul.f32 %v2564, %v2610
    %v2629 = vmul.f32 %v2566, %v2612
    %v2630 = vmul.f32 %v2568, %v2614
    %2639 = vrot.lane.b32.xlu0 %v2569, 104
    %v2640 = vpop.permute.xlu0 %2639
    %2641 = vrot.lane.b32.xlu0 %v2570, 104
    %v2642 = vpop.permute.xlu0 %2641
    %2643 = vrot.lane.b32.xlu0 %v2571, 104
    %v2644 = vpop.permute.xlu0 %2643
    %2645 = vrot.lane.b32.xlu0 %v2572, 104
    %v2646 = vpop.permute.xlu0 %2645
    %2647 = vrot.lane.b32.xlu0 %v2573, 104
    %v2648 = vpop.permute.xlu0 %2647
    %2649 = vrot.lane.b32.xlu0 %v2574, 104
    %v2650 = vpop.permute.xlu0 %2649
    %2651 = vrot.lane.b32.xlu0 %v2575, 104
    %v2652 = vpop.permute.xlu0 %2651
    %2653 = vrot.lane.b32.xlu0 %v2576, 104
    %v2654 = vpop.permute.xlu0 %2653
    %v2663 = vmul.f32 %v2554, %v2640
    %v2664 = vmul.f32 %v2556, %v2642
    %v2665 = vmul.f32 %v2558, %v2644
    %v2666 = vmul.f32 %v2560, %v2646
    %v2667 = vmul.f32 %v2562, %v2648
    %v2668 = vmul.f32 %v2564, %v2650
    %v2669 = vmul.f32 %v2566, %v2652
    %v2670 = vmul.f32 %v2568, %v2654
    %2679 = vrot.lane.b32.xlu0 %v2663, 8
    %v2680 = vpop.permute.xlu0 %2679
    %2681 = vrot.lane.b32.xlu0 %v2664, 8
    %v2682 = vpop.permute.xlu0 %2681
    %2683 = vrot.lane.b32.xlu0 %v2665, 8
    %v2684 = vpop.permute.xlu0 %2683
    %2685 = vrot.lane.b32.xlu0 %v2666, 8
    %v2686 = vpop.permute.xlu0 %2685
    %2687 = vrot.lane.b32.xlu0 %v2667, 8
    %v2688 = vpop.permute.xlu0 %2687
    %2689 = vrot.lane.b32.xlu0 %v2668, 8
    %v2690 = vpop.permute.xlu0 %2689
    %2691 = vrot.lane.b32.xlu0 %v2669, 8
    %v2692 = vpop.permute.xlu0 %2691
    %2693 = vrot.lane.b32.xlu0 %v2670, 8
    %v2694 = vpop.permute.xlu0 %2693
    %v2703 = vadd.f32 %v2623, %v2680
    %v2704 = vadd.f32 %v2624, %v2682
    %v2705 = vadd.f32 %v2625, %v2684
    %v2706 = vadd.f32 %v2626, %v2686
    %v2707 = vadd.f32 %v2627, %v2688
    %v2708 = vadd.f32 %v2628, %v2690
    %v2709 = vadd.f32 %v2629, %v2692
    %v2710 = vadd.f32 %v2630, %v2694
    %v2711 = vtanh.pop %v2703
    %v2712 = vtanh.pop %v2704
    %v2713 = vtanh.pop %v2705
    %v2714 = vtanh.pop %v2706
    %v2715 = vtanh.pop %v2707
    %v2716 = vtanh.pop %v2708
    %v2717 = vtanh.pop %v2709
    %v2718 = vtanh.pop %v2710
    %2727 = vrot.lane.b32.xlu0 %v2711, 8
    %v2728 = vpop.permute.xlu0 %2727
    %2729 = vrot.lane.b32.xlu0 %v2712, 8
    %v2730 = vpop.permute.xlu0 %2729
    %2731 = vrot.lane.b32.xlu0 %v2713, 8
    %v2732 = vpop.permute.xlu0 %2731
    %2733 = vrot.lane.b32.xlu0 %v2714, 8
    %v2734 = vpop.permute.xlu0 %2733
    %2735 = vrot.lane.b32.xlu0 %v2715, 8
    %v2736 = vpop.permute.xlu0 %2735
    %2737 = vrot.lane.b32.xlu0 %v2716, 8
    %v2738 = vpop.permute.xlu0 %2737
    %2739 = vrot.lane.b32.xlu0 %v2717, 8
    %v2740 = vpop.permute.xlu0 %2739
    %2741 = vrot.lane.b32.xlu0 %v2718, 8
    %v2742 = vpop.permute.xlu0 %2741
    %v2751 = vmul.f32 %v2554, %v2728
    %v2752 = vmul.f32 %v2556, %v2730
    %v2753 = vmul.f32 %v2558, %v2732
    %v2754 = vmul.f32 %v2560, %v2734
    %v2755 = vmul.f32 %v2562, %v2736
    %v2756 = vmul.f32 %v2564, %v2738
    %v2757 = vmul.f32 %v2566, %v2740
    %v2758 = vmul.f32 %v2568, %v2742
    %2760 = vset.pattern.permute.xlu0 0
    %2761 = vperm.xlu0 %2760, %v2409
    %v2762 = vpop.permute.xlu0 %2761
    %v2772 = vlaneseq
    %v2773 = vshrl.u32 %v2772, 7
    %v2774 = vsub.s32 0, %v2773
    %v2775 = vrot.slane %v2751, %v2774
    %v2776 = vlaneseq
    %v2777 = vshrl.u32 %v2776, 7
    %v2778 = vsub.s32 0, %v2777
    %v2779 = vrot.slane %v2752, %v2778
    %v2780 = vlaneseq
    %v2781 = vshrl.u32 %v2780, 7
    %v2782 = vsub.s32 0, %v2781
    %v2783 = vrot.slane %v2753, %v2782
    %v2784 = vlaneseq
    %v2785 = vshrl.u32 %v2784, 7
    %v2786 = vsub.s32 0, %v2785
    %v2787 = vrot.slane %v2754, %v2786
    %v2788 = vlaneseq
    %v2789 = vshrl.u32 %v2788, 7
    %v2790 = vsub.s32 0, %v2789
    %v2791 = vrot.slane %v2755, %v2790
    %v2792 = vlaneseq
    %v2793 = vshrl.u32 %v2792, 7
    %v2794 = vsub.s32 0, %v2793
    %v2795 = vrot.slane %v2756, %v2794
    %v2796 = vlaneseq
    %v2797 = vshrl.u32 %v2796, 7
    %v2798 = vsub.s32 0, %v2797
    %v2799 = vrot.slane %v2757, %v2798
    %v2800 = vlaneseq
    %v2801 = vshrl.u32 %v2800, 7
    %v2802 = vsub.s32 0, %v2801
    %v2803 = vrot.slane %v2758, %v2802
    %v2804 = vsel %vm922, %v2779, %v2775
    %v2805 = vsel %vm924, %v2783, %v2804
    %v2806 = vsel %vm926, %v2787, %v2805
    %v2807 = vsel %vm928, %v2791, %v2806
    %v2808 = vsel %vm930, %v2795, %v2807
    %v2809 = vsel %vm932, %v2799, %v2808
    %v2810 = vsel %vm934, %v2803, %v2809
    %2811 = vrot.lane.b32.xlu0 %v2810, 112
    %v2812 = vpop.permute.xlu0 %2811
    %v2814 = vmul.f32 %v2762, %v2812
    %v2815 = vsub.f32 1.0, %v2409
    %2817 = vset.pattern.permute.xlu0 0
    %2818 = vperm.xlu0 %2817, %v2815
    %v2819 = vpop.permute.xlu0 %2818
    %v2821 = vmul.f32 %v2819, %v2353
    %v2822 = vadd.f32 %v2814, %v2821
    %v2831 = vlaneseq
    %v2832 = vshrl.u32 %v2831, 7
    %v2833 = vsub.s32 0, %v2832
    %v2834 = vrot.slane %v2703, %v2833
    %v2835 = vlaneseq
    %v2836 = vshrl.u32 %v2835, 7
    %v2837 = vsub.s32 0, %v2836
    %v2838 = vrot.slane %v2704, %v2837
    %v2839 = vlaneseq
    %v2840 = vshrl.u32 %v2839, 7
    %v2841 = vsub.s32 0, %v2840
    %v2842 = vrot.slane %v2705, %v2841
    %v2843 = vlaneseq
    %v2844 = vshrl.u32 %v2843, 7
    %v2845 = vsub.s32 0, %v2844
    %v2846 = vrot.slane %v2706, %v2845
    %v2847 = vlaneseq
    %v2848 = vshrl.u32 %v2847, 7
    %v2849 = vsub.s32 0, %v2848
    %v2850 = vrot.slane %v2707, %v2849
    %v2851 = vlaneseq
    %v2852 = vshrl.u32 %v2851, 7
    %v2853 = vsub.s32 0, %v2852
    %v2854 = vrot.slane %v2708, %v2853
    %v2855 = vlaneseq
    %v2856 = vshrl.u32 %v2855, 7
    %v2857 = vsub.s32 0, %v2856
    %v2858 = vrot.slane %v2709, %v2857
    %v2859 = vlaneseq
    %v2860 = vshrl.u32 %v2859, 7
    %v2861 = vsub.s32 0, %v2860
    %v2862 = vrot.slane %v2710, %v2861
    %v2863 = vsel %vm922, %v2838, %v2834
    %v2864 = vsel %vm924, %v2842, %v2863
    %v2865 = vsel %vm926, %v2846, %v2864
    %v2866 = vsel %vm928, %v2850, %v2865
    %v2867 = vsel %vm930, %v2854, %v2866
    %v2868 = vsel %vm932, %v2858, %v2867
    %v2869 = vsel %vm934, %v2862, %v2868
    %2870 = vrot.lane.b32.xlu0 %v2869, 120
    %v2871 = vpop.permute.xlu0 %2870
    %v2873 = vmul.f32 %v2762, %v2871
    %v2874 = vmul.f32 %v2819, %v2406
    %v2875 = vadd.f32 %v2873, %v2874
    %vm2876 = vcmp.gt.s32.totalorder %v41, 5
    %v2877 = vsel %vm2876, 1, 0
    %v2878 = vcvt.s32.f32 %v2877
    %v2880 = vsel %vm283, %v2822, 0
    %2882 = vmatprep.subr.mxu0 0.0
    %2883 = vmatpush1.msra.mxu0 0.0
    %2884 = vmatprep.subr.mxu0 0.0
    %2885 = vmatpush1.msra.mxu0 0.0
    %2886 = vmatprep.subr.mxu0 0.0
    %2887 = vmatpush1.msra.mxu0 0.0
    %2888 = vmatprep.subr.mxu0 0.0
    %2889 = vmatpush1.msra.mxu0 0.0
    %2890 = vmatprep.subr.mxu0 0.0
    %2891 = vmatpush1.msra.mxu0 0.0
    %2892 = vmatprep.subr.mxu0 0.0
    %2893 = vmatpush1.msra.mxu0 0.0
    %2894 = vmatprep.subr.mxu0 0.0
    %2895 = vmatpush1.msra.mxu0 0.0
    %2896 = vmatprep.subr.mxu0 0.0
    %2897 = vmatpush1.msra.mxu0 0.0
    %2898 = vmatprep.subr.mxu0 0.0
    %2899 = vmatpush1.msra.mxu0 0.0
    %2900 = vmatprep.subr.mxu0 0.0
    %2901 = vmatpush1.msra.mxu0 0.0
    %2902 = vmatprep.subr.mxu0 0.0
    %2903 = vmatpush1.msra.mxu0 0.0
    %2904 = vmatprep.subr.mxu0 0.0
    %2905 = vmatpush1.msra.mxu0 0.0
    %2906 = vmatprep.subr.mxu0 0.0
    %2907 = vmatpush1.msra.mxu0 0.0
    %2908 = vmatprep.subr.mxu0 0.0
    %2909 = vmatpush1.msra.mxu0 0.0
    %2910 = vmatprep.subr.mxu0 0.0
    %2911 = vmatpush1.msra.mxu0 0.0
    %2912 = vmatprep.subr.mxu0 0.0
    %2913 = vmatpush1.msra.mxu0 %v43
    %2914 = vmatprep.subr.mxu0 0.0
    %2915 = vmatpush2.msra.mxu0 0.0
    %2916 = vmatprep.subr.mxu0 0.0
    %2917 = vmatpush2.msra.mxu0 0.0
    %2918 = vmatprep.subr.mxu0 0.0
    %2919 = vmatpush2.msra.mxu0 0.0
    %2920 = vmatprep.subr.mxu0 0.0
    %2921 = vmatpush2.msra.mxu0 0.0
    %2922 = vmatprep.subr.mxu0 0.0
    %2923 = vmatpush2.msra.mxu0 0.0
    %2924 = vmatprep.subr.mxu0 0.0
    %2925 = vmatpush2.msra.mxu0 0.0
    %2926 = vmatprep.subr.mxu0 0.0
    %2927 = vmatpush2.msra.mxu0 0.0
    %2928 = vmatprep.subr.mxu0 0.0
    %2929 = vmatpush2.msra.mxu0 0.0
    %2930 = vmatprep.subr.mxu0 0.0
    %2931 = vmatpush2.msra.mxu0 0.0
    %2932 = vmatprep.subr.mxu0 0.0
    %2933 = vmatpush2.msra.mxu0 0.0
    %2934 = vmatprep.subr.mxu0 0.0
    %2935 = vmatpush2.msra.mxu0 0.0
    %2936 = vmatprep.subr.mxu0 0.0
    %2937 = vmatpush2.msra.mxu0 0.0
    %2938 = vmatprep.subr.mxu0 0.0
    %2939 = vmatpush2.msra.mxu0 0.0
    %2940 = vmatprep.subr.mxu0 0.0
    %2941 = vmatpush2.msra.mxu0 0.0
    %2942 = vmatprep.subr.mxu0 0.0
    %2943 = vmatpush2.msra.mxu0 0.0
    %2944 = vmatprep.subr.mxu0 0.0
    %2945 = vmatpush2.msra.mxu0 0.0
    %2946 = vmatprep.mubr.f32.mxu0 0.0
    %2947 = vmatmul.mubr.f32.gmra.mxu0 %v2880
    %v2948 = vpop.f32.mrf.mxu0
    %v2949 = vadd.f32 0.0, %v2948
    %v2950 = vpop.f32.mrf.mxu0
    %2951 = vdwg.mxu0
    %v2953 = vcombine.high %v2949, %v2949
    %v2955 = vunpack.c.l.s4 1983009808
    %v2956 = vunpack.c.0.s8 %v2955
    %v2957 = vlaneseq
    %v2958 = vshrl.u32 %v2957, 7
    %v2959 = vsub.s32 %v2956, %v2958
    %v2960 = vrot.slane %v2949, %v2959
    %v2962 = vunpack.c.l.s4 1983009808
    %v2963 = vunpack.c.0.s8 %v2962
    %v2964 = vlaneseq
    %v2965 = vshrl.u32 %v2964, 7
    %v2966 = vsub.s32 %v2963, %v2965
    %v2967 = vrot.slane %v2953, %v2966
    %v2968 = vcombine.high %v2960, %v2960
    %v2969 = vcombine.high %v2967, %v2967
    %v2970 = vrot.slane %v2960, 7
    %v2971 = vrot.slane %v2968, 7
    %v2972 = vrot.slane %v2967, 7
    %v2973 = vrot.slane %v2969, 7
    %v2982 = vadd.f32 %v549, %v2970
    %v2983 = vadd.f32 %v552, %v2960
    %v2984 = vadd.f32 %v555, %v2971
    %v2985 = vadd.f32 %v558, %v2968
    %v2986 = vadd.f32 %v561, %v2972
    %v2987 = vadd.f32 %v564, %v2967
    %v2988 = vadd.f32 %v567, %v2973
    %v2989 = vadd.f32 %v570, %v2969
    %v2990 = vxor.u32 %v2982, 2147483648
    %v2991 = vxor.u32 %v2983, 2147483648
    %v2992 = vxor.u32 %v2984, 2147483648
    %v2993 = vxor.u32 %v2985, 2147483648
    %v2994 = vxor.u32 %v2986, 2147483648
    %v2995 = vxor.u32 %v2987, 2147483648
    %v2996 = vxor.u32 %v2988, 2147483648
    %v2997 = vxor.u32 %v2989, 2147483648
    %v2998 = vmul.f32 %v2990, 1.442695
    %v2999 = vpow.pop %v2998
    %v3000 = vmul.f32 %v2991, 1.442695
    %v3001 = vpow.pop %v3000
    %v3002 = vmul.f32 %v2992, 1.442695
    %v3003 = vpow.pop %v3002
    %v3004 = vmul.f32 %v2993, 1.442695
    %v3005 = vpow.pop %v3004
    %v3006 = vmul.f32 %v2994, 1.442695
    %v3007 = vpow.pop %v3006
    %v3008 = vmul.f32 %v2995, 1.442695
    %v3009 = vpow.pop %v3008
    %v3010 = vmul.f32 %v2996, 1.442695
    %v3011 = vpow.pop %v3010
    %v3012 = vmul.f32 %v2997, 1.442695
    %v3013 = vpow.pop %v3012
    %v3014 = vadd.f32 %v2999, 1.0
    %v3015 = vadd.f32 %v3001, 1.0
    %v3016 = vadd.f32 %v3003, 1.0
    %v3017 = vadd.f32 %v3005, 1.0
    %v3018 = vadd.f32 %v3007, 1.0
    %v3019 = vadd.f32 %v3009, 1.0
    %v3020 = vadd.f32 %v3011, 1.0
    %v3021 = vadd.f32 %v3013, 1.0
    %v3022 = vrcp.pop %v3014
    %v3023 = vmul.f32 1.0, %v3022
    %v3024 = vrcp.pop %v3015
    %v3025 = vmul.f32 1.0, %v3024
    %v3026 = vrcp.pop %v3016
    %v3027 = vmul.f32 1.0, %v3026
    %v3028 = vrcp.pop %v3017
    %v3029 = vmul.f32 1.0, %v3028
    %v3030 = vrcp.pop %v3018
    %v3031 = vmul.f32 1.0, %v3030
    %v3032 = vrcp.pop %v3019
    %v3033 = vmul.f32 1.0, %v3032
    %v3034 = vrcp.pop %v3020
    %v3035 = vmul.f32 1.0, %v3034
    %v3036 = vrcp.pop %v3021
    %v3037 = vmul.f32 1.0, %v3036
    %v3038 = vtanh.pop %v2982
    %v3039 = vtanh.pop %v2983
    %v3040 = vtanh.pop %v2984
    %v3041 = vtanh.pop %v2985
    %v3042 = vtanh.pop %v2986
    %v3043 = vtanh.pop %v2987
    %v3044 = vtanh.pop %v2988
    %v3045 = vtanh.pop %v2989
    %v3047 = vcombine.high %v2875, %v2875
    %v3049 = vunpack.c.l.s4 1983009808
    %v3050 = vunpack.c.0.s8 %v3049
    %v3051 = vlaneseq
    %v3052 = vshrl.u32 %v3051, 7
    %v3053 = vsub.s32 %v3050, %v3052
    %v3054 = vrot.slane %v2875, %v3053
    %v3056 = vunpack.c.l.s4 1983009808
    %v3057 = vunpack.c.0.s8 %v3056
    %v3058 = vlaneseq
    %v3059 = vshrl.u32 %v3058, 7
    %v3060 = vsub.s32 %v3057, %v3059
    %v3061 = vrot.slane %v3047, %v3060
    %v3062 = vcombine.high %v3054, %v3054
    %v3063 = vcombine.high %v3061, %v3061
    %v3064 = vrot.slane %v3054, 7
    %v3065 = vrot.slane %v3062, 7
    %v3066 = vrot.slane %v3061, 7
    %v3067 = vrot.slane %v3063, 7
    %3068 = vrot.lane.b32.xlu0 %v3064, 8
    %v3069 = vpop.permute.xlu0 %3068
    %3070 = vrot.lane.b32.xlu0 %v3054, 8
    %v3071 = vpop.permute.xlu0 %3070
    %3072 = vrot.lane.b32.xlu0 %v3065, 8
    %v3073 = vpop.permute.xlu0 %3072
    %3074 = vrot.lane.b32.xlu0 %v3062, 8
    %v3075 = vpop.permute.xlu0 %3074
    %3076 = vrot.lane.b32.xlu0 %v3066, 8
    %v3077 = vpop.permute.xlu0 %3076
    %3078 = vrot.lane.b32.xlu0 %v3061, 8
    %v3079 = vpop.permute.xlu0 %3078
    %3080 = vrot.lane.b32.xlu0 %v3067, 8
    %v3081 = vpop.permute.xlu0 %3080
    %3082 = vrot.lane.b32.xlu0 %v3063, 8
    %v3083 = vpop.permute.xlu0 %3082
    %v3092 = vmul.f32 %v3023, %v3069
    %v3093 = vmul.f32 %v3025, %v3071
    %v3094 = vmul.f32 %v3027, %v3073
    %v3095 = vmul.f32 %v3029, %v3075
    %v3096 = vmul.f32 %v3031, %v3077
    %v3097 = vmul.f32 %v3033, %v3079
    %v3098 = vmul.f32 %v3035, %v3081
    %v3099 = vmul.f32 %v3037, %v3083
    %3108 = vrot.lane.b32.xlu0 %v3038, 104
    %v3109 = vpop.permute.xlu0 %3108
    %3110 = vrot.lane.b32.xlu0 %v3039, 104
    %v3111 = vpop.permute.xlu0 %3110
    %3112 = vrot.lane.b32.xlu0 %v3040, 104
    %v3113 = vpop.permute.xlu0 %3112
    %3114 = vrot.lane.b32.xlu0 %v3041, 104
    %v3115 = vpop.permute.xlu0 %3114
    %3116 = vrot.lane.b32.xlu0 %v3042, 104
    %v3117 = vpop.permute.xlu0 %3116
    %3118 = vrot.lane.b32.xlu0 %v3043, 104
    %v3119 = vpop.permute.xlu0 %3118
    %3120 = vrot.lane.b32.xlu0 %v3044, 104
    %v3121 = vpop.permute.xlu0 %3120
    %3122 = vrot.lane.b32.xlu0 %v3045, 104
    %v3123 = vpop.permute.xlu0 %3122
    %v3132 = vmul.f32 %v3023, %v3109
    %v3133 = vmul.f32 %v3025, %v3111
    %v3134 = vmul.f32 %v3027, %v3113
    %v3135 = vmul.f32 %v3029, %v3115
    %v3136 = vmul.f32 %v3031, %v3117
    %v3137 = vmul.f32 %v3033, %v3119
    %v3138 = vmul.f32 %v3035, %v3121
    %v3139 = vmul.f32 %v3037, %v3123
    %3148 = vrot.lane.b32.xlu0 %v3132, 8
    %v3149 = vpop.permute.xlu0 %3148
    %3150 = vrot.lane.b32.xlu0 %v3133, 8
    %v3151 = vpop.permute.xlu0 %3150
    %3152 = vrot.lane.b32.xlu0 %v3134, 8
    %v3153 = vpop.permute.xlu0 %3152
    %3154 = vrot.lane.b32.xlu0 %v3135, 8
    %v3155 = vpop.permute.xlu0 %3154
    %3156 = vrot.lane.b32.xlu0 %v3136, 8
    %v3157 = vpop.permute.xlu0 %3156
    %3158 = vrot.lane.b32.xlu0 %v3137, 8
    %v3159 = vpop.permute.xlu0 %3158
    %3160 = vrot.lane.b32.xlu0 %v3138, 8
    %v3161 = vpop.permute.xlu0 %3160
    %3162 = vrot.lane.b32.xlu0 %v3139, 8
    %v3163 = vpop.permute.xlu0 %3162
    %v3172 = vadd.f32 %v3092, %v3149
    %v3173 = vadd.f32 %v3093, %v3151
    %v3174 = vadd.f32 %v3094, %v3153
    %v3175 = vadd.f32 %v3095, %v3155
    %v3176 = vadd.f32 %v3096, %v3157
    %v3177 = vadd.f32 %v3097, %v3159
    %v3178 = vadd.f32 %v3098, %v3161
    %v3179 = vadd.f32 %v3099, %v3163
    %v3180 = vtanh.pop %v3172
    %v3181 = vtanh.pop %v3173
    %v3182 = vtanh.pop %v3174
    %v3183 = vtanh.pop %v3175
    %v3184 = vtanh.pop %v3176
    %v3185 = vtanh.pop %v3177
    %v3186 = vtanh.pop %v3178
    %v3187 = vtanh.pop %v3179
    %3196 = vrot.lane.b32.xlu0 %v3180, 8
    %v3197 = vpop.permute.xlu0 %3196
    %3198 = vrot.lane.b32.xlu0 %v3181, 8
    %v3199 = vpop.permute.xlu0 %3198
    %3200 = vrot.lane.b32.xlu0 %v3182, 8
    %v3201 = vpop.permute.xlu0 %3200
    %3202 = vrot.lane.b32.xlu0 %v3183, 8
    %v3203 = vpop.permute.xlu0 %3202
    %3204 = vrot.lane.b32.xlu0 %v3184, 8
    %v3205 = vpop.permute.xlu0 %3204
    %3206 = vrot.lane.b32.xlu0 %v3185, 8
    %v3207 = vpop.permute.xlu0 %3206
    %3208 = vrot.lane.b32.xlu0 %v3186, 8
    %v3209 = vpop.permute.xlu0 %3208
    %3210 = vrot.lane.b32.xlu0 %v3187, 8
    %v3211 = vpop.permute.xlu0 %3210
    %v3220 = vmul.f32 %v3023, %v3197
    %v3221 = vmul.f32 %v3025, %v3199
    %v3222 = vmul.f32 %v3027, %v3201
    %v3223 = vmul.f32 %v3029, %v3203
    %v3224 = vmul.f32 %v3031, %v3205
    %v3225 = vmul.f32 %v3033, %v3207
    %v3226 = vmul.f32 %v3035, %v3209
    %v3227 = vmul.f32 %v3037, %v3211
    %3229 = vset.pattern.permute.xlu0 0
    %3230 = vperm.xlu0 %3229, %v2878
    %v3231 = vpop.permute.xlu0 %3230
    %v3241 = vlaneseq
    %v3242 = vshrl.u32 %v3241, 7
    %v3243 = vsub.s32 1, %v3242
    %v3244 = vrot.slane %v3220, %v3243
    %v3245 = vlaneseq
    %v3246 = vshrl.u32 %v3245, 7
    %v3247 = vsub.s32 1, %v3246
    %v3248 = vrot.slane %v3221, %v3247
    %v3249 = vlaneseq
    %v3250 = vshrl.u32 %v3249, 7
    %v3251 = vsub.s32 1, %v3250
    %v3252 = vrot.slane %v3222, %v3251
    %v3253 = vlaneseq
    %v3254 = vshrl.u32 %v3253, 7
    %v3255 = vsub.s32 1, %v3254
    %v3256 = vrot.slane %v3223, %v3255
    %v3257 = vlaneseq
    %v3258 = vshrl.u32 %v3257, 7
    %v3259 = vsub.s32 1, %v3258
    %v3260 = vrot.slane %v3224, %v3259
    %v3261 = vlaneseq
    %v3262 = vshrl.u32 %v3261, 7
    %v3263 = vsub.s32 1, %v3262
    %v3264 = vrot.slane %v3225, %v3263
    %v3265 = vlaneseq
    %v3266 = vshrl.u32 %v3265, 7
    %v3267 = vsub.s32 1, %v3266
    %v3268 = vrot.slane %v3226, %v3267
    %v3269 = vlaneseq
    %v3270 = vshrl.u32 %v3269, 7
    %v3271 = vsub.s32 1, %v3270
    %v3272 = vrot.slane %v3227, %v3271
    %v3273 = vsel %vm922, %v3248, %v3244
    %v3274 = vsel %vm924, %v3252, %v3273
    %v3275 = vsel %vm926, %v3256, %v3274
    %v3276 = vsel %vm928, %v3260, %v3275
    %v3277 = vsel %vm930, %v3264, %v3276
    %v3278 = vsel %vm932, %v3268, %v3277
    %v3279 = vsel %vm934, %v3272, %v3278
    %3280 = vrot.lane.b32.xlu0 %v3279, 112
    %v3281 = vpop.permute.xlu0 %3280
    %v3283 = vmul.f32 %v3231, %v3281
    %v3284 = vsub.f32 1.0, %v2878
    %3286 = vset.pattern.permute.xlu0 0
    %3287 = vperm.xlu0 %3286, %v3284
    %v3288 = vpop.permute.xlu0 %3287
    %v3290 = vmul.f32 %v3288, %v2822
    %v3291 = vadd.f32 %v3283, %v3290
    %v3292 = vcombine.high %v947, %v947
    %v3294 = vunpack.c.l.s4 1966171168
    %v3295 = vunpack.c.0.s8 %v3294
    %v3296 = vlaneseq
    %v3297 = vshrl.u32 %v3296, 7
    %v3298 = vsub.s32 %v3295, %v3297
    %v3299 = vrot.slane %v947, %v3298
    %v3301 = vunpack.c.l.s4 1966171168
    %v3302 = vunpack.c.0.s8 %v3301
    %v3303 = vlaneseq
    %v3304 = vshrl.u32 %v3303, 7
    %v3305 = vsub.s32 %v3302, %v3304
    %v3306 = vrot.slane %v3292, %v3305
    %v3307 = vcombine.high %v3299, %v3299
    %v3308 = vcombine.high %v3306, %v3306
    %v3310 = vunpack.c.l.s4 1966171168
    %v3311 = vunpack.c.0.s8 %v3310
    %v3312 = vlaneseq
    %v3313 = vshrl.u32 %v3312, 7
    %v3314 = vsub.s32 %v3311, %v3313
    %v3315 = vrot.slane %v3299, %v3314
    %v3317 = vunpack.c.l.s4 1966171168
    %v3318 = vunpack.c.0.s8 %v3317
    %v3319 = vlaneseq
    %v3320 = vshrl.u32 %v3319, 7
    %v3321 = vsub.s32 %v3318, %v3320
    %v3322 = vrot.slane %v3306, %v3321
    %v3324 = vunpack.c.l.s4 1966171168
    %v3325 = vunpack.c.0.s8 %v3324
    %v3326 = vlaneseq
    %v3327 = vshrl.u32 %v3326, 7
    %v3328 = vsub.s32 %v3325, %v3327
    %v3329 = vrot.slane %v3307, %v3328
    %v3331 = vunpack.c.l.s4 1966171168
    %v3332 = vunpack.c.0.s8 %v3331
    %v3333 = vlaneseq
    %v3334 = vshrl.u32 %v3333, 7
    %v3335 = vsub.s32 %v3332, %v3334
    %v3336 = vrot.slane %v3308, %v3335
    %v3337 = vcombine.high %v3315, %v3315
    %v3338 = vcombine.high %v3322, %v3322
    %v3339 = vcombine.high %v3329, %v3329
    %v3340 = vcombine.high %v3336, %v3336
    %v3349 = vcombine.high %v1415, %v1415
    %v3351 = vunpack.c.l.s4 1966171168
    %v3352 = vunpack.c.0.s8 %v3351
    %v3353 = vlaneseq
    %v3354 = vshrl.u32 %v3353, 7
    %v3355 = vsub.s32 %v3352, %v3354
    %v3356 = vrot.slane %v1415, %v3355
    %v3358 = vunpack.c.l.s4 1966171168
    %v3359 = vunpack.c.0.s8 %v3358
    %v3360 = vlaneseq
    %v3361 = vshrl.u32 %v3360, 7
    %v3362 = vsub.s32 %v3359, %v3361
    %v3363 = vrot.slane %v3349, %v3362
    %v3364 = vcombine.high %v3356, %v3356
    %v3365 = vcombine.high %v3363, %v3363
    %v3367 = vunpack.c.l.s4 1966171168
    %v3368 = vunpack.c.0.s8 %v3367
    %v3369 = vlaneseq
    %v3370 = vshrl.u32 %v3369, 7
    %v3371 = vsub.s32 %v3368, %v3370
    %v3372 = vrot.slane %v3356, %v3371
    %v3374 = vunpack.c.l.s4 1966171168
    %v3375 = vunpack.c.0.s8 %v3374
    %v3376 = vlaneseq
    %v3377 = vshrl.u32 %v3376, 7
    %v3378 = vsub.s32 %v3375, %v3377
    %v3379 = vrot.slane %v3363, %v3378
    %v3381 = vunpack.c.l.s4 1966171168
    %v3382 = vunpack.c.0.s8 %v3381
    %v3383 = vlaneseq
    %v3384 = vshrl.u32 %v3383, 7
    %v3385 = vsub.s32 %v3382, %v3384
    %v3386 = vrot.slane %v3364, %v3385
    %v3388 = vunpack.c.l.s4 1966171168
    %v3389 = vunpack.c.0.s8 %v3388
    %v3390 = vlaneseq
    %v3391 = vshrl.u32 %v3390, 7
    %v3392 = vsub.s32 %v3389, %v3391
    %v3393 = vrot.slane %v3365, %v3392
    %v3394 = vcombine.high %v3372, %v3372
    %v3395 = vcombine.high %v3379, %v3379
    %v3396 = vcombine.high %v3386, %v3386
    %v3397 = vcombine.high %v3393, %v3393
    %v3398 = vcombine.high %v1884, %v1884
    %v3400 = vunpack.c.l.s4 1966171168
    %v3401 = vunpack.c.0.s8 %v3400
    %v3402 = vlaneseq
    %v3403 = vshrl.u32 %v3402, 7
    %v3404 = vsub.s32 %v3401, %v3403
    %v3405 = vrot.slane %v1884, %v3404
    %v3407 = vunpack.c.l.s4 1966171168
    %v3408 = vunpack.c.0.s8 %v3407
    %v3409 = vlaneseq
    %v3410 = vshrl.u32 %v3409, 7
    %v3411 = vsub.s32 %v3408, %v3410
    %v3412 = vrot.slane %v3398, %v3411
    %v3413 = vcombine.high %v3405, %v3405
    %v3414 = vcombine.high %v3412, %v3412
    %v3416 = vunpack.c.l.s4 1966171168
    %v3417 = vunpack.c.0.s8 %v3416
    %v3418 = vlaneseq
    %v3419 = vshrl.u32 %v3418, 7
    %v3420 = vsub.s32 %v3417, %v3419
    %v3421 = vrot.slane %v3405, %v3420
    %v3423 = vunpack.c.l.s4 1966171168
    %v3424 = vunpack.c.0.s8 %v3423
    %v3425 = vlaneseq
    %v3426 = vshrl.u32 %v3425, 7
    %v3427 = vsub.s32 %v3424, %v3426
    %v3428 = vrot.slane %v3412, %v3427
    %v3430 = vunpack.c.l.s4 1966171168
    %v3431 = vunpack.c.0.s8 %v3430
    %v3432 = vlaneseq
    %v3433 = vshrl.u32 %v3432, 7
    %v3434 = vsub.s32 %v3431, %v3433
    %v3435 = vrot.slane %v3413, %v3434
    %v3437 = vunpack.c.l.s4 1966171168
    %v3438 = vunpack.c.0.s8 %v3437
    %v3439 = vlaneseq
    %v3440 = vshrl.u32 %v3439, 7
    %v3441 = vsub.s32 %v3438, %v3440
    %v3442 = vrot.slane %v3414, %v3441
    %v3443 = vcombine.high %v3421, %v3421
    %v3444 = vcombine.high %v3428, %v3428
    %v3445 = vcombine.high %v3435, %v3435
    %v3446 = vcombine.high %v3442, %v3442
    %v3447 = vcombine.high %v2353, %v2353
    %v3449 = vunpack.c.l.s4 1966171168
    %v3450 = vunpack.c.0.s8 %v3449
    %v3451 = vlaneseq
    %v3452 = vshrl.u32 %v3451, 7
    %v3453 = vsub.s32 %v3450, %v3452
    %v3454 = vrot.slane %v2353, %v3453
    %v3456 = vunpack.c.l.s4 1966171168
    %v3457 = vunpack.c.0.s8 %v3456
    %v3458 = vlaneseq
    %v3459 = vshrl.u32 %v3458, 7
    %v3460 = vsub.s32 %v3457, %v3459
    %v3461 = vrot.slane %v3447, %v3460
    %v3462 = vcombine.high %v3454, %v3454
    %v3463 = vcombine.high %v3461, %v3461
    %v3465 = vunpack.c.l.s4 1966171168
    %v3466 = vunpack.c.0.s8 %v3465
    %v3467 = vlaneseq
    %v3468 = vshrl.u32 %v3467, 7
    %v3469 = vsub.s32 %v3466, %v3468
    %v3470 = vrot.slane %v3454, %v3469
    %v3472 = vunpack.c.l.s4 1966171168
    %v3473 = vunpack.c.0.s8 %v3472
    %v3474 = vlaneseq
    %v3475 = vshrl.u32 %v3474, 7
    %v3476 = vsub.s32 %v3473, %v3475
    %v3477 = vrot.slane %v3461, %v3476
    %v3479 = vunpack.c.l.s4 1966171168
    %v3480 = vunpack.c.0.s8 %v3479
    %v3481 = vlaneseq
    %v3482 = vshrl.u32 %v3481, 7
    %v3483 = vsub.s32 %v3480, %v3482
    %v3484 = vrot.slane %v3462, %v3483
    %v3486 = vunpack.c.l.s4 1966171168
    %v3487 = vunpack.c.0.s8 %v3486
    %v3488 = vlaneseq
    %v3489 = vshrl.u32 %v3488, 7
    %v3490 = vsub.s32 %v3487, %v3489
    %v3491 = vrot.slane %v3463, %v3490
    %v3492 = vcombine.high %v3470, %v3470
    %v3493 = vcombine.high %v3477, %v3477
    %v3494 = vcombine.high %v3484, %v3484
    %v3495 = vcombine.high %v3491, %v3491
    %v3496 = vcombine.high %v2822, %v2822
    %v3498 = vunpack.c.l.s4 1966171168
    %v3499 = vunpack.c.0.s8 %v3498
    %v3500 = vlaneseq
    %v3501 = vshrl.u32 %v3500, 7
    %v3502 = vsub.s32 %v3499, %v3501
    %v3503 = vrot.slane %v2822, %v3502
    %v3505 = vunpack.c.l.s4 1966171168
    %v3506 = vunpack.c.0.s8 %v3505
    %v3507 = vlaneseq
    %v3508 = vshrl.u32 %v3507, 7
    %v3509 = vsub.s32 %v3506, %v3508
    %v3510 = vrot.slane %v3496, %v3509
    %v3511 = vcombine.high %v3503, %v3503
    %v3512 = vcombine.high %v3510, %v3510
    %v3514 = vunpack.c.l.s4 1966171168
    %v3515 = vunpack.c.0.s8 %v3514
    %v3516 = vlaneseq
    %v3517 = vshrl.u32 %v3516, 7
    %v3518 = vsub.s32 %v3515, %v3517
    %v3519 = vrot.slane %v3503, %v3518
    %v3521 = vunpack.c.l.s4 1966171168
    %v3522 = vunpack.c.0.s8 %v3521
    %v3523 = vlaneseq
    %v3524 = vshrl.u32 %v3523, 7
    %v3525 = vsub.s32 %v3522, %v3524
    %v3526 = vrot.slane %v3510, %v3525
    %v3528 = vunpack.c.l.s4 1966171168
    %v3529 = vunpack.c.0.s8 %v3528
    %v3530 = vlaneseq
    %v3531 = vshrl.u32 %v3530, 7
    %v3532 = vsub.s32 %v3529, %v3531
    %v3533 = vrot.slane %v3511, %v3532
    %v3535 = vunpack.c.l.s4 1966171168
    %v3536 = vunpack.c.0.s8 %v3535
    %v3537 = vlaneseq
    %v3538 = vshrl.u32 %v3537, 7
    %v3539 = vsub.s32 %v3536, %v3538
    %v3540 = vrot.slane %v3512, %v3539
    %v3541 = vcombine.high %v3519, %v3519
    %v3542 = vcombine.high %v3526, %v3526
    %v3543 = vcombine.high %v3533, %v3533
    %v3544 = vcombine.high %v3540, %v3540
    %v3546 = vcombine.high %v3291, %v3291
    %v3548 = vunpack.c.l.s4 1966171168
    %v3549 = vunpack.c.0.s8 %v3548
    %v3550 = vlaneseq
    %v3551 = vshrl.u32 %v3550, 7
    %v3552 = vsub.s32 %v3549, %v3551
    %v3553 = vrot.slane %v3291, %v3552
    %v3555 = vunpack.c.l.s4 1966171168
    %v3556 = vunpack.c.0.s8 %v3555
    %v3557 = vlaneseq
    %v3558 = vshrl.u32 %v3557, 7
    %v3559 = vsub.s32 %v3556, %v3558
    %v3560 = vrot.slane %v3546, %v3559
    %v3561 = vcombine.high %v3553, %v3553
    %v3562 = vcombine.high %v3560, %v3560
    %v3564 = vunpack.c.l.s4 1966171168
    %v3565 = vunpack.c.0.s8 %v3564
    %v3566 = vlaneseq
    %v3567 = vshrl.u32 %v3566, 7
    %v3568 = vsub.s32 %v3565, %v3567
    %v3569 = vrot.slane %v3553, %v3568
    %v3571 = vunpack.c.l.s4 1966171168
    %v3572 = vunpack.c.0.s8 %v3571
    %v3573 = vlaneseq
    %v3574 = vshrl.u32 %v3573, 7
    %v3575 = vsub.s32 %v3572, %v3574
    %v3576 = vrot.slane %v3560, %v3575
    %v3578 = vunpack.c.l.s4 1966171168
    %v3579 = vunpack.c.0.s8 %v3578
    %v3580 = vlaneseq
    %v3581 = vshrl.u32 %v3580, 7
    %v3582 = vsub.s32 %v3579, %v3581
    %v3583 = vrot.slane %v3561, %v3582
    %v3585 = vunpack.c.l.s4 1966171168
    %v3586 = vunpack.c.0.s8 %v3585
    %v3587 = vlaneseq
    %v3588 = vshrl.u32 %v3587, 7
    %v3589 = vsub.s32 %v3586, %v3588
    %v3590 = vrot.slane %v3562, %v3589
    %v3591 = vcombine.high %v3569, %v3569
    %v3592 = vcombine.high %v3576, %v3576
    %v3593 = vcombine.high %v3583, %v3583
    %v3594 = vcombine.high %v3590, %v3590
    %v3595 = vlaneseq
    %v3596 = vshrl.u32 %v3595, 7
    %v3597 = vsub.s32 0, %v3596
    %v3598 = vrot.slane %v3372, %v3597
    %v3599 = vlaneseq
    %v3600 = vshrl.u32 %v3599, 7
    %v3601 = vsub.s32 0, %v3600
    %v3602 = vrot.slane %v3386, %v3601
    %v3603 = vlaneseq
    %v3604 = vshrl.u32 %v3603, 7
    %v3605 = vsub.s32 0, %v3604
    %v3606 = vrot.slane %v3394, %v3605
    %v3607 = vlaneseq
    %v3608 = vshrl.u32 %v3607, 7
    %v3609 = vsub.s32 0, %v3608
    %v3610 = vrot.slane %v3396, %v3609
    %v3611 = vlaneseq
    %v3612 = vshrl.u32 %v3611, 7
    %v3613 = vsub.s32 0, %v3612
    %v3614 = vrot.slane %v3379, %v3613
    %v3615 = vlaneseq
    %v3616 = vshrl.u32 %v3615, 7
    %v3617 = vsub.s32 0, %v3616
    %v3618 = vrot.slane %v3393, %v3617
    %v3619 = vlaneseq
    %v3620 = vshrl.u32 %v3619, 7
    %v3621 = vsub.s32 0, %v3620
    %v3622 = vrot.slane %v3395, %v3621
    %v3623 = vlaneseq
    %v3624 = vshrl.u32 %v3623, 7
    %v3625 = vsub.s32 0, %v3624
    %v3626 = vrot.slane %v3397, %v3625
    %v3635 = vlaneseq
    %v3636 = vshrl.u32 %v3635, 7
    %v3637 = vsub.s32 0, %v3636
    %v3638 = vrot.slane %v3421, %v3637
    %v3639 = vlaneseq
    %v3640 = vshrl.u32 %v3639, 7
    %v3641 = vsub.s32 0, %v3640
    %v3642 = vrot.slane %v3435, %v3641
    %v3643 = vlaneseq
    %v3644 = vshrl.u32 %v3643, 7
    %v3645 = vsub.s32 0, %v3644
    %v3646 = vrot.slane %v3443, %v3645
    %v3647 = vlaneseq
    %v3648 = vshrl.u32 %v3647, 7
    %v3649 = vsub.s32 0, %v3648
    %v3650 = vrot.slane %v3445, %v3649
    %v3651 = vlaneseq
    %v3652 = vshrl.u32 %v3651, 7
    %v3653 = vsub.s32 0, %v3652
    %v3654 = vrot.slane %v3428, %v3653
    %v3655 = vlaneseq
    %v3656 = vshrl.u32 %v3655, 7
    %v3657 = vsub.s32 0, %v3656
    %v3658 = vrot.slane %v3442, %v3657
    %v3659 = vlaneseq
    %v3660 = vshrl.u32 %v3659, 7
    %v3661 = vsub.s32 0, %v3660
    %v3662 = vrot.slane %v3444, %v3661
    %v3663 = vlaneseq
    %v3664 = vshrl.u32 %v3663, 7
    %v3665 = vsub.s32 0, %v3664
    %v3666 = vrot.slane %v3446, %v3665
    %v3675 = vlaneseq
    %v3676 = vshrl.u32 %v3675, 7
    %v3677 = vsub.s32 0, %v3676
    %v3678 = vrot.slane %v3470, %v3677
    %v3679 = vlaneseq
    %v3680 = vshrl.u32 %v3679, 7
    %v3681 = vsub.s32 0, %v3680
    %v3682 = vrot.slane %v3484, %v3681
    %v3683 = vlaneseq
    %v3684 = vshrl.u32 %v3683, 7
    %v3685 = vsub.s32 0, %v3684
    %v3686 = vrot.slane %v3492, %v3685
    %v3687 = vlaneseq
    %v3688 = vshrl.u32 %v3687, 7
    %v3689 = vsub.s32 0, %v3688
    %v3690 = vrot.slane %v3494, %v3689
    %v3691 = vlaneseq
    %v3692 = vshrl.u32 %v3691, 7
    %v3693 = vsub.s32 0, %v3692
    %v3694 = vrot.slane %v3477, %v3693
    %v3695 = vlaneseq
    %v3696 = vshrl.u32 %v3695, 7
    %v3697 = vsub.s32 0, %v3696
    %v3698 = vrot.slane %v3491, %v3697
    %v3699 = vlaneseq
    %v3700 = vshrl.u32 %v3699, 7
    %v3701 = vsub.s32 0, %v3700
    %v3702 = vrot.slane %v3493, %v3701
    %v3703 = vlaneseq
    %v3704 = vshrl.u32 %v3703, 7
    %v3705 = vsub.s32 0, %v3704
    %v3706 = vrot.slane %v3495, %v3705
    %v3715 = vlaneseq
    %v3716 = vshrl.u32 %v3715, 7
    %v3717 = vsub.s32 0, %v3716
    %v3718 = vrot.slane %v3519, %v3717
    %v3719 = vlaneseq
    %v3720 = vshrl.u32 %v3719, 7
    %v3721 = vsub.s32 0, %v3720
    %v3722 = vrot.slane %v3533, %v3721
    %v3723 = vlaneseq
    %v3724 = vshrl.u32 %v3723, 7
    %v3725 = vsub.s32 0, %v3724
    %v3726 = vrot.slane %v3541, %v3725
    %v3727 = vlaneseq
    %v3728 = vshrl.u32 %v3727, 7
    %v3729 = vsub.s32 0, %v3728
    %v3730 = vrot.slane %v3543, %v3729
    %v3731 = vlaneseq
    %v3732 = vshrl.u32 %v3731, 7
    %v3733 = vsub.s32 0, %v3732
    %v3734 = vrot.slane %v3526, %v3733
    %v3735 = vlaneseq
    %v3736 = vshrl.u32 %v3735, 7
    %v3737 = vsub.s32 0, %v3736
    %v3738 = vrot.slane %v3540, %v3737
    %v3739 = vlaneseq
    %v3740 = vshrl.u32 %v3739, 7
    %v3741 = vsub.s32 0, %v3740
    %v3742 = vrot.slane %v3542, %v3741
    %v3743 = vlaneseq
    %v3744 = vshrl.u32 %v3743, 7
    %v3745 = vsub.s32 0, %v3744
    %v3746 = vrot.slane %v3544, %v3745
    %v3755 = vlaneseq
    %v3756 = vshrl.u32 %v3755, 7
    %v3757 = vsub.s32 0, %v3756
    %v3758 = vrot.slane %v3569, %v3757
    %v3759 = vlaneseq
    %v3760 = vshrl.u32 %v3759, 7
    %v3761 = vsub.s32 0, %v3760
    %v3762 = vrot.slane %v3583, %v3761
    %v3763 = vlaneseq
    %v3764 = vshrl.u32 %v3763, 7
    %v3765 = vsub.s32 0, %v3764
    %v3766 = vrot.slane %v3591, %v3765
    %v3767 = vlaneseq
    %v3768 = vshrl.u32 %v3767, 7
    %v3769 = vsub.s32 0, %v3768
    %v3770 = vrot.slane %v3593, %v3769
    %v3771 = vlaneseq
    %v3772 = vshrl.u32 %v3771, 7
    %v3773 = vsub.s32 0, %v3772
    %v3774 = vrot.slane %v3576, %v3773
    %v3775 = vlaneseq
    %v3776 = vshrl.u32 %v3775, 7
    %v3777 = vsub.s32 0, %v3776
    %v3778 = vrot.slane %v3590, %v3777
    %v3779 = vlaneseq
    %v3780 = vshrl.u32 %v3779, 7
    %v3781 = vsub.s32 0, %v3780
    %v3782 = vrot.slane %v3592, %v3781
    %v3783 = vlaneseq
    %v3784 = vshrl.u32 %v3783, 7
    %v3785 = vsub.s32 0, %v3784
    %v3786 = vrot.slane %v3594, %v3785
    %vm3795 = vcmask 1040384
    %v3796 = vsel %vm3795, %v3315, %v3598
    %v3797 = vsel %vm3795, %v3329, %v3602
    %v3798 = vsel %vm3795, %v3337, %v3606
    %v3799 = vsel %vm3795, %v3339, %v3610
    %v3800 = vsel %vm3795, %v3322, %v3614
    %v3801 = vsel %vm3795, %v3336, %v3618
    %v3802 = vsel %vm3795, %v3338, %v3622
    %v3803 = vsel %vm3795, %v3340, %v3626
    %vm3804 = vcmask 1041408
    %v3805 = vsel %vm3804, %v3796, %v3638
    %v3806 = vsel %vm3804, %v3797, %v3642
    %v3807 = vsel %vm3804, %v3798, %v3646
    %v3808 = vsel %vm3804, %v3799, %v3650
    %v3809 = vsel %vm3804, %v3800, %v3654
    %v3810 = vsel %vm3804, %v3801, %v3658
    %v3811 = vsel %vm3804, %v3802, %v3662
    %v3812 = vsel %vm3804, %v3803, %v3666
    %vm3813 = vcmask 1042432
    %v3814 = vsel %vm3813, %v3805, %v3678
    %v3815 = vsel %vm3813, %v3806, %v3682
    %v3816 = vsel %vm3813, %v3807, %v3686
    %v3817 = vsel %vm3813, %v3808, %v3690
    %v3818 = vsel %vm3813, %v3809, %v3694
    %v3819 = vsel %vm3813, %v3810, %v3698
    %v3820 = vsel %vm3813, %v3811, %v3702
    %v3821 = vsel %vm3813, %v3812, %v3706
    %vm3822 = vcmask 1043456
    %v3823 = vsel %vm3822, %v3814, %v3718
    %v3824 = vsel %vm3822, %v3815, %v3722
    %v3825 = vsel %vm3822, %v3816, %v3726
    %v3826 = vsel %vm3822, %v3817, %v3730
    %v3827 = vsel %vm3822, %v3818, %v3734
    %v3828 = vsel %vm3822, %v3819, %v3738
    %v3829 = vsel %vm3822, %v3820, %v3742
    %v3830 = vsel %vm3822, %v3821, %v3746
    %vm3831 = vcmask 1044480
    %v3832 = vsel %vm3831, %v3823, %v3758
    %v3833 = vsel %vm3831, %v3824, %v3762
    %v3834 = vsel %vm3831, %v3825, %v3766
    %v3835 = vsel %vm3831, %v3826, %v3770
    %v3836 = vsel %vm3831, %v3827, %v3774
    %v3837 = vsel %vm3831, %v3828, %v3778
    %v3838 = vsel %vm3831, %v3829, %v3782
    %v3839 = vsel %vm3831, %v3830, %v3786
    %vm3840 = vcmp.gt.s32.totalorder %v41, 1
    %v3841 = vsel %vm3840, %v41, 1
    %v3842 = vld [vmem:[%s5] sm:$0xff]
    %v3843 = vld [vmem:[%s6] sm:$0xff]
    %v3844 = vld [vmem:[%s7] sm:$0x1]
    %v3845 = vsel %vm283, %v3291, 0
    %3847 = vmatprep.subr.mxu0 0.0
    %3848 = vmatpush1.msra.mxu0 0.0
    %3849 = vmatprep.subr.mxu0 0.0
    %3850 = vmatpush1.msra.mxu0 0.0
    %3851 = vmatprep.subr.mxu0 0.0
    %3852 = vmatpush1.msra.mxu0 0.0
    %3853 = vmatprep.subr.mxu0 0.0
    %3854 = vmatpush1.msra.mxu0 0.0
    %3855 = vmatprep.subr.mxu0 0.0
    %3856 = vmatpush1.msra.mxu0 0.0
    %3857 = vmatprep.subr.mxu0 0.0
    %3858 = vmatpush1.msra.mxu0 0.0
    %3859 = vmatprep.subr.mxu0 0.0
    %3860 = vmatpush1.msra.mxu0 0.0
    %3861 = vmatprep.subr.mxu0 0.0
    %3862 = vmatpush1.msra.mxu0 0.0
    %3863 = vmatprep.subr.mxu0 0.0
    %3864 = vmatpush1.msra.mxu0 0.0
    %3865 = vmatprep.subr.mxu0 0.0
    %3866 = vmatpush1.msra.mxu0 0.0
    %3867 = vmatprep.subr.mxu0 0.0
    %3868 = vmatpush1.msra.mxu0 0.0
    %3869 = vmatprep.subr.mxu0 0.0
    %3870 = vmatpush1.msra.mxu0 0.0
    %3871 = vmatprep.subr.mxu0 0.0
    %3872 = vmatpush1.msra.mxu0 0.0
    %3873 = vmatprep.subr.mxu0 0.0
    %3874 = vmatpush1.msra.mxu0 0.0
    %3875 = vmatprep.subr.mxu0 0.0
    %3876 = vmatpush1.msra.mxu0 0.0
    %3877 = vmatprep.subr.mxu0 0.0
    %3878 = vmatpush1.msra.mxu0 %v3843
    %3879 = vmatprep.subr.mxu0 0.0
    %3880 = vmatpush2.msra.mxu0 0.0
    %3881 = vmatprep.subr.mxu0 0.0
    %3882 = vmatpush2.msra.mxu0 0.0
    %3883 = vmatprep.subr.mxu0 0.0
    %3884 = vmatpush2.msra.mxu0 0.0
    %3885 = vmatprep.subr.mxu0 0.0
    %3886 = vmatpush2.msra.mxu0 0.0
    %3887 = vmatprep.subr.mxu0 0.0
    %3888 = vmatpush2.msra.mxu0 0.0
    %3889 = vmatprep.subr.mxu0 0.0
    %3890 = vmatpush2.msra.mxu0 0.0
    %3891 = vmatprep.subr.mxu0 0.0
    %3892 = vmatpush2.msra.mxu0 0.0
    %3893 = vmatprep.subr.mxu0 0.0
    %3894 = vmatpush2.msra.mxu0 0.0
    %3895 = vmatprep.subr.mxu0 0.0
    %3896 = vmatpush2.msra.mxu0 0.0
    %3897 = vmatprep.subr.mxu0 0.0
    %3898 = vmatpush2.msra.mxu0 0.0
    %3899 = vmatprep.subr.mxu0 0.0
    %3900 = vmatpush2.msra.mxu0 0.0
    %3901 = vmatprep.subr.mxu0 0.0
    %3902 = vmatpush2.msra.mxu0 0.0
    %3903 = vmatprep.subr.mxu0 0.0
    %3904 = vmatpush2.msra.mxu0 0.0
    %3905 = vmatprep.subr.mxu0 0.0
    %3906 = vmatpush2.msra.mxu0 0.0
    %3907 = vmatprep.subr.mxu0 0.0
    %3908 = vmatpush2.msra.mxu0 0.0
    %3909 = vmatprep.subr.mxu0 0.0
    %3910 = vmatpush2.msra.mxu0 0.0
    %3911 = vmatprep.mubr.f32.mxu0 0.0
    %3912 = vmatmul.mubr.f32.gmra.mxu0 %v3845
    %v3913 = vpop.f32.mrf.mxu0
    %v3914 = vadd.f32 0.0, %v3913
    %v3915 = vpop.f32.mrf.mxu0
    %3916 = vdwg.mxu0
    %v3925 = vcombine.high %v3832, %v3832
    %v3927 = vunpack.c.l.s4 1983009808
    %v3928 = vunpack.c.0.s8 %v3927
    %v3929 = vlaneseq
    %v3930 = vshrl.u32 %v3929, 7
    %v3931 = vsub.s32 %v3928, %v3930
    %v3932 = vrot.slane %v3832, %v3931
    %v3934 = vunpack.c.l.s4 1983009808
    %v3935 = vunpack.c.0.s8 %v3934
    %v3936 = vlaneseq
    %v3937 = vshrl.u32 %v3936, 7
    %v3938 = vsub.s32 %v3935, %v3937
    %v3939 = vrot.slane %v3925, %v3938
    %v3940 = vcombine.high %v3932, %v3932
    %v3941 = vcombine.high %v3833, %v3833
    %v3943 = vunpack.c.l.s4 1983009808
    %v3944 = vunpack.c.0.s8 %v3943
    %v3945 = vlaneseq
    %v3946 = vshrl.u32 %v3945, 7
    %v3947 = vsub.s32 %v3944, %v3946
    %v3948 = vrot.slane %v3833, %v3947
    %v3950 = vunpack.c.l.s4 1983009808
    %v3951 = vunpack.c.0.s8 %v3950
    %v3952 = vlaneseq
    %v3953 = vshrl.u32 %v3952, 7
    %v3954 = vsub.s32 %v3951, %v3953
    %v3955 = vrot.slane %v3941, %v3954
    %v3956 = vcombine.high %v3948, %v3948
    %v3957 = vcombine.high %v3834, %v3834
    %v3959 = vunpack.c.l.s4 1983009808
    %v3960 = vunpack.c.0.s8 %v3959
    %v3961 = vlaneseq
    %v3962 = vshrl.u32 %v3961, 7
    %v3963 = vsub.s32 %v3960, %v3962
    %v3964 = vrot.slane %v3834, %v3963
    %v3966 = vunpack.c.l.s4 1983009808
    %v3967 = vunpack.c.0.s8 %v3966
    %v3968 = vlaneseq
    %v3969 = vshrl.u32 %v3968, 7
    %v3970 = vsub.s32 %v3967, %v3969
    %v3971 = vrot.slane %v3957, %v3970
    %v3972 = vcombine.high %v3964, %v3964
    %v3973 = vcombine.high %v3835, %v3835
    %v3975 = vunpack.c.l.s4 1983009808
    %v3976 = vunpack.c.0.s8 %v3975
    %v3977 = vlaneseq
    %v3978 = vshrl.u32 %v3977, 7
    %v3979 = vsub.s32 %v3976, %v3978
    %v3980 = vrot.slane %v3835, %v3979
    %v3982 = vunpack.c.l.s4 1983009808
    %v3983 = vunpack.c.0.s8 %v3982
    %v3984 = vlaneseq
    %v3985 = vshrl.u32 %v3984, 7
    %v3986 = vsub.s32 %v3983, %v3985
    %v3987 = vrot.slane %v3973, %v3986
    %v3988 = vcombine.high %v3980, %v3980
    %v3989 = vcombine.high %v3836, %v3836
    %v3991 = vunpack.c.l.s4 1983009808
    %v3992 = vunpack.c.0.s8 %v3991
    %v3993 = vlaneseq
    %v3994 = vshrl.u32 %v3993, 7
    %v3995 = vsub.s32 %v3992, %v3994
    %v3996 = vrot.slane %v3836, %v3995
    %v3998 = vunpack.c.l.s4 1983009808
    %v3999 = vunpack.c.0.s8 %v3998
    %v4000 = vlaneseq
    %v4001 = vshrl.u32 %v4000, 7
    %v4002 = vsub.s32 %v3999, %v4001
    %v4003 = vrot.slane %v3989, %v4002
    %v4004 = vcombine.high %v3996, %v3996
    %v4005 = vcombine.high %v3837, %v3837
    %v4007 = vunpack.c.l.s4 1983009808
    %v4008 = vunpack.c.0.s8 %v4007
    %v4009 = vlaneseq
    %v4010 = vshrl.u32 %v4009, 7
    %v4011 = vsub.s32 %v4008, %v4010
    %v4012 = vrot.slane %v3837, %v4011
    %v4014 = vunpack.c.l.s4 1983009808
    %v4015 = vunpack.c.0.s8 %v4014
    %v4016 = vlaneseq
    %v4017 = vshrl.u32 %v4016, 7
    %v4018 = vsub.s32 %v4015, %v4017
    %v4019 = vrot.slane %v4005, %v4018
    %v4020 = vcombine.high %v4012, %v4012
    %v4021 = vcombine.high %v3838, %v3838
    %v4023 = vunpack.c.l.s4 1983009808
    %v4024 = vunpack.c.0.s8 %v4023
    %v4025 = vlaneseq
    %v4026 = vshrl.u32 %v4025, 7
    %v4027 = vsub.s32 %v4024, %v4026
    %v4028 = vrot.slane %v3838, %v4027
    %v4030 = vunpack.c.l.s4 1983009808
    %v4031 = vunpack.c.0.s8 %v4030
    %v4032 = vlaneseq
    %v4033 = vshrl.u32 %v4032, 7
    %v4034 = vsub.s32 %v4031, %v4033
    %v4035 = vrot.slane %v4021, %v4034
    %v4036 = vcombine.high %v4028, %v4028
    %v4037 = vcombine.high %v3839, %v3839
    %v4039 = vunpack.c.l.s4 1983009808
    %v4040 = vunpack.c.0.s8 %v4039
    %v4041 = vlaneseq
    %v4042 = vshrl.u32 %v4041, 7
    %v4043 = vsub.s32 %v4040, %v4042
    %v4044 = vrot.slane %v3839, %v4043
    %v4046 = vunpack.c.l.s4 1983009808
    %v4047 = vunpack.c.0.s8 %v4046
    %v4048 = vlaneseq
    %v4049 = vshrl.u32 %v4048, 7
    %v4050 = vsub.s32 %v4047, %v4049
    %v4051 = vrot.slane %v4037, %v4050
    %v4052 = vcombine.high %v4044, %v4044
    %v4053 = vcombine.low %v3932, %v3940
    %v4054 = vcombine.low %v3939, %v3948
    %v4056 = vunpack.c.l.s4 1983009808
    %v4057 = vunpack.c.0.s8 %v4056
    %v4058 = vlaneseq
    %v4059 = vshrl.u32 %v4058, 7
    %v4060 = vsub.s32 %v4057, %v4059
    %v4061 = vrot.slane %v4053, %v4060
    %v4063 = vunpack.c.l.s4 1983009808
    %v4064 = vunpack.c.0.s8 %v4063
    %v4065 = vlaneseq
    %v4066 = vshrl.u32 %v4065, 7
    %v4067 = vsub.s32 %v4064, %v4066
    %v4068 = vrot.slane %v4054, %v4067
    %v4069 = vcombine.low %v4061, %v4068
    %v4070 = vcombine.low %v3956, %v3955
    %v4071 = vcombine.low %v3964, %v3972
    %v4073 = vunpack.c.l.s4 1983009808
    %v4074 = vunpack.c.0.s8 %v4073
    %v4075 = vlaneseq
    %v4076 = vshrl.u32 %v4075, 7
    %v4077 = vsub.s32 %v4074, %v4076
    %v4078 = vrot.slane %v4070, %v4077
    %v4080 = vunpack.c.l.s4 1983009808
    %v4081 = vunpack.c.0.s8 %v4080
    %v4082 = vlaneseq
    %v4083 = vshrl.u32 %v4082, 7
    %v4084 = vsub.s32 %v4081, %v4083
    %v4085 = vrot.slane %v4071, %v4084
    %v4086 = vcombine.low %v4078, %v4085
    %v4087 = vcombine.low %v3971, %v3980
    %v4088 = vcombine.low %v3988, %v3987
    %v4090 = vunpack.c.l.s4 1983009808
    %v4091 = vunpack.c.0.s8 %v4090
    %v4092 = vlaneseq
    %v4093 = vshrl.u32 %v4092, 7
    %v4094 = vsub.s32 %v4091, %v4093
    %v4095 = vrot.slane %v4087, %v4094
    %v4097 = vunpack.c.l.s4 1983009808
    %v4098 = vunpack.c.0.s8 %v4097
    %v4099 = vlaneseq
    %v4100 = vshrl.u32 %v4099, 7
    %v4101 = vsub.s32 %v4098, %v4100
    %v4102 = vrot.slane %v4088, %v4101
    %v4103 = vcombine.low %v4095, %v4102
    %v4104 = vcombine.low %v3996, %v4004
    %v4105 = vcombine.low %v4003, %v4012
    %v4107 = vunpack.c.l.s4 1983009808
    %v4108 = vunpack.c.0.s8 %v4107
    %v4109 = vlaneseq
    %v4110 = vshrl.u32 %v4109, 7
    %v4111 = vsub.s32 %v4108, %v4110
    %v4112 = vrot.slane %v4104, %v4111
    %v4114 = vunpack.c.l.s4 1983009808
    %v4115 = vunpack.c.0.s8 %v4114
    %v4116 = vlaneseq
    %v4117 = vshrl.u32 %v4116, 7
    %v4118 = vsub.s32 %v4115, %v4117
    %v4119 = vrot.slane %v4105, %v4118
    %v4120 = vcombine.low %v4112, %v4119
    %v4121 = vcombine.low %v4020, %v4019
    %v4122 = vcombine.low %v4028, %v4036
    %v4124 = vunpack.c.l.s4 1983009808
    %v4125 = vunpack.c.0.s8 %v4124
    %v4126 = vlaneseq
    %v4127 = vshrl.u32 %v4126, 7
    %v4128 = vsub.s32 %v4125, %v4127
    %v4129 = vrot.slane %v4121, %v4128
    %v4131 = vunpack.c.l.s4 1983009808
    %v4132 = vunpack.c.0.s8 %v4131
    %v4133 = vlaneseq
    %v4134 = vshrl.u32 %v4133, 7
    %v4135 = vsub.s32 %v4132, %v4134
    %v4136 = vrot.slane %v4122, %v4135
    %v4137 = vcombine.low %v4129, %v4136
    %v4138 = vcombine.low %v4035, %v4044
    %v4139 = vcombine.low %v4052, %v4051
    %v4141 = vunpack.c.l.s4 1983009808
    %v4142 = vunpack.c.0.s8 %v4141
    %v4143 = vlaneseq
    %v4144 = vshrl.u32 %v4143, 7
    %v4145 = vsub.s32 %v4142, %v4144
    %v4146 = vrot.slane %v4138, %v4145
    %v4148 = vunpack.c.l.s4 1983009808
    %v4149 = vunpack.c.0.s8 %v4148
    %v4150 = vlaneseq
    %v4151 = vshrl.u32 %v4150, 7
    %v4152 = vsub.s32 %v4149, %v4151
    %v4153 = vrot.slane %v4139, %v4152
    %v4154 = vcombine.low %v4146, %v4153
    %v4155 = vsel %vm283, %v4069, 0
    %v4157 = vsel %vm283, %v4086, 0
    %v4159 = vsel %vm283, %v4103, 0
    %v4161 = vsel %vm283, %v4120, 0
    %v4163 = vsel %vm283, %v4137, 0
    %v4165 = vsel %vm283, %v4154, 0
    %4167 = vmatprep.subr.mxu0 0.0
    %4168 = vmatpush1.msra.mxu0 0.0
    %4169 = vmatprep.subr.mxu0 0.0
    %4170 = vmatpush1.msra.mxu0 0.0
    %4171 = vmatprep.subr.mxu0 0.0
    %4172 = vmatpush1.msra.mxu0 0.0
    %4173 = vmatprep.subr.mxu0 0.0
    %4174 = vmatpush1.msra.mxu0 0.0
    %4175 = vmatprep.subr.mxu0 0.0
    %4176 = vmatpush1.msra.mxu0 0.0
    %4177 = vmatprep.subr.mxu0 0.0
    %4178 = vmatpush1.msra.mxu0 0.0
    %4179 = vmatprep.subr.mxu0 0.0
    %4180 = vmatpush1.msra.mxu0 0.0
    %4181 = vmatprep.subr.mxu0 0.0
    %4182 = vmatpush1.msra.mxu0 0.0
    %4183 = vmatprep.subr.mxu0 0.0
    %4184 = vmatpush1.msra.mxu0 0.0
    %4185 = vmatprep.subr.mxu0 0.0
    %4186 = vmatpush1.msra.mxu0 0.0
    %4187 = vmatprep.subr.mxu0 0.0
    %4188 = vmatpush1.msra.mxu0 0.0
    %4189 = vmatprep.subr.mxu0 0.0
    %4190 = vmatpush1.msra.mxu0 0.0
    %4191 = vmatprep.subr.mxu0 0.0
    %4192 = vmatpush1.msra.mxu0 0.0
    %4193 = vmatprep.subr.mxu0 0.0
    %4194 = vmatpush1.msra.mxu0 0.0
    %4195 = vmatprep.subr.mxu0 0.0
    %4196 = vmatpush1.msra.mxu0 0.0
    %4197 = vmatprep.subr.mxu0 0.0
    %4198 = vmatpush1.msra.mxu0 %v3842
    %4199 = vmatprep.subr.mxu0 0.0
    %4200 = vmatpush2.msra.mxu0 0.0
    %4201 = vmatprep.subr.mxu0 0.0
    %4202 = vmatpush2.msra.mxu0 0.0
    %4203 = vmatprep.subr.mxu0 0.0
    %4204 = vmatpush2.msra.mxu0 0.0
    %4205 = vmatprep.subr.mxu0 0.0
    %4206 = vmatpush2.msra.mxu0 0.0
    %4207 = vmatprep.subr.mxu0 0.0
    %4208 = vmatpush2.msra.mxu0 0.0
    %4209 = vmatprep.subr.mxu0 0.0
    %4210 = vmatpush2.msra.mxu0 0.0
    %4211 = vmatprep.subr.mxu0 0.0
    %4212 = vmatpush2.msra.mxu0 0.0
    %4213 = vmatprep.subr.mxu0 0.0
    %4214 = vmatpush2.msra.mxu0 0.0
    %4215 = vmatprep.subr.mxu0 0.0
    %4216 = vmatpush2.msra.mxu0 0.0
    %4217 = vmatprep.subr.mxu0 0.0
    %4218 = vmatpush2.msra.mxu0 0.0
    %4219 = vmatprep.subr.mxu0 0.0
    %4220 = vmatpush2.msra.mxu0 0.0
    %4221 = vmatprep.subr.mxu0 0.0
    %4222 = vmatpush2.msra.mxu0 0.0
    %4223 = vmatprep.subr.mxu0 0.0
    %4224 = vmatpush2.msra.mxu0 0.0
    %4225 = vmatprep.subr.mxu0 0.0
    %4226 = vmatpush2.msra.mxu0 0.0
    %4227 = vmatprep.subr.mxu0 0.0
    %4228 = vmatpush2.msra.mxu0 0.0
    %4229 = vmatprep.subr.mxu0 0.0
    %4230 = vmatpush2.msra.mxu0 0.0
    %4231 = vmatprep.mubr.f32.mxu0 0.0
    %4232 = vmatmul.mubr.f32.gmra.mxu0 %v4155
    %v4233 = vpop.f32.mrf.mxu0
    %v4234 = vadd.f32 0.0, %v4233
    %v4235 = vpop.f32.mrf.mxu0
    %4236 = vmatprep.mubr.f32.mxu0 0.0
    %4237 = vmatmul.mubr.f32.gmra.mxu0 %v4157
    %v4238 = vpop.f32.mrf.mxu0
    %v4239 = vadd.f32 0.0, %v4238
    %v4240 = vpop.f32.mrf.mxu0
    %4241 = vmatprep.mubr.f32.mxu0 0.0
    %4242 = vmatmul.mubr.f32.gmra.mxu0 %v4159
    %v4243 = vpop.f32.mrf.mxu0
    %v4244 = vadd.f32 0.0, %v4243
    %v4245 = vpop.f32.mrf.mxu0
    %4246 = vmatprep.mubr.f32.mxu0 0.0
    %4247 = vmatmul.mubr.f32.gmra.mxu0 %v4161
    %v4248 = vpop.f32.mrf.mxu0
    %v4249 = vadd.f32 0.0, %v4248
    %v4250 = vpop.f32.mrf.mxu0
    %4251 = vmatprep.mubr.f32.mxu0 0.0
    %4252 = vmatmul.mubr.f32.gmra.mxu0 %v4163
    %v4253 = vpop.f32.mrf.mxu0
    %v4254 = vadd.f32 0.0, %v4253
    %v4255 = vpop.f32.mrf.mxu0
    %4256 = vmatprep.mubr.f32.mxu0 0.0
    %4257 = vmatmul.mubr.f32.gmra.mxu0 %v4165
    %v4258 = vpop.f32.mrf.mxu0
    %v4259 = vadd.f32 0.0, %v4258
    %v4260 = vpop.f32.mrf.mxu0
    %4261 = vdwg.mxu0
    %v4268 = vcombine.high %v4234, %v4234
    %v4270 = vunpack.c.l.s4 1983009808
    %v4271 = vunpack.c.0.s8 %v4270
    %v4272 = vlaneseq
    %v4273 = vshrl.u32 %v4272, 7
    %v4274 = vsub.s32 %v4271, %v4273
    %v4275 = vrot.slane %v4234, %v4274
    %v4277 = vunpack.c.l.s4 1983009808
    %v4278 = vunpack.c.0.s8 %v4277
    %v4279 = vlaneseq
    %v4280 = vshrl.u32 %v4279, 7
    %v4281 = vsub.s32 %v4278, %v4280
    %v4282 = vrot.slane %v4268, %v4281
    %v4283 = vcombine.high %v4275, %v4275
    %v4284 = vcombine.high %v4282, %v4282
    %v4285 = vcombine.high %v4239, %v4239
    %v4287 = vunpack.c.l.s4 1983009808
    %v4288 = vunpack.c.0.s8 %v4287
    %v4289 = vlaneseq
    %v4290 = vshrl.u32 %v4289, 7
    %v4291 = vsub.s32 %v4288, %v4290
    %v4292 = vrot.slane %v4239, %v4291
    %v4294 = vunpack.c.l.s4 1983009808
    %v4295 = vunpack.c.0.s8 %v4294
    %v4296 = vlaneseq
    %v4297 = vshrl.u32 %v4296, 7
    %v4298 = vsub.s32 %v4295, %v4297
    %v4299 = vrot.slane %v4285, %v4298
    %v4300 = vcombine.high %v4292, %v4292
    %v4301 = vcombine.high %v4299, %v4299
    %v4302 = vcombine.high %v4244, %v4244
    %v4304 = vunpack.c.l.s4 1983009808
    %v4305 = vunpack.c.0.s8 %v4304
    %v4306 = vlaneseq
    %v4307 = vshrl.u32 %v4306, 7
    %v4308 = vsub.s32 %v4305, %v4307
    %v4309 = vrot.slane %v4244, %v4308
    %v4311 = vunpack.c.l.s4 1983009808
    %v4312 = vunpack.c.0.s8 %v4311
    %v4313 = vlaneseq
    %v4314 = vshrl.u32 %v4313, 7
    %v4315 = vsub.s32 %v4312, %v4314
    %v4316 = vrot.slane %v4302, %v4315
    %v4317 = vcombine.high %v4309, %v4309
    %v4318 = vcombine.high %v4316, %v4316
    %v4319 = vcombine.high %v4249, %v4249
    %v4321 = vunpack.c.l.s4 1983009808
    %v4322 = vunpack.c.0.s8 %v4321
    %v4323 = vlaneseq
    %v4324 = vshrl.u32 %v4323, 7
    %v4325 = vsub.s32 %v4322, %v4324
    %v4326 = vrot.slane %v4249, %v4325
    %v4328 = vunpack.c.l.s4 1983009808
    %v4329 = vunpack.c.0.s8 %v4328
    %v4330 = vlaneseq
    %v4331 = vshrl.u32 %v4330, 7
    %v4332 = vsub.s32 %v4329, %v4331
    %v4333 = vrot.slane %v4319, %v4332
    %v4334 = vcombine.high %v4326, %v4326
    %v4335 = vcombine.high %v4333, %v4333
    %v4336 = vcombine.high %v4254, %v4254
    %v4338 = vunpack.c.l.s4 1983009808
    %v4339 = vunpack.c.0.s8 %v4338
    %v4340 = vlaneseq
    %v4341 = vshrl.u32 %v4340, 7
    %v4342 = vsub.s32 %v4339, %v4341
    %v4343 = vrot.slane %v4254, %v4342
    %v4345 = vunpack.c.l.s4 1983009808
    %v4346 = vunpack.c.0.s8 %v4345
    %v4347 = vlaneseq
    %v4348 = vshrl.u32 %v4347, 7
    %v4349 = vsub.s32 %v4346, %v4348
    %v4350 = vrot.slane %v4336, %v4349
    %v4351 = vcombine.high %v4343, %v4343
    %v4352 = vcombine.high %v4350, %v4350
    %v4353 = vcombine.high %v4259, %v4259
    %v4355 = vunpack.c.l.s4 1983009808
    %v4356 = vunpack.c.0.s8 %v4355
    %v4357 = vlaneseq
    %v4358 = vshrl.u32 %v4357, 7
    %v4359 = vsub.s32 %v4356, %v4358
    %v4360 = vrot.slane %v4259, %v4359
    %v4362 = vunpack.c.l.s4 1983009808
    %v4363 = vunpack.c.0.s8 %v4362
    %v4364 = vlaneseq
    %v4365 = vshrl.u32 %v4364, 7
    %v4366 = vsub.s32 %v4363, %v4365
    %v4367 = vrot.slane %v4353, %v4366
    %v4368 = vcombine.high %v4360, %v4360
    %v4369 = vcombine.high %v4367, %v4367
    %v4395 = vcombine.high %v3914, %v3914
    %v4397 = vunpack.c.l.s4 1966171168
    %v4398 = vunpack.c.0.s8 %v4397
    %v4399 = vlaneseq
    %v4400 = vshrl.u32 %v4399, 7
    %v4401 = vsub.s32 %v4398, %v4400
    %v4402 = vrot.slane %v3914, %v4401
    %v4404 = vunpack.c.l.s4 1966171168
    %v4405 = vunpack.c.0.s8 %v4404
    %v4406 = vlaneseq
    %v4407 = vshrl.u32 %v4406, 7
    %v4408 = vsub.s32 %v4405, %v4407
    %v4409 = vrot.slane %v4395, %v4408
    %v4410 = vcombine.high %v4402, %v4402
    %v4411 = vcombine.high %v4409, %v4409
    %v4413 = vunpack.c.l.s4 1966171168
    %v4414 = vunpack.c.0.s8 %v4413
    %v4415 = vlaneseq
    %v4416 = vshrl.u32 %v4415, 7
    %v4417 = vsub.s32 %v4414, %v4416
    %v4418 = vrot.slane %v4402, %v4417
    %v4420 = vunpack.c.l.s4 1966171168
    %v4421 = vunpack.c.0.s8 %v4420
    %v4422 = vlaneseq
    %v4423 = vshrl.u32 %v4422, 7
    %v4424 = vsub.s32 %v4421, %v4423
    %v4425 = vrot.slane %v4409, %v4424
    %v4427 = vunpack.c.l.s4 1966171168
    %v4428 = vunpack.c.0.s8 %v4427
    %v4429 = vlaneseq
    %v4430 = vshrl.u32 %v4429, 7
    %v4431 = vsub.s32 %v4428, %v4430
    %v4432 = vrot.slane %v4410, %v4431
    %v4434 = vunpack.c.l.s4 1966171168
    %v4435 = vunpack.c.0.s8 %v4434
    %v4436 = vlaneseq
    %v4437 = vshrl.u32 %v4436, 7
    %v4438 = vsub.s32 %v4435, %v4437
    %v4439 = vrot.slane %v4411, %v4438
    %v4440 = vcombine.high %v4418, %v4418
    %v4441 = vcombine.high %v4425, %v4425
    %v4442 = vcombine.high %v4432, %v4432
    %v4443 = vcombine.high %v4439, %v4439
    %v4444 = vlaneseq
    %v4445 = vshrl.u32 %v4444, 7
    %v4446 = vsub.s32 0, %v4445
    %v4447 = vrot.slane %v4418, %v4446
    %v4448 = vlaneseq
    %v4449 = vshrl.u32 %v4448, 7
    %v4450 = vsub.s32 0, %v4449
    %v4451 = vrot.slane %v4432, %v4450
    %v4452 = vlaneseq
    %v4453 = vshrl.u32 %v4452, 7
    %v4454 = vsub.s32 0, %v4453
    %v4455 = vrot.slane %v4440, %v4454
    %v4456 = vlaneseq
    %v4457 = vshrl.u32 %v4456, 7
    %v4458 = vsub.s32 0, %v4457
    %v4459 = vrot.slane %v4442, %v4458
    %v4460 = vlaneseq
    %v4461 = vshrl.u32 %v4460, 7
    %v4462 = vsub.s32 0, %v4461
    %v4463 = vrot.slane %v4425, %v4462
    %v4464 = vlaneseq
    %v4465 = vshrl.u32 %v4464, 7
    %v4466 = vsub.s32 0, %v4465
    %v4467 = vrot.slane %v4439, %v4466
    %v4468 = vlaneseq
    %v4469 = vshrl.u32 %v4468, 7
    %v4470 = vsub.s32 0, %v4469
    %v4471 = vrot.slane %v4441, %v4470
    %v4472 = vlaneseq
    %v4473 = vshrl.u32 %v4472, 7
    %v4474 = vsub.s32 0, %v4473
    %v4475 = vrot.slane %v4443, %v4474
    %v4476 = vcombine.high %v4447, %v4447
    %v4478 = vunpack.c.l.s4 1983009808
    %v4479 = vunpack.c.0.s8 %v4478
    %v4480 = vlaneseq
    %v4481 = vshrl.u32 %v4480, 7
    %v4482 = vsub.s32 %v4479, %v4481
    %v4483 = vrot.slane %v4447, %v4482
    %v4485 = vunpack.c.l.s4 1983009808
    %v4486 = vunpack.c.0.s8 %v4485
    %v4487 = vlaneseq
    %v4488 = vshrl.u32 %v4487, 7
    %v4489 = vsub.s32 %v4486, %v4488
    %v4490 = vrot.slane %v4476, %v4489
    %v4491 = vcombine.high %v4483, %v4483
    %v4492 = vcombine.high %v4451, %v4451
    %v4494 = vunpack.c.l.s4 1983009808
    %v4495 = vunpack.c.0.s8 %v4494
    %v4496 = vlaneseq
    %v4497 = vshrl.u32 %v4496, 7
    %v4498 = vsub.s32 %v4495, %v4497
    %v4499 = vrot.slane %v4451, %v4498
    %v4501 = vunpack.c.l.s4 1983009808
    %v4502 = vunpack.c.0.s8 %v4501
    %v4503 = vlaneseq
    %v4504 = vshrl.u32 %v4503, 7
    %v4505 = vsub.s32 %v4502, %v4504
    %v4506 = vrot.slane %v4492, %v4505
    %v4507 = vcombine.high %v4499, %v4499
    %v4508 = vcombine.high %v4455, %v4455
    %v4510 = vunpack.c.l.s4 1983009808
    %v4511 = vunpack.c.0.s8 %v4510
    %v4512 = vlaneseq
    %v4513 = vshrl.u32 %v4512, 7
    %v4514 = vsub.s32 %v4511, %v4513
    %v4515 = vrot.slane %v4455, %v4514
    %v4517 = vunpack.c.l.s4 1983009808
    %v4518 = vunpack.c.0.s8 %v4517
    %v4519 = vlaneseq
    %v4520 = vshrl.u32 %v4519, 7
    %v4521 = vsub.s32 %v4518, %v4520
    %v4522 = vrot.slane %v4508, %v4521
    %v4523 = vcombine.high %v4515, %v4515
    %v4524 = vcombine.high %v4459, %v4459
    %v4526 = vunpack.c.l.s4 1983009808
    %v4527 = vunpack.c.0.s8 %v4526
    %v4528 = vlaneseq
    %v4529 = vshrl.u32 %v4528, 7
    %v4530 = vsub.s32 %v4527, %v4529
    %v4531 = vrot.slane %v4459, %v4530
    %v4533 = vunpack.c.l.s4 1983009808
    %v4534 = vunpack.c.0.s8 %v4533
    %v4535 = vlaneseq
    %v4536 = vshrl.u32 %v4535, 7
    %v4537 = vsub.s32 %v4534, %v4536
    %v4538 = vrot.slane %v4524, %v4537
    %v4539 = vcombine.high %v4531, %v4531
    %v4540 = vcombine.high %v4463, %v4463
    %v4542 = vunpack.c.l.s4 1983009808
    %v4543 = vunpack.c.0.s8 %v4542
    %v4544 = vlaneseq
    %v4545 = vshrl.u32 %v4544, 7
    %v4546 = vsub.s32 %v4543, %v4545
    %v4547 = vrot.slane %v4463, %v4546
    %v4549 = vunpack.c.l.s4 1983009808
    %v4550 = vunpack.c.0.s8 %v4549
    %v4551 = vlaneseq
    %v4552 = vshrl.u32 %v4551, 7
    %v4553 = vsub.s32 %v4550, %v4552
    %v4554 = vrot.slane %v4540, %v4553
    %v4555 = vcombine.high %v4547, %v4547
    %v4556 = vcombine.high %v4467, %v4467
    %v4558 = vunpack.c.l.s4 1983009808
    %v4559 = vunpack.c.0.s8 %v4558
    %v4560 = vlaneseq
    %v4561 = vshrl.u32 %v4560, 7
    %v4562 = vsub.s32 %v4559, %v4561
    %v4563 = vrot.slane %v4467, %v4562
    %v4565 = vunpack.c.l.s4 1983009808
    %v4566 = vunpack.c.0.s8 %v4565
    %v4567 = vlaneseq
    %v4568 = vshrl.u32 %v4567, 7
    %v4569 = vsub.s32 %v4566, %v4568
    %v4570 = vrot.slane %v4556, %v4569
    %v4571 = vcombine.high %v4563, %v4563
    %v4572 = vcombine.high %v4471, %v4471
    %v4574 = vunpack.c.l.s4 1983009808
    %v4575 = vunpack.c.0.s8 %v4574
    %v4576 = vlaneseq
    %v4577 = vshrl.u32 %v4576, 7
    %v4578 = vsub.s32 %v4575, %v4577
    %v4579 = vrot.slane %v4471, %v4578
    %v4581 = vunpack.c.l.s4 1983009808
    %v4582 = vunpack.c.0.s8 %v4581
    %v4583 = vlaneseq
    %v4584 = vshrl.u32 %v4583, 7
    %v4585 = vsub.s32 %v4582, %v4584
    %v4586 = vrot.slane %v4572, %v4585
    %v4587 = vcombine.high %v4579, %v4579
    %v4588 = vcombine.high %v4475, %v4475
    %v4590 = vunpack.c.l.s4 1983009808
    %v4591 = vunpack.c.0.s8 %v4590
    %v4592 = vlaneseq
    %v4593 = vshrl.u32 %v4592, 7
    %v4594 = vsub.s32 %v4591, %v4593
    %v4595 = vrot.slane %v4475, %v4594
    %v4597 = vunpack.c.l.s4 1983009808
    %v4598 = vunpack.c.0.s8 %v4597
    %v4599 = vlaneseq
    %v4600 = vshrl.u32 %v4599, 7
    %v4601 = vsub.s32 %v4598, %v4600
    %v4602 = vrot.slane %v4588, %v4601
    %v4603 = vcombine.high %v4595, %v4595
    %v4628 = vadd.f32 %v4275, %v4483
    %v4629 = vadd.f32 %v4283, %v4491
    %v4630 = vadd.f32 %v4282, %v4490
    %v4631 = vadd.f32 %v4284, %v4499
    %v4632 = vadd.f32 %v4292, %v4507
    %v4633 = vadd.f32 %v4300, %v4506
    %v4634 = vadd.f32 %v4299, %v4515
    %v4635 = vadd.f32 %v4301, %v4523
    %v4636 = vadd.f32 %v4309, %v4522
    %v4637 = vadd.f32 %v4317, %v4531
    %v4638 = vadd.f32 %v4316, %v4539
    %v4639 = vadd.f32 %v4318, %v4538
    %v4640 = vadd.f32 %v4326, %v4547
    %v4641 = vadd.f32 %v4334, %v4555
    %v4642 = vadd.f32 %v4333, %v4554
    %v4643 = vadd.f32 %v4335, %v4563
    %v4644 = vadd.f32 %v4343, %v4571
    %v4645 = vadd.f32 %v4351, %v4570
    %v4646 = vadd.f32 %v4350, %v4579
    %v4647 = vadd.f32 %v4352, %v4587
    %v4648 = vadd.f32 %v4360, %v4586
    %v4649 = vadd.f32 %v4368, %v4595
    %v4650 = vadd.f32 %v4367, %v4603
    %v4651 = vadd.f32 %v4369, %v4602
    %v4652 = vtanh.pop %v4628
    %v4653 = vtanh.pop %v4629
    %v4654 = vtanh.pop %v4630
    %v4655 = vtanh.pop %v4631
    %v4656 = vtanh.pop %v4632
    %v4657 = vtanh.pop %v4633
    %v4658 = vtanh.pop %v4634
    %v4659 = vtanh.pop %v4635
    %v4660 = vtanh.pop %v4636
    %v4661 = vtanh.pop %v4637
    %v4662 = vtanh.pop %v4638
    %v4663 = vtanh.pop %v4639
    %v4664 = vtanh.pop %v4640
    %v4665 = vtanh.pop %v4641
    %v4666 = vtanh.pop %v4642
    %v4667 = vtanh.pop %v4643
    %v4668 = vtanh.pop %v4644
    %v4669 = vtanh.pop %v4645
    %v4670 = vtanh.pop %v4646
    %v4671 = vtanh.pop %v4647
    %v4672 = vtanh.pop %v4648
    %v4673 = vtanh.pop %v4649
    %v4674 = vtanh.pop %v4650
    %v4675 = vtanh.pop %v4651
    %v4677 = vlaneseq
    %v4678 = vshrl.u32 %v4677, 7
    %v4679 = vsub.s32 0, %v4678
    %v4680 = vrot.slane %v3844, %v4679
    %v4681 = vcombine.high %v4680, %v4680
    %v4683 = vunpack.c.l.s4 1983009808
    %v4684 = vunpack.c.0.s8 %v4683
    %v4685 = vlaneseq
    %v4686 = vshrl.u32 %v4685, 7
    %v4687 = vsub.s32 %v4684, %v4686
    %v4688 = vrot.slane %v4680, %v4687
    %v4690 = vunpack.c.l.s4 1983009808
    %v4691 = vunpack.c.0.s8 %v4690
    %v4692 = vlaneseq
    %v4693 = vshrl.u32 %v4692, 7
    %v4694 = vsub.s32 %v4691, %v4693
    %v4695 = vrot.slane %v4681, %v4694
    %v4696 = vcombine.high %v4688, %v4688
    %v4700 = vmul.f32 %v4652, %v4688
    %v4701 = vmul.f32 %v4653, %v4696
    %v4702 = vmul.f32 %v4654, %v4695
    %v4703 = vmul.f32 %v4655, %v4688
    %v4704 = vmul.f32 %v4656, %v4696
    %v4705 = vmul.f32 %v4657, %v4695
    %v4706 = vmul.f32 %v4658, %v4688
    %v4707 = vmul.f32 %v4659, %v4696
    %v4708 = vmul.f32 %v4660, %v4695
    %v4709 = vmul.f32 %v4661, %v4688
    %v4710 = vmul.f32 %v4662, %v4696
    %v4711 = vmul.f32 %v4663, %v4695
    %v4712 = vmul.f32 %v4664, %v4688
    %v4713 = vmul.f32 %v4665, %v4696
    %v4714 = vmul.f32 %v4666, %v4695
    %v4715 = vmul.f32 %v4667, %v4688
    %v4716 = vmul.f32 %v4668, %v4696
    %v4717 = vmul.f32 %v4669, %v4695
    %v4718 = vmul.f32 %v4670, %v4688
    %v4719 = vmul.f32 %v4671, %v4696
    %v4720 = vmul.f32 %v4672, %v4695
    %v4721 = vmul.f32 %v4673, %v4688
    %v4722 = vmul.f32 %v4674, %v4696
    %v4723 = vmul.f32 %v4675, %v4695
    %v4748 = vcombine.low %v4700, %v4701
    %v4750 = vunpack.c.l.s4 1983009808
    %v4751 = vunpack.c.0.s8 %v4750
    %v4752 = vlaneseq
    %v4753 = vshrl.u32 %v4752, 7
    %v4754 = vsub.s32 %v4751, %v4753
    %v4755 = vrot.slane %v4748, %v4754
    %v4757 = vunpack.c.l.s4 1983009808
    %v4758 = vunpack.c.0.s8 %v4757
    %v4759 = vlaneseq
    %v4760 = vshrl.u32 %v4759, 7
    %v4761 = vsub.s32 %v4758, %v4760
    %v4762 = vrot.slane %v4702, %v4761
    %v4763 = vcombine.low %v4755, %v4762
    %v4764 = vcombine.low %v4703, %v4704
    %v4766 = vunpack.c.l.s4 1983009808
    %v4767 = vunpack.c.0.s8 %v4766
    %v4768 = vlaneseq
    %v4769 = vshrl.u32 %v4768, 7
    %v4770 = vsub.s32 %v4767, %v4769
    %v4771 = vrot.slane %v4764, %v4770
    %v4773 = vunpack.c.l.s4 1983009808
    %v4774 = vunpack.c.0.s8 %v4773
    %v4775 = vlaneseq
    %v4776 = vshrl.u32 %v4775, 7
    %v4777 = vsub.s32 %v4774, %v4776
    %v4778 = vrot.slane %v4705, %v4777
    %v4779 = vcombine.low %v4771, %v4778
    %v4780 = vcombine.low %v4706, %v4707
    %v4782 = vunpack.c.l.s4 1983009808
    %v4783 = vunpack.c.0.s8 %v4782
    %v4784 = vlaneseq
    %v4785 = vshrl.u32 %v4784, 7
    %v4786 = vsub.s32 %v4783, %v4785
    %v4787 = vrot.slane %v4780, %v4786
    %v4789 = vunpack.c.l.s4 1983009808
    %v4790 = vunpack.c.0.s8 %v4789
    %v4791 = vlaneseq
    %v4792 = vshrl.u32 %v4791, 7
    %v4793 = vsub.s32 %v4790, %v4792
    %v4794 = vrot.slane %v4708, %v4793
    %v4795 = vcombine.low %v4787, %v4794
    %v4796 = vcombine.low %v4709, %v4710
    %v4798 = vunpack.c.l.s4 1983009808
    %v4799 = vunpack.c.0.s8 %v4798
    %v4800 = vlaneseq
    %v4801 = vshrl.u32 %v4800, 7
    %v4802 = vsub.s32 %v4799, %v4801
    %v4803 = vrot.slane %v4796, %v4802
    %v4805 = vunpack.c.l.s4 1983009808
    %v4806 = vunpack.c.0.s8 %v4805
    %v4807 = vlaneseq
    %v4808 = vshrl.u32 %v4807, 7
    %v4809 = vsub.s32 %v4806, %v4808
    %v4810 = vrot.slane %v4711, %v4809
    %v4811 = vcombine.low %v4803, %v4810
    %v4812 = vcombine.low %v4712, %v4713
    %v4814 = vunpack.c.l.s4 1983009808
    %v4815 = vunpack.c.0.s8 %v4814
    %v4816 = vlaneseq
    %v4817 = vshrl.u32 %v4816, 7
    %v4818 = vsub.s32 %v4815, %v4817
    %v4819 = vrot.slane %v4812, %v4818
    %v4821 = vunpack.c.l.s4 1983009808
    %v4822 = vunpack.c.0.s8 %v4821
    %v4823 = vlaneseq
    %v4824 = vshrl.u32 %v4823, 7
    %v4825 = vsub.s32 %v4822, %v4824
    %v4826 = vrot.slane %v4714, %v4825
    %v4827 = vcombine.low %v4819, %v4826
    %v4828 = vcombine.low %v4715, %v4716
    %v4830 = vunpack.c.l.s4 1983009808
    %v4831 = vunpack.c.0.s8 %v4830
    %v4832 = vlaneseq
    %v4833 = vshrl.u32 %v4832, 7
    %v4834 = vsub.s32 %v4831, %v4833
    %v4835 = vrot.slane %v4828, %v4834
    %v4837 = vunpack.c.l.s4 1983009808
    %v4838 = vunpack.c.0.s8 %v4837
    %v4839 = vlaneseq
    %v4840 = vshrl.u32 %v4839, 7
    %v4841 = vsub.s32 %v4838, %v4840
    %v4842 = vrot.slane %v4717, %v4841
    %v4843 = vcombine.low %v4835, %v4842
    %v4844 = vcombine.low %v4718, %v4719
    %v4846 = vunpack.c.l.s4 1983009808
    %v4847 = vunpack.c.0.s8 %v4846
    %v4848 = vlaneseq
    %v4849 = vshrl.u32 %v4848, 7
    %v4850 = vsub.s32 %v4847, %v4849
    %v4851 = vrot.slane %v4844, %v4850
    %v4853 = vunpack.c.l.s4 1983009808
    %v4854 = vunpack.c.0.s8 %v4853
    %v4855 = vlaneseq
    %v4856 = vshrl.u32 %v4855, 7
    %v4857 = vsub.s32 %v4854, %v4856
    %v4858 = vrot.slane %v4720, %v4857
    %v4859 = vcombine.low %v4851, %v4858
    %v4860 = vcombine.low %v4721, %v4722
    %v4862 = vunpack.c.l.s4 1983009808
    %v4863 = vunpack.c.0.s8 %v4862
    %v4864 = vlaneseq
    %v4865 = vshrl.u32 %v4864, 7
    %v4866 = vsub.s32 %v4863, %v4865
    %v4867 = vrot.slane %v4860, %v4866
    %v4869 = vunpack.c.l.s4 1983009808
    %v4870 = vunpack.c.0.s8 %v4869
    %v4871 = vlaneseq
    %v4872 = vshrl.u32 %v4871, 7
    %v4873 = vsub.s32 %v4870, %v4872
    %v4874 = vrot.slane %v4723, %v4873
    %v4875 = vcombine.low %v4867, %v4874
    %vm4884 = vcmask 62464
    %v4885 = vsel %vm4884, %v4763, 0.0
    %4886 = vadd.xlane.f32.xlu0 %v4885
    %v4887 = vpop.xlane.xlu0 %4886
    %v4888 = vsel %vm4884, %v4779, 0.0
    %4889 = vadd.xlane.f32.xlu0 %v4888
    %v4890 = vpop.xlane.xlu0 %4889
    %v4891 = vsel %vm4884, %v4795, 0.0
    %4892 = vadd.xlane.f32.xlu0 %v4891
    %v4893 = vpop.xlane.xlu0 %4892
    %v4894 = vsel %vm4884, %v4811, 0.0
    %4895 = vadd.xlane.f32.xlu0 %v4894
    %v4896 = vpop.xlane.xlu0 %4895
    %v4897 = vsel %vm4884, %v4827, 0.0
    %4898 = vadd.xlane.f32.xlu0 %v4897
    %v4899 = vpop.xlane.xlu0 %4898
    %v4900 = vsel %vm4884, %v4843, 0.0
    %4901 = vadd.xlane.f32.xlu0 %v4900
    %v4902 = vpop.xlane.xlu0 %4901
    %v4903 = vsel %vm4884, %v4859, 0.0
    %4904 = vadd.xlane.f32.xlu0 %v4903
    %v4905 = vpop.xlane.xlu0 %4904
    %v4906 = vsel %vm4884, %v4875, 0.0
    %4907 = vadd.xlane.f32.xlu0 %v4906
    %v4908 = vpop.xlane.xlu0 %4907
    %v4909 = vlaneseq
    %v4910 = vand.u32 %v4909, 127
    %4911 = vset.pattern.permute.xlu0 0
    %4912 = vperm.xlu0 %4911, %v3841
    %v4913 = vpop.permute.xlu0 %4912
    %vm4914 = vcmp.lt.s32.totalorder %v4910, %v4913
    %v4923 = vlaneseq
    %v4924 = vshrl.u32 %v4923, 7
    %v4925 = vsub.s32 %v4910, %v4924
    %v4926 = vrot.slane %v4887, %v4925
    %v4927 = vlaneseq
    %v4928 = vshrl.u32 %v4927, 7
    %v4929 = vsub.s32 %v4910, %v4928
    %v4930 = vrot.slane %v4890, %v4929
    %v4931 = vlaneseq
    %v4932 = vshrl.u32 %v4931, 7
    %v4933 = vsub.s32 %v4910, %v4932
    %v4934 = vrot.slane %v4893, %v4933
    %v4935 = vlaneseq
    %v4936 = vshrl.u32 %v4935, 7
    %v4937 = vsub.s32 %v4910, %v4936
    %v4938 = vrot.slane %v4896, %v4937
    %v4939 = vlaneseq
    %v4940 = vshrl.u32 %v4939, 7
    %v4941 = vsub.s32 %v4910, %v4940
    %v4942 = vrot.slane %v4899, %v4941
    %v4943 = vlaneseq
    %v4944 = vshrl.u32 %v4943, 7
    %v4945 = vsub.s32 %v4910, %v4944
    %v4946 = vrot.slane %v4902, %v4945
    %v4947 = vlaneseq
    %v4948 = vshrl.u32 %v4947, 7
    %v4949 = vsub.s32 %v4910, %v4948
    %v4950 = vrot.slane %v4905, %v4949
    %v4951 = vlaneseq
    %v4952 = vshrl.u32 %v4951, 7
    %v4953 = vsub.s32 %v4910, %v4952
    %v4954 = vrot.slane %v4908, %v4953
    %v4955 = vsel %vm922, %v4930, %v4926
    %v4956 = vsel %vm924, %v4934, %v4955
    %v4957 = vsel %vm926, %v4938, %v4956
    %v4958 = vsel %vm928, %v4942, %v4957
    %v4959 = vsel %vm930, %v4946, %v4958
    %v4960 = vsel %vm932, %v4950, %v4959
    %v4961 = vsel %vm934, %v4954, %v4960
    %v4963 = vsel %vm4914, %v4961, -1e+30
    %vm4964 = vcmask 48128
    %v4965 = vsel %vm4964, %v4963, -inf
    %4966 = vmax.xlane.f32.xlu0 %v4965
    %v4967 = vpop.xlane.xlu0 %4966
    %v4968 = vsub.f32 %v4963, %v4967
    %v4969 = vmul.f32 %v4968, 1.442695
    %v4970 = vpow.pop %v4969
    %v4971 = vsel %vm4914, %v4970, 0.0
    %v4972 = vsel %vm4964, %v4971, 0.0
    %4973 = vadd.xlane.f32.xlu0 %v4972
    %v4974 = vpop.xlane.xlu0 %4973
    %v4975 = vmax.f32 %v4974, 1e-30
    %v4976 = vrcp.pop %v4975
    %v4977 = vmul.f32 %v4971, %v4976
    %v4978 = vlaneseq
    %v4979 = vshrl.u32 %v4978, 7
    %v4980 = vsub.s32 0, %v4979
    %v4981 = vrot.slane %v4977, %v4980
    %4983 = vbcast.lane.b32.xlu0 %v4981, 256
    %v4984 = vpop.permute.xlu0 %4983
    %v4985 = vlaneseq
    %v4986 = vshrl.u32 %v4985, 7
    %v4987 = vsub.s32 1, %v4986
    %v4988 = vrot.slane %v4977, %v4987
    %4990 = vbcast.lane.b32.xlu0 %v4988, 256
    %v4991 = vpop.permute.xlu0 %4990
    %v4992 = vlaneseq
    %v4993 = vshrl.u32 %v4992, 7
    %v4994 = vsub.s32 2, %v4993
    %v4995 = vrot.slane %v4977, %v4994
    %4997 = vbcast.lane.b32.xlu0 %v4995, 256
    %v4998 = vpop.permute.xlu0 %4997
    %v4999 = vlaneseq
    %v5000 = vshrl.u32 %v4999, 7
    %v5001 = vsub.s32 3, %v5000
    %v5002 = vrot.slane %v4977, %v5001
    %5004 = vbcast.lane.b32.xlu0 %v5002, 256
    %v5005 = vpop.permute.xlu0 %5004
    %v5006 = vlaneseq
    %v5007 = vshrl.u32 %v5006, 7
    %v5008 = vsub.s32 4, %v5007
    %v5009 = vrot.slane %v4977, %v5008
    %5011 = vbcast.lane.b32.xlu0 %v5009, 256
    %v5012 = vpop.permute.xlu0 %5011
    %v5013 = vlaneseq
    %v5014 = vshrl.u32 %v5013, 7
    %v5015 = vsub.s32 5, %v5014
    %v5016 = vrot.slane %v4977, %v5015
    %5018 = vbcast.lane.b32.xlu0 %v5016, 256
    %v5019 = vpop.permute.xlu0 %5018
    %v5020 = vlaneseq
    %v5021 = vshrl.u32 %v5020, 7
    %v5022 = vsub.s32 6, %v5021
    %v5023 = vrot.slane %v4977, %v5022
    %5025 = vbcast.lane.b32.xlu0 %v5023, 256
    %v5026 = vpop.permute.xlu0 %5025
    %v5027 = vlaneseq
    %v5028 = vshrl.u32 %v5027, 7
    %v5029 = vsub.s32 7, %v5028
    %v5030 = vrot.slane %v4977, %v5029
    %5032 = vbcast.lane.b32.xlu0 %v5030, 256
    %v5033 = vpop.permute.xlu0 %5032
    %v5034 = vmul.f32 %v4984, %v3832
    %v5035 = vmul.f32 %v4991, %v3833
    %v5036 = vmul.f32 %v4998, %v3834
    %v5037 = vmul.f32 %v5005, %v3835
    %v5038 = vmul.f32 %v5012, %v3836
    %v5039 = vmul.f32 %v5019, %v3837
    %v5040 = vmul.f32 %v5026, %v3838
    %v5041 = vmul.f32 %v5033, %v3839
    %v5042 = vsel %vm4884, %v5034, 0.0
    %v5043 = vrot.slane %v5042, 4
    %v5044 = vadd.f32 %v5042, %v5043
    %v5045 = vrot.slane %v5044, 2
    %v5046 = vadd.f32 %v5044, %v5045
    %v5047 = vrot.slane %v5046, 1
    %v5048 = vadd.f32 %v5046, %v5047
    %v5049 = vsel %vm4884, %v5035, 0.0
    %v5050 = vrot.slane %v5049, 4
    %v5051 = vadd.f32 %v5049, %v5050
    %v5052 = vrot.slane %v5051, 2
    %v5053 = vadd.f32 %v5051, %v5052
    %v5054 = vrot.slane %v5053, 1
    %v5055 = vadd.f32 %v5053, %v5054
    %v5056 = vsel %vm4884, %v5036, 0.0
    %v5057 = vrot.slane %v5056, 4
    %v5058 = vadd.f32 %v5056, %v5057
    %v5059 = vrot.slane %v5058, 2
    %v5060 = vadd.f32 %v5058, %v5059
    %v5061 = vrot.slane %v5060, 1
    %v5062 = vadd.f32 %v5060, %v5061
    %v5063 = vsel %vm4884, %v5037, 0.0
    %v5064 = vrot.slane %v5063, 4
    %v5065 = vadd.f32 %v5063, %v5064
    %v5066 = vrot.slane %v5065, 2
    %v5067 = vadd.f32 %v5065, %v5066
    %v5068 = vrot.slane %v5067, 1
    %v5069 = vadd.f32 %v5067, %v5068
    %v5070 = vsel %vm4884, %v5038, 0.0
    %v5071 = vrot.slane %v5070, 4
    %v5072 = vadd.f32 %v5070, %v5071
    %v5073 = vrot.slane %v5072, 2
    %v5074 = vadd.f32 %v5072, %v5073
    %v5075 = vrot.slane %v5074, 1
    %v5076 = vadd.f32 %v5074, %v5075
    %v5077 = vsel %vm4884, %v5039, 0.0
    %v5078 = vrot.slane %v5077, 4
    %v5079 = vadd.f32 %v5077, %v5078
    %v5080 = vrot.slane %v5079, 2
    %v5081 = vadd.f32 %v5079, %v5080
    %v5082 = vrot.slane %v5081, 1
    %v5083 = vadd.f32 %v5081, %v5082
    %v5084 = vsel %vm4884, %v5040, 0.0
    %v5085 = vrot.slane %v5084, 4
    %v5086 = vadd.f32 %v5084, %v5085
    %v5087 = vrot.slane %v5086, 2
    %v5088 = vadd.f32 %v5086, %v5087
    %v5089 = vrot.slane %v5088, 1
    %v5090 = vadd.f32 %v5088, %v5089
    %v5091 = vsel %vm4884, %v5041, 0.0
    %v5092 = vrot.slane %v5091, 4
    %v5093 = vadd.f32 %v5091, %v5092
    %v5094 = vrot.slane %v5093, 2
    %v5095 = vadd.f32 %v5093, %v5094
    %v5096 = vrot.slane %v5095, 1
    %v5097 = vadd.f32 %v5095, %v5096
    %v5106 = vsel %vm922, %v5055, %v5048
    %v5107 = vsel %vm924, %v5062, %v5106
    %v5108 = vsel %vm926, %v5069, %v5107
    %v5109 = vsel %vm928, %v5076, %v5108
    %v5110 = vsel %vm930, %v5083, %v5109
    %v5111 = vsel %vm932, %v5090, %v5110
    %v5112 = vsel %vm934, %v5097, %v5111
    %5114 = vst.msk [vmem:[#allocation2] sm:$0xff] %vm283, %v5112
    %5115 = vst.msk [vmem:[#allocation4] sm:$0xff] %vm4964, %v4977
    // Predicated region
    $region34: #{tpu_custom_call.1} parent=1 // pred_check
      _
    $region35: #{tpu_custom_call.1} parent=1 // pred_check_branch
      %5117 = sbr.rel (0) target = $region37
    $region36: #{tpu_custom_call.1} parent=1 // pred_region
      %s5119 = ssub.s32 128, 128
      %5120 = vsyncadd [#allocation3], %s5119
      %s5122 = sshll.u32 [#allocation2], 4
      %s5123 = int_to_ptr.vmem [resolvable:$true] %s5122
      %5125 = dma.vmem_to_hbm [thread:$0]  %s5123, 128, %s8, [#allocation3]
    $region37: #{tpu_custom_call.1} parent=1 // pred_fallthru
      _
    // Predicated region
    $region38: #{tpu_custom_call.1} parent=1 // pred_check
      _
    $region39: #{tpu_custom_call.1} parent=1 // pred_check_branch
      %5127 = sbr.rel (0) target = $region41
    $region40: #{tpu_custom_call.1} parent=1 // pred_region
      %s5129 = ssub.s32 128, 128
      %5130 = vsyncadd [#allocation5], %s5129
      %s5132 = sshll.u32 [#allocation4], 4
      %s5133 = int_to_ptr.vmem [resolvable:$true] %s5132
      %5135 = dma.vmem_to_hbm [thread:$0]  %s5133, 128, %s9, [#allocation5]
    $region41: #{tpu_custom_call.1} parent=1 // pred_fallthru
      _
    // Predicated region
    $region42: #{tpu_custom_call.1} parent=1 // pred_check
      _
    $region43: #{tpu_custom_call.1} parent=1 // pred_check_branch
      %5137 = sbr.rel (0) target = $region45
    $region44: #{tpu_custom_call.1} parent=1 // pred_region
      %5138 = dma.done [#allocation3], 128
    $region45: #{tpu_custom_call.1} parent=1 // pred_fallthru
      _
    // Predicated region
    $region46: #{tpu_custom_call.1} parent=1 // pred_check
      _
    $region47: #{tpu_custom_call.1} parent=1 // pred_check_branch
      %5140 = sbr.rel (0) target = $region49
    $region48: #{tpu_custom_call.1} parent=1 // pred_region
      %5141 = dma.done [#allocation5], 128
    $region49: #{tpu_custom_call.1} parent=1 // pred_fallthru
      _
    %5142 = vsyncpa [#allocation3], 1
    %5143 = vsyncpa [#allocation5], 1

</llo_original>
